<compile_context>
chip_gen: v7x
topology: tpu7x:2x2x1
jax: 0.10.0
libtpu: 0.0.40
codegen_flags: <defaults>
</compile_context>

<pallas_src>
import functools

import jax
import jax.numpy as jnp
from jax import lax
from jax.experimental import pallas as pl
from jax.experimental.pallas import tpu as pltpu


# ----------------------------------------------------------------------------
# Kernel
# ----------------------------------------------------------------------------
def _layer_norm(x, gamma, beta, eps):
    # x: (T, D) f32; gamma/beta: (1, D)
    mu = jnp.mean(x, axis=-1, keepdims=True)
    xc = x - mu
    var = jnp.mean(xc * xc, axis=-1, keepdims=True)
    return xc * lax.rsqrt(var + eps) * gamma + beta


def _encoder_kernel(x_ref,
                    ln1g_ref, ln1b_ref, wqkv_ref, bqkv_ref, wo_ref, bo_ref,
                    ln2g_ref, ln2b_ref, wf1_ref, bf1_ref, wf2_ref, bf2_ref,
                    o_ref, *, num_layers, num_head, dim_head, eps):
    inner = num_head * dim_head
    scale = float(dim_head) ** -0.5

    # One grid step == one batch element: x_ref is (1, T, D).
    x = x_ref[0].astype(jnp.float32)                    # (T, D), VMEM-resident

    for l in range(num_layers):                         # static unroll over layers
        # ---------------- Residual(PreNorm(Attention)) ----------------
        xn = _layer_norm(x, ln1g_ref[l], ln1b_ref[l], eps)
        qkv = (jnp.dot(xn, wqkv_ref[l], preferred_element_type=jnp.float32)
               + bqkv_ref[l])                           # (T, 3*inner)
        q = qkv[:, 0 * inner:1 * inner] * scale         # fold softmax scale into q
        k = qkv[:, 1 * inner:2 * inner]
        v = qkv[:, 2 * inner:3 * inner]

        head_outs = []
        for h in range(num_head):                       # static unroll (tiny H)
            c0 = h * dim_head
            qh = q[:, c0:c0 + dim_head]                 # (T, dh)
            kh = k[:, c0:c0 + dim_head]
            vh = v[:, c0:c0 + dim_head]
            # sim = qh @ kh^T  (contract the head dim of both operands)
            sim = lax.dot_general(qh, kh, (((1,), (1,)), ((), ())),
                                  preferred_element_type=jnp.float32)
            sim = sim - jnp.max(sim, axis=-1, keepdims=True)
            p = jnp.exp(sim)
            p = p / jnp.sum(p, axis=-1, keepdims=True)
            head_outs.append(
                jnp.dot(p, vh, preferred_element_type=jnp.float32))       # (T, dh)
        attn = jnp.concatenate(head_outs, axis=1)                         # (T, inner)

        attn_out = (jnp.dot(attn, wo_ref[l], preferred_element_type=jnp.float32)
                    + bo_ref[l])
        x = x + attn_out                                # residual

        # ---------------- Residual(PreNorm(FeedForward)) ----------------
        xn2 = _layer_norm(x, ln2g_ref[l], ln2b_ref[l], eps)
        hdn = (jnp.dot(xn2, wf1_ref[l], preferred_element_type=jnp.float32)
               + bf1_ref[l])
        hdn = jnp.maximum(hdn, 0.0)                     # ReLU
        ff = (jnp.dot(hdn, wf2_ref[l], preferred_element_type=jnp.float32)
              + bf2_ref[l])
        x = x + ff                                      # residual
        # Dropout(p=0) in the reference module is an identity -> nothing to do.

    o_ref[0] = x.astype(o_ref.dtype)


# ----------------------------------------------------------------------------
# Host wrapper
# ----------------------------------------------------------------------------
def _const_spec(shape):
    """Full-array block whose index is constant across the batch grid, so the
    weight slab is DMA'd once and stays resident in VMEM."""
    zeros = (0,) * len(shape)
    return pl.BlockSpec(shape, lambda b, _z=zeros: _z)


def encoder_forward(x, packed, *, num_head, dim_head, eps=1e-5):
    """Fused Pallas forward of the whole Encoder. x: (B, T, D)."""
    B, T, D = x.shape
    (ln1g, ln1b, wqkv, bqkv, wo, bo, ln2g, ln2b, wf1, bf1, wf2, bf2) = packed
    num_layers = wqkv.shape[0]

    kernel = functools.partial(
        _encoder_kernel, num_layers=num_layers,
        num_head=num_head, dim_head=dim_head, eps=eps)
    weights = (ln1g, ln1b, wqkv, bqkv, wo, bo,
               ln2g, ln2b, wf1, bf1, wf2, bf2)

    out = pl.pallas_call(
        kernel,
        out_shape=jax.ShapeDtypeStruct((B, T, D), x.dtype),
        grid=(B,),
        in_specs=[pl.BlockSpec((1, T, D), lambda b: (b, 0, 0))]
                 + [_const_spec(w.shape) for w in weights],
        out_specs=pl.BlockSpec((1, T, D), lambda b: (b, 0, 0)),
        compiler_params=pltpu.CompilerParams(
            dimension_semantics=("parallel",)),
    )(x, *weights)
    return out


# ----------------------------------------------------------------------------
# Parameters (PyTorch layout) + packing into kernel layout
# ----------------------------------------------------------------------------
def init_encoder_params(key, *, dim, num_head, dim_head, num_layers, mult=4):
    """nn.Linear default init (uniform +/- 1/sqrt(fan_in)), nn.LayerNorm defaults."""
    inner = num_head * dim_head

    def linear(k, f_in, f_out):
        kw, kb = jax.random.split(k)
        bound = 1.0 / (f_in ** 0.5)
        w = jax.random.uniform(kw, (f_out, f_in), jnp.float32, -bound, bound)
        b = jax.random.uniform(kb, (f_out,), jnp.float32, -bound, bound)
        return w, b

    params = []
    for _ in range(num_layers):
        key, k1, k2, k3, k4 = jax.random.split(key, 5)
        layer = {
            "ln1_g": jnp.ones((dim,), jnp.float32),
            "ln1_b": jnp.zeros((dim,), jnp.float32),
            "ln2_g": jnp.ones((dim,), jnp.float32),
            "ln2_b": jnp.zeros((dim,), jnp.float32),
        }
        layer["w_qkv"], layer["b_qkv"] = linear(k1, dim, inner * 3)
        layer["w_out"], layer["b_out"] = linear(k2, inner, dim)
        layer["w_ff1"], layer["b_ff1"] = linear(k3, dim, dim * mult)
        layer["w_ff2"], layer["b_ff2"] = linear(k4, dim * mult, dim)
        params.append(layer)
    return params


def pack_params(params):
    """Stack per-layer PyTorch-layout weights into kernel-layout arrays
    (weights transposed to (f_in, f_out); biases as (1, f_out) rows)."""
    def stack(fn):
        return jnp.stack([fn(p) for p in params], axis=0)

    return (
        stack(lambda p: p["ln1_g"].reshape(1, -1)),
        stack(lambda p: p["ln1_b"].reshape(1, -1)),
        stack(lambda p: p["w_qkv"].T),
        stack(lambda p: p["b_qkv"].reshape(1, -1)),
        stack(lambda p: p["w_out"].T),
        stack(lambda p: p["b_out"].reshape(1, -1)),
        stack(lambda p: p["ln2_g"].reshape(1, -1)),
        stack(lambda p: p["ln2_b"].reshape(1, -1)),
        stack(lambda p: p["w_ff1"].T),
        stack(lambda p: p["b_ff1"].reshape(1, -1)),
        stack(lambda p: p["w_ff2"].T),
        stack(lambda p: p["b_ff2"].reshape(1, -1)),
    )


# ----------------------------------------------------------------------------
# Pure-JAX reference mirroring the PyTorch forward exactly
# ----------------------------------------------------------------------------
def _layer_norm_ref(x, g, b, eps=1e-5):
    mu = jnp.mean(x, axis=-1, keepdims=True)
    var = jnp.mean((x - mu) ** 2, axis=-1, keepdims=True)
    return (x - mu) / jnp.sqrt(var + eps) * g + b


def encoder_forward_ref(x, params, *, num_head, dim_head):
    B, T, D = x.shape
    inner = num_head * dim_head
    scale = dim_head ** -0.5
    for p in params:
        h = _layer_norm_ref(x, p["ln1_g"], p["ln1_b"])
        qkv = h @ p["w_qkv"].T + p["b_qkv"]
        q, k, v = jnp.split(qkv, 3, axis=-1)
        to_heads = lambda t: t.reshape(B, T, num_head, dim_head).transpose(0, 2, 1, 3)
        q, k, v = to_heads(q), to_heads(k), to_heads(v)
        sim = (q @ jnp.swapaxes(k, -2, -1)) * scale
        attn = jax.nn.softmax(sim, axis=-1) @ v
        out = attn.transpose(0, 2, 1, 3).reshape(B, T, inner) @ p["w_out"].T + p["b_out"]
        x = x + out
        h2 = _layer_norm_ref(x, p["ln2_g"], p["ln2_b"])
        ff = jnp.maximum(h2 @ p["w_ff1"].T + p["b_ff1"], 0.0) @ p["w_ff2"].T + p["b_ff2"]
        x = x + ff
    return x


# ----------------------------------------------------------------------------
if __name__ == "__main__":
    key = jax.random.PRNGKey(0)
    k_x, k_p = jax.random.split(key)

    B, T, D = 2, 8, 32
    num_head, dim_head, num_layers = 4, 8, 2

    x = jax.random.normal(k_x, (B, T, D), jnp.float32)
    params = init_encoder_params(
        k_p, dim=D, num_head=num_head, dim_head=dim_head, num_layers=num_layers)
    packed = pack_params(params)

    out = encoder_forward(x, packed, num_head=num_head, dim_head=dim_head)
    out = jax.block_until_ready(out)

    ref = encoder_forward_ref(x, params, num_head=num_head, dim_head=dim_head)
    assert out.shape == (B, T, D), out.shape
    max_err = float(jnp.max(jnp.abs(out - ref)))
    assert jnp.allclose(out, ref, atol=1e-4, rtol=1e-4), f"mismatch vs reference: {max_err}"

    print("KERNEL_OK")
</pallas_src>

<mosaic_0001>
module attributes {stable_mosaic.version = 11 : i64} {
  func.func @_encoder_kernel(%arg0: i32, %arg1: memref<1x8x32xf32, #tpu.memory_space<vmem>>, %arg2: memref<2x1x32xf32, #tpu.memory_space<vmem>>, %arg3: memref<2x1x32xf32, #tpu.memory_space<vmem>>, %arg4: memref<2x32x96xf32, #tpu.memory_space<vmem>>, %arg5: memref<2x1x96xf32, #tpu.memory_space<vmem>>, %arg6: memref<2x32x32xf32, #tpu.memory_space<vmem>>, %arg7: memref<2x1x32xf32, #tpu.memory_space<vmem>>, %arg8: memref<2x1x32xf32, #tpu.memory_space<vmem>>, %arg9: memref<2x1x32xf32, #tpu.memory_space<vmem>>, %arg10: memref<2x32x128xf32, #tpu.memory_space<vmem>>, %arg11: memref<2x1x128xf32, #tpu.memory_space<vmem>>, %arg12: memref<2x128x32xf32, #tpu.memory_space<vmem>>, %arg13: memref<2x1x32xf32, #tpu.memory_space<vmem>>, %arg14: memref<1x8x32xf32, #tpu.memory_space<vmem>>) attributes {dimension_semantics = [#tpu.dimension_semantics<parallel>], iteration_bounds = array<i64: 2>, scalar_prefetch = 0 : i64, scratch_operands = 0 : i64, tpu.core_type = #tpu.core_type<tc>, window_params = [{transform_indices = @transform_0, window_bounds = array<i64: 1, 8, 32>}, {pipeline_mode = #tpu.pipeline_mode<synchronous>, transform_indices = @transform_1, window_bounds = array<i64: 2, 1, 32>}, {pipeline_mode = #tpu.pipeline_mode<synchronous>, transform_indices = @transform_2, window_bounds = array<i64: 2, 1, 32>}, {pipeline_mode = #tpu.pipeline_mode<synchronous>, transform_indices = @transform_3, window_bounds = array<i64: 2, 32, 96>}, {pipeline_mode = #tpu.pipeline_mode<synchronous>, transform_indices = @transform_4, window_bounds = array<i64: 2, 1, 96>}, {pipeline_mode = #tpu.pipeline_mode<synchronous>, transform_indices = @transform_5, window_bounds = array<i64: 2, 32, 32>}, {pipeline_mode = #tpu.pipeline_mode<synchronous>, transform_indices = @transform_6, window_bounds = array<i64: 2, 1, 32>}, {pipeline_mode = #tpu.pipeline_mode<synchronous>, transform_indices = @transform_7, window_bounds = array<i64: 2, 1, 32>}, {pipeline_mode = #tpu.pipeline_mode<synchronous>, transform_indices = @transform_8, window_bounds = array<i64: 2, 1, 32>}, {pipeline_mode = #tpu.pipeline_mode<synchronous>, transform_indices = @transform_9, window_bounds = array<i64: 2, 32, 128>}, {pipeline_mode = #tpu.pipeline_mode<synchronous>, transform_indices = @transform_10, window_bounds = array<i64: 2, 1, 128>}, {pipeline_mode = #tpu.pipeline_mode<synchronous>, transform_indices = @transform_11, window_bounds = array<i64: 2, 128, 32>}, {pipeline_mode = #tpu.pipeline_mode<synchronous>, transform_indices = @transform_12, window_bounds = array<i64: 2, 1, 32>}, {transform_indices = @transform_13, window_bounds = array<i64: 1, 8, 32>}]} {
    %c0 = arith.constant 0 : index
    %c0_0 = arith.constant 0 : index
    %c0_1 = arith.constant 0 : index
    %0 = vector.load %arg1[%c0, %c0_0, %c0_1] : memref<1x8x32xf32, #tpu.memory_space<vmem>>, vector<1x8x32xf32>
    %1 = vector.shape_cast %0 : vector<1x8x32xf32> to vector<8x32xf32>
    %c0_2 = arith.constant 0 : index
    %c0_3 = arith.constant 0 : index
    %c0_4 = arith.constant 0 : index
    %2 = vector.load %arg2[%c0_2, %c0_3, %c0_4] : memref<2x1x32xf32, #tpu.memory_space<vmem>>, vector<1x1x32xf32>
    %3 = vector.shape_cast %2 : vector<1x1x32xf32> to vector<1x32xf32>
    %c0_5 = arith.constant 0 : index
    %c0_6 = arith.constant 0 : index
    %c0_7 = arith.constant 0 : index
    %4 = vector.load %arg3[%c0_5, %c0_6, %c0_7] : memref<2x1x32xf32, #tpu.memory_space<vmem>>, vector<1x1x32xf32>
    %5 = vector.shape_cast %4 : vector<1x1x32xf32> to vector<1x32xf32>
    %cst = arith.constant dense<0.000000e+00> : vector<8xf32>
    %6 = vector.multi_reduction <add>, %1, %cst [1] : vector<8x32xf32> to vector<8xf32>
    %7 = vector.shape_cast %6 : vector<8xf32> to vector<8x1xf32>
    %cst_8 = arith.constant 3.200000e+01 : f32
    %8 = vector.broadcast %cst_8 : f32 to vector<8x1xf32>
    %9 = arith.divf %7, %8 : vector<8x1xf32>
    %10 = vector.broadcast %9 : vector<8x1xf32> to vector<8x32xf32>
    %11 = arith.subf %1, %10 : vector<8x32xf32>
    %12 = arith.mulf %11, %11 : vector<8x32xf32>
    %cst_9 = arith.constant dense<0.000000e+00> : vector<8xf32>
    %13 = vector.multi_reduction <add>, %12, %cst_9 [1] : vector<8x32xf32> to vector<8xf32>
    %14 = vector.shape_cast %13 : vector<8xf32> to vector<8x1xf32>
    %cst_10 = arith.constant 3.200000e+01 : f32
    %15 = vector.broadcast %cst_10 : f32 to vector<8x1xf32>
    %16 = arith.divf %14, %15 : vector<8x1xf32>
    %cst_11 = arith.constant 9.99999974E-6 : f32
    %17 = vector.broadcast %cst_11 : f32 to vector<8x1xf32>
    %18 = arith.addf %16, %17 : vector<8x1xf32>
    %19 = math.rsqrt %18 : vector<8x1xf32>
    %20 = vector.broadcast %19 : vector<8x1xf32> to vector<8x32xf32>
    %21 = arith.mulf %11, %20 : vector<8x32xf32>
    %22 = vector.broadcast %3 : vector<1x32xf32> to vector<8x32xf32>
    %23 = arith.mulf %21, %22 : vector<8x32xf32>
    %24 = vector.broadcast %5 : vector<1x32xf32> to vector<8x32xf32>
    %25 = arith.addf %23, %24 : vector<8x32xf32>
    %c0_12 = arith.constant 0 : index
    %c0_13 = arith.constant 0 : index
    %c0_14 = arith.constant 0 : index
    %26 = vector.load %arg4[%c0_12, %c0_13, %c0_14] : memref<2x32x96xf32, #tpu.memory_space<vmem>>, vector<1x32x96xf32>
    %27 = vector.shape_cast %26 : vector<1x32x96xf32> to vector<32x96xf32>
    %cst_15 = arith.constant dense<0.000000e+00> : vector<8x96xf32>
    %28 = tpu.matmul %25, %27, %cst_15 {dimension_numbers = #tpu.dot_dimension_numbers<[1], [0], [0], [1], [0, 0, 1, 1], [], []>} : vector<8x32xf32>, vector<32x96xf32>, vector<8x96xf32> -> vector<8x96xf32>
    %c0_16 = arith.constant 0 : index
    %c0_17 = arith.constant 0 : index
    %c0_18 = arith.constant 0 : index
    %29 = vector.load %arg5[%c0_16, %c0_17, %c0_18] : memref<2x1x96xf32, #tpu.memory_space<vmem>>, vector<1x1x96xf32>
    %30 = vector.shape_cast %29 : vector<1x1x96xf32> to vector<1x96xf32>
    %31 = vector.broadcast %30 : vector<1x96xf32> to vector<8x96xf32>
    %32 = arith.addf %28, %31 : vector<8x96xf32>
    %33 = vector.extract_strided_slice %32 {offsets = [0, 0], sizes = [8, 32], strides = [1, 1]} : vector<8x96xf32> to vector<8x32xf32>
    %cst_19 = arith.constant 0.353553385 : f32
    %34 = vector.broadcast %cst_19 : f32 to vector<8x32xf32>
    %35 = arith.mulf %33, %34 : vector<8x32xf32>
    %36 = vector.extract_strided_slice %32 {offsets = [0, 32], sizes = [8, 32], strides = [1, 1]} : vector<8x96xf32> to vector<8x32xf32>
    %37 = vector.extract_strided_slice %32 {offsets = [0, 64], sizes = [8, 32], strides = [1, 1]} : vector<8x96xf32> to vector<8x32xf32>
    %38 = vector.extract_strided_slice %35 {offsets = [0, 0], sizes = [8, 8], strides = [1, 1]} : vector<8x32xf32> to vector<8x8xf32>
    %39 = vector.extract_strided_slice %36 {offsets = [0, 0], sizes = [8, 8], strides = [1, 1]} : vector<8x32xf32> to vector<8x8xf32>
    %40 = vector.extract_strided_slice %37 {offsets = [0, 0], sizes = [8, 8], strides = [1, 1]} : vector<8x32xf32> to vector<8x8xf32>
    %cst_20 = arith.constant dense<0.000000e+00> : vector<8x8xf32>
    %41 = tpu.matmul %38, %39, %cst_20 {dimension_numbers = #tpu.dot_dimension_numbers<[1], [1], [0], [0], [0, 0, 1, 0], [], []>} : vector<8x8xf32>, vector<8x8xf32>, vector<8x8xf32> -> vector<8x8xf32>
    %cst_21 = arith.constant dense<0xFF800000> : vector<8xf32>
    %42 = vector.multi_reduction <maximumf>, %41, %cst_21 [1] : vector<8x8xf32> to vector<8xf32>
    %43 = vector.shape_cast %42 : vector<8xf32> to vector<8x1xf32>
    %44 = vector.broadcast %43 : vector<8x1xf32> to vector<8x8xf32>
    %45 = arith.subf %41, %44 : vector<8x8xf32>
    %46 = math.exp %45 : vector<8x8xf32>
    %cst_22 = arith.constant dense<0.000000e+00> : vector<8xf32>
    %47 = vector.multi_reduction <add>, %46, %cst_22 [1] : vector<8x8xf32> to vector<8xf32>
    %48 = vector.shape_cast %47 : vector<8xf32> to vector<8x1xf32>
    %49 = vector.broadcast %48 : vector<8x1xf32> to vector<8x8xf32>
    %50 = arith.divf %46, %49 : vector<8x8xf32>
    %cst_23 = arith.constant dense<0.000000e+00> : vector<8x8xf32>
    %51 = tpu.matmul %50, %40, %cst_23 {dimension_numbers = #tpu.dot_dimension_numbers<[1], [0], [0], [1], [0, 0, 1, 1], [], []>} : vector<8x8xf32>, vector<8x8xf32>, vector<8x8xf32> -> vector<8x8xf32>
    %52 = vector.extract_strided_slice %35 {offsets = [0, 8], sizes = [8, 8], strides = [1, 1]} : vector<8x32xf32> to vector<8x8xf32>
    %53 = vector.extract_strided_slice %36 {offsets = [0, 8], sizes = [8, 8], strides = [1, 1]} : vector<8x32xf32> to vector<8x8xf32>
    %54 = vector.extract_strided_slice %37 {offsets = [0, 8], sizes = [8, 8], strides = [1, 1]} : vector<8x32xf32> to vector<8x8xf32>
    %cst_24 = arith.constant dense<0.000000e+00> : vector<8x8xf32>
    %55 = tpu.matmul %52, %53, %cst_24 {dimension_numbers = #tpu.dot_dimension_numbers<[1], [1], [0], [0], [0, 0, 1, 0], [], []>} : vector<8x8xf32>, vector<8x8xf32>, vector<8x8xf32> -> vector<8x8xf32>
    %cst_25 = arith.constant dense<0xFF800000> : vector<8xf32>
    %56 = vector.multi_reduction <maximumf>, %55, %cst_25 [1] : vector<8x8xf32> to vector<8xf32>
    %57 = vector.shape_cast %56 : vector<8xf32> to vector<8x1xf32>
    %58 = vector.broadcast %57 : vector<8x1xf32> to vector<8x8xf32>
    %59 = arith.subf %55, %58 : vector<8x8xf32>
    %60 = math.exp %59 : vector<8x8xf32>
    %cst_26 = arith.constant dense<0.000000e+00> : vector<8xf32>
    %61 = vector.multi_reduction <add>, %60, %cst_26 [1] : vector<8x8xf32> to vector<8xf32>
    %62 = vector.shape_cast %61 : vector<8xf32> to vector<8x1xf32>
    %63 = vector.broadcast %62 : vector<8x1xf32> to vector<8x8xf32>
    %64 = arith.divf %60, %63 : vector<8x8xf32>
    %cst_27 = arith.constant dense<0.000000e+00> : vector<8x8xf32>
    %65 = tpu.matmul %64, %54, %cst_27 {dimension_numbers = #tpu.dot_dimension_numbers<[1], [0], [0], [1], [0, 0, 1, 1], [], []>} : vector<8x8xf32>, vector<8x8xf32>, vector<8x8xf32> -> vector<8x8xf32>
    %66 = vector.extract_strided_slice %35 {offsets = [0, 16], sizes = [8, 8], strides = [1, 1]} : vector<8x32xf32> to vector<8x8xf32>
    %67 = vector.extract_strided_slice %36 {offsets = [0, 16], sizes = [8, 8], strides = [1, 1]} : vector<8x32xf32> to vector<8x8xf32>
    %68 = vector.extract_strided_slice %37 {offsets = [0, 16], sizes = [8, 8], strides = [1, 1]} : vector<8x32xf32> to vector<8x8xf32>
    %cst_28 = arith.constant dense<0.000000e+00> : vector<8x8xf32>
    %69 = tpu.matmul %66, %67, %cst_28 {dimension_numbers = #tpu.dot_dimension_numbers<[1], [1], [0], [0], [0, 0, 1, 0], [], []>} : vector<8x8xf32>, vector<8x8xf32>, vector<8x8xf32> -> vector<8x8xf32>
    %cst_29 = arith.constant dense<0xFF800000> : vector<8xf32>
    %70 = vector.multi_reduction <maximumf>, %69, %cst_29 [1] : vector<8x8xf32> to vector<8xf32>
    %71 = vector.shape_cast %70 : vector<8xf32> to vector<8x1xf32>
    %72 = vector.broadcast %71 : vector<8x1xf32> to vector<8x8xf32>
    %73 = arith.subf %69, %72 : vector<8x8xf32>
    %74 = math.exp %73 : vector<8x8xf32>
    %cst_30 = arith.constant dense<0.000000e+00> : vector<8xf32>
    %75 = vector.multi_reduction <add>, %74, %cst_30 [1] : vector<8x8xf32> to vector<8xf32>
    %76 = vector.shape_cast %75 : vector<8xf32> to vector<8x1xf32>
    %77 = vector.broadcast %76 : vector<8x1xf32> to vector<8x8xf32>
    %78 = arith.divf %74, %77 : vector<8x8xf32>
    %cst_31 = arith.constant dense<0.000000e+00> : vector<8x8xf32>
    %79 = tpu.matmul %78, %68, %cst_31 {dimension_numbers = #tpu.dot_dimension_numbers<[1], [0], [0], [1], [0, 0, 1, 1], [], []>} : vector<8x8xf32>, vector<8x8xf32>, vector<8x8xf32> -> vector<8x8xf32>
    %80 = vector.extract_strided_slice %35 {offsets = [0, 24], sizes = [8, 8], strides = [1, 1]} : vector<8x32xf32> to vector<8x8xf32>
    %81 = vector.extract_strided_slice %36 {offsets = [0, 24], sizes = [8, 8], strides = [1, 1]} : vector<8x32xf32> to vector<8x8xf32>
    %82 = vector.extract_strided_slice %37 {offsets = [0, 24], sizes = [8, 8], strides = [1, 1]} : vector<8x32xf32> to vector<8x8xf32>
    %cst_32 = arith.constant dense<0.000000e+00> : vector<8x8xf32>
    %83 = tpu.matmul %80, %81, %cst_32 {dimension_numbers = #tpu.dot_dimension_numbers<[1], [1], [0], [0], [0, 0, 1, 0], [], []>} : vector<8x8xf32>, vector<8x8xf32>, vector<8x8xf32> -> vector<8x8xf32>
    %cst_33 = arith.constant dense<0xFF800000> : vector<8xf32>
    %84 = vector.multi_reduction <maximumf>, %83, %cst_33 [1] : vector<8x8xf32> to vector<8xf32>
    %85 = vector.shape_cast %84 : vector<8xf32> to vector<8x1xf32>
    %86 = vector.broadcast %85 : vector<8x1xf32> to vector<8x8xf32>
    %87 = arith.subf %83, %86 : vector<8x8xf32>
    %88 = math.exp %87 : vector<8x8xf32>
    %cst_34 = arith.constant dense<0.000000e+00> : vector<8xf32>
    %89 = vector.multi_reduction <add>, %88, %cst_34 [1] : vector<8x8xf32> to vector<8xf32>
    %90 = vector.shape_cast %89 : vector<8xf32> to vector<8x1xf32>
    %91 = vector.broadcast %90 : vector<8x1xf32> to vector<8x8xf32>
    %92 = arith.divf %88, %91 : vector<8x8xf32>
    %cst_35 = arith.constant dense<0.000000e+00> : vector<8x8xf32>
    %93 = tpu.matmul %92, %82, %cst_35 {dimension_numbers = #tpu.dot_dimension_numbers<[1], [0], [0], [1], [0, 0, 1, 1], [], []>} : vector<8x8xf32>, vector<8x8xf32>, vector<8x8xf32> -> vector<8x8xf32>
    %94 = tpu.concatenate %51, %65, %79, %93 in 1 : vector<8x8xf32>, vector<8x8xf32>, vector<8x8xf32>, vector<8x8xf32> -> vector<8x32xf32>
    %c0_36 = arith.constant 0 : index
    %c0_37 = arith.constant 0 : index
    %c0_38 = arith.constant 0 : index
    %95 = vector.load %arg6[%c0_36, %c0_37, %c0_38] : memref<2x32x32xf32, #tpu.memory_space<vmem>>, vector<1x32x32xf32>
    %96 = vector.shape_cast %95 : vector<1x32x32xf32> to vector<32x32xf32>
    %cst_39 = arith.constant dense<0.000000e+00> : vector<8x32xf32>
    %97 = tpu.matmul %94, %96, %cst_39 {dimension_numbers = #tpu.dot_dimension_numbers<[1], [0], [0], [1], [0, 0, 1, 1], [], []>} : vector<8x32xf32>, vector<32x32xf32>, vector<8x32xf32> -> vector<8x32xf32>
    %c0_40 = arith.constant 0 : index
    %c0_41 = arith.constant 0 : index
    %c0_42 = arith.constant 0 : index
    %98 = vector.load %arg7[%c0_40, %c0_41, %c0_42] : memref<2x1x32xf32, #tpu.memory_space<vmem>>, vector<1x1x32xf32>
    %99 = vector.shape_cast %98 : vector<1x1x32xf32> to vector<1x32xf32>
    %100 = vector.broadcast %99 : vector<1x32xf32> to vector<8x32xf32>
    %101 = arith.addf %97, %100 : vector<8x32xf32>
    %102 = arith.addf %1, %101 : vector<8x32xf32>
    %c0_43 = arith.constant 0 : index
    %c0_44 = arith.constant 0 : index
    %c0_45 = arith.constant 0 : index
    %103 = vector.load %arg8[%c0_43, %c0_44, %c0_45] : memref<2x1x32xf32, #tpu.memory_space<vmem>>, vector<1x1x32xf32>
    %104 = vector.shape_cast %103 : vector<1x1x32xf32> to vector<1x32xf32>
    %c0_46 = arith.constant 0 : index
    %c0_47 = arith.constant 0 : index
    %c0_48 = arith.constant 0 : index
    %105 = vector.load %arg9[%c0_46, %c0_47, %c0_48] : memref<2x1x32xf32, #tpu.memory_space<vmem>>, vector<1x1x32xf32>
    %106 = vector.shape_cast %105 : vector<1x1x32xf32> to vector<1x32xf32>
    %cst_49 = arith.constant dense<0.000000e+00> : vector<8xf32>
    %107 = vector.multi_reduction <add>, %102, %cst_49 [1] : vector<8x32xf32> to vector<8xf32>
    %108 = vector.shape_cast %107 : vector<8xf32> to vector<8x1xf32>
    %cst_50 = arith.constant 3.200000e+01 : f32
    %109 = vector.broadcast %cst_50 : f32 to vector<8x1xf32>
    %110 = arith.divf %108, %109 : vector<8x1xf32>
    %111 = vector.broadcast %110 : vector<8x1xf32> to vector<8x32xf32>
    %112 = arith.subf %102, %111 : vector<8x32xf32>
    %113 = arith.mulf %112, %112 : vector<8x32xf32>
    %cst_51 = arith.constant dense<0.000000e+00> : vector<8xf32>
    %114 = vector.multi_reduction <add>, %113, %cst_51 [1] : vector<8x32xf32> to vector<8xf32>
    %115 = vector.shape_cast %114 : vector<8xf32> to vector<8x1xf32>
    %cst_52 = arith.constant 3.200000e+01 : f32
    %116 = vector.broadcast %cst_52 : f32 to vector<8x1xf32>
    %117 = arith.divf %115, %116 : vector<8x1xf32>
    %cst_53 = arith.constant 9.99999974E-6 : f32
    %118 = vector.broadcast %cst_53 : f32 to vector<8x1xf32>
    %119 = arith.addf %117, %118 : vector<8x1xf32>
    %120 = math.rsqrt %119 : vector<8x1xf32>
    %121 = vector.broadcast %120 : vector<8x1xf32> to vector<8x32xf32>
    %122 = arith.mulf %112, %121 : vector<8x32xf32>
    %123 = vector.broadcast %104 : vector<1x32xf32> to vector<8x32xf32>
    %124 = arith.mulf %122, %123 : vector<8x32xf32>
    %125 = vector.broadcast %106 : vector<1x32xf32> to vector<8x32xf32>
    %126 = arith.addf %124, %125 : vector<8x32xf32>
    %c0_54 = arith.constant 0 : index
    %c0_55 = arith.constant 0 : index
    %c0_56 = arith.constant 0 : index
    %127 = vector.load %arg10[%c0_54, %c0_55, %c0_56] : memref<2x32x128xf32, #tpu.memory_space<vmem>>, vector<1x32x128xf32>
    %128 = vector.shape_cast %127 : vector<1x32x128xf32> to vector<32x128xf32>
    %cst_57 = arith.constant dense<0.000000e+00> : vector<8x128xf32>
    %129 = tpu.matmul %126, %128, %cst_57 {dimension_numbers = #tpu.dot_dimension_numbers<[1], [0], [0], [1], [0, 0, 1, 1], [], []>} : vector<8x32xf32>, vector<32x128xf32>, vector<8x128xf32> -> vector<8x128xf32>
    %c0_58 = arith.constant 0 : index
    %c0_59 = arith.constant 0 : index
    %c0_60 = arith.constant 0 : index
    %130 = vector.load %arg11[%c0_58, %c0_59, %c0_60] : memref<2x1x128xf32, #tpu.memory_space<vmem>>, vector<1x1x128xf32>
    %131 = vector.shape_cast %130 : vector<1x1x128xf32> to vector<1x128xf32>
    %132 = vector.broadcast %131 : vector<1x128xf32> to vector<8x128xf32>
    %133 = arith.addf %129, %132 : vector<8x128xf32>
    %cst_61 = arith.constant 0.000000e+00 : f32
    %134 = vector.broadcast %cst_61 : f32 to vector<8x128xf32>
    %135 = arith.maximumf %133, %134 : vector<8x128xf32>
    %c0_62 = arith.constant 0 : index
    %c0_63 = arith.constant 0 : index
    %c0_64 = arith.constant 0 : index
    %136 = vector.load %arg12[%c0_62, %c0_63, %c0_64] : memref<2x128x32xf32, #tpu.memory_space<vmem>>, vector<1x128x32xf32>
    %137 = vector.shape_cast %136 : vector<1x128x32xf32> to vector<128x32xf32>
    %cst_65 = arith.constant dense<0.000000e+00> : vector<8x32xf32>
    %138 = tpu.matmul %135, %137, %cst_65 {dimension_numbers = #tpu.dot_dimension_numbers<[1], [0], [0], [1], [0, 0, 1, 1], [], []>} : vector<8x128xf32>, vector<128x32xf32>, vector<8x32xf32> -> vector<8x32xf32>
    %c0_66 = arith.constant 0 : index
    %c0_67 = arith.constant 0 : index
    %c0_68 = arith.constant 0 : index
    %139 = vector.load %arg13[%c0_66, %c0_67, %c0_68] : memref<2x1x32xf32, #tpu.memory_space<vmem>>, vector<1x1x32xf32>
    %140 = vector.shape_cast %139 : vector<1x1x32xf32> to vector<1x32xf32>
    %141 = vector.broadcast %140 : vector<1x32xf32> to vector<8x32xf32>
    %142 = arith.addf %138, %141 : vector<8x32xf32>
    %143 = arith.addf %102, %142 : vector<8x32xf32>
    %c1 = arith.constant 1 : index
    %c0_69 = arith.constant 0 : index
    %c0_70 = arith.constant 0 : index
    %144 = vector.load %arg2[%c1, %c0_69, %c0_70] : memref<2x1x32xf32, #tpu.memory_space<vmem>>, vector<1x1x32xf32>
    %145 = vector.shape_cast %144 : vector<1x1x32xf32> to vector<1x32xf32>
    %c1_71 = arith.constant 1 : index
    %c0_72 = arith.constant 0 : index
    %c0_73 = arith.constant 0 : index
    %146 = vector.load %arg3[%c1_71, %c0_72, %c0_73] : memref<2x1x32xf32, #tpu.memory_space<vmem>>, vector<1x1x32xf32>
    %147 = vector.shape_cast %146 : vector<1x1x32xf32> to vector<1x32xf32>
    %cst_74 = arith.constant dense<0.000000e+00> : vector<8xf32>
    %148 = vector.multi_reduction <add>, %143, %cst_74 [1] : vector<8x32xf32> to vector<8xf32>
    %149 = vector.shape_cast %148 : vector<8xf32> to vector<8x1xf32>
    %cst_75 = arith.constant 3.200000e+01 : f32
    %150 = vector.broadcast %cst_75 : f32 to vector<8x1xf32>
    %151 = arith.divf %149, %150 : vector<8x1xf32>
    %152 = vector.broadcast %151 : vector<8x1xf32> to vector<8x32xf32>
    %153 = arith.subf %143, %152 : vector<8x32xf32>
    %154 = arith.mulf %153, %153 : vector<8x32xf32>
    %cst_76 = arith.constant dense<0.000000e+00> : vector<8xf32>
    %155 = vector.multi_reduction <add>, %154, %cst_76 [1] : vector<8x32xf32> to vector<8xf32>
    %156 = vector.shape_cast %155 : vector<8xf32> to vector<8x1xf32>
    %cst_77 = arith.constant 3.200000e+01 : f32
    %157 = vector.broadcast %cst_77 : f32 to vector<8x1xf32>
    %158 = arith.divf %156, %157 : vector<8x1xf32>
    %cst_78 = arith.constant 9.99999974E-6 : f32
    %159 = vector.broadcast %cst_78 : f32 to vector<8x1xf32>
    %160 = arith.addf %158, %159 : vector<8x1xf32>
    %161 = math.rsqrt %160 : vector<8x1xf32>
    %162 = vector.broadcast %161 : vector<8x1xf32> to vector<8x32xf32>
    %163 = arith.mulf %153, %162 : vector<8x32xf32>
    %164 = vector.broadcast %145 : vector<1x32xf32> to vector<8x32xf32>
    %165 = arith.mulf %163, %164 : vector<8x32xf32>
    %166 = vector.broadcast %147 : vector<1x32xf32> to vector<8x32xf32>
    %167 = arith.addf %165, %166 : vector<8x32xf32>
    %c1_79 = arith.constant 1 : index
    %c0_80 = arith.constant 0 : index
    %c0_81 = arith.constant 0 : index
    %168 = vector.load %arg4[%c1_79, %c0_80, %c0_81] : memref<2x32x96xf32, #tpu.memory_space<vmem>>, vector<1x32x96xf32>
    %169 = vector.shape_cast %168 : vector<1x32x96xf32> to vector<32x96xf32>
    %cst_82 = arith.constant dense<0.000000e+00> : vector<8x96xf32>
    %170 = tpu.matmul %167, %169, %cst_82 {dimension_numbers = #tpu.dot_dimension_numbers<[1], [0], [0], [1], [0, 0, 1, 1], [], []>} : vector<8x32xf32>, vector<32x96xf32>, vector<8x96xf32> -> vector<8x96xf32>
    %c1_83 = arith.constant 1 : index
    %c0_84 = arith.constant 0 : index
    %c0_85 = arith.constant 0 : index
    %171 = vector.load %arg5[%c1_83, %c0_84, %c0_85] : memref<2x1x96xf32, #tpu.memory_space<vmem>>, vector<1x1x96xf32>
    %172 = vector.shape_cast %171 : vector<1x1x96xf32> to vector<1x96xf32>
    %173 = vector.broadcast %172 : vector<1x96xf32> to vector<8x96xf32>
    %174 = arith.addf %170, %173 : vector<8x96xf32>
    %175 = vector.extract_strided_slice %174 {offsets = [0, 0], sizes = [8, 32], strides = [1, 1]} : vector<8x96xf32> to vector<8x32xf32>
    %cst_86 = arith.constant 0.353553385 : f32
    %176 = vector.broadcast %cst_86 : f32 to vector<8x32xf32>
    %177 = arith.mulf %175, %176 : vector<8x32xf32>
    %178 = vector.extract_strided_slice %174 {offsets = [0, 32], sizes = [8, 32], strides = [1, 1]} : vector<8x96xf32> to vector<8x32xf32>
    %179 = vector.extract_strided_slice %174 {offsets = [0, 64], sizes = [8, 32], strides = [1, 1]} : vector<8x96xf32> to vector<8x32xf32>
    %180 = vector.extract_strided_slice %177 {offsets = [0, 0], sizes = [8, 8], strides = [1, 1]} : vector<8x32xf32> to vector<8x8xf32>
    %181 = vector.extract_strided_slice %178 {offsets = [0, 0], sizes = [8, 8], strides = [1, 1]} : vector<8x32xf32> to vector<8x8xf32>
    %182 = vector.extract_strided_slice %179 {offsets = [0, 0], sizes = [8, 8], strides = [1, 1]} : vector<8x32xf32> to vector<8x8xf32>
    %cst_87 = arith.constant dense<0.000000e+00> : vector<8x8xf32>
    %183 = tpu.matmul %180, %181, %cst_87 {dimension_numbers = #tpu.dot_dimension_numbers<[1], [1], [0], [0], [0, 0, 1, 0], [], []>} : vector<8x8xf32>, vector<8x8xf32>, vector<8x8xf32> -> vector<8x8xf32>
    %cst_88 = arith.constant dense<0xFF800000> : vector<8xf32>
    %184 = vector.multi_reduction <maximumf>, %183, %cst_88 [1] : vector<8x8xf32> to vector<8xf32>
    %185 = vector.shape_cast %184 : vector<8xf32> to vector<8x1xf32>
    %186 = vector.broadcast %185 : vector<8x1xf32> to vector<8x8xf32>
    %187 = arith.subf %183, %186 : vector<8x8xf32>
    %188 = math.exp %187 : vector<8x8xf32>
    %cst_89 = arith.constant dense<0.000000e+00> : vector<8xf32>
    %189 = vector.multi_reduction <add>, %188, %cst_89 [1] : vector<8x8xf32> to vector<8xf32>
    %190 = vector.shape_cast %189 : vector<8xf32> to vector<8x1xf32>
    %191 = vector.broadcast %190 : vector<8x1xf32> to vector<8x8xf32>
    %192 = arith.divf %188, %191 : vector<8x8xf32>
    %cst_90 = arith.constant dense<0.000000e+00> : vector<8x8xf32>
    %193 = tpu.matmul %192, %182, %cst_90 {dimension_numbers = #tpu.dot_dimension_numbers<[1], [0], [0], [1], [0, 0, 1, 1], [], []>} : vector<8x8xf32>, vector<8x8xf32>, vector<8x8xf32> -> vector<8x8xf32>
    %194 = vector.extract_strided_slice %177 {offsets = [0, 8], sizes = [8, 8], strides = [1, 1]} : vector<8x32xf32> to vector<8x8xf32>
    %195 = vector.extract_strided_slice %178 {offsets = [0, 8], sizes = [8, 8], strides = [1, 1]} : vector<8x32xf32> to vector<8x8xf32>
    %196 = vector.extract_strided_slice %179 {offsets = [0, 8], sizes = [8, 8], strides = [1, 1]} : vector<8x32xf32> to vector<8x8xf32>
    %cst_91 = arith.constant dense<0.000000e+00> : vector<8x8xf32>
    %197 = tpu.matmul %194, %195, %cst_91 {dimension_numbers = #tpu.dot_dimension_numbers<[1], [1], [0], [0], [0, 0, 1, 0], [], []>} : vector<8x8xf32>, vector<8x8xf32>, vector<8x8xf32> -> vector<8x8xf32>
    %cst_92 = arith.constant dense<0xFF800000> : vector<8xf32>
    %198 = vector.multi_reduction <maximumf>, %197, %cst_92 [1] : vector<8x8xf32> to vector<8xf32>
    %199 = vector.shape_cast %198 : vector<8xf32> to vector<8x1xf32>
    %200 = vector.broadcast %199 : vector<8x1xf32> to vector<8x8xf32>
    %201 = arith.subf %197, %200 : vector<8x8xf32>
    %202 = math.exp %201 : vector<8x8xf32>
    %cst_93 = arith.constant dense<0.000000e+00> : vector<8xf32>
    %203 = vector.multi_reduction <add>, %202, %cst_93 [1] : vector<8x8xf32> to vector<8xf32>
    %204 = vector.shape_cast %203 : vector<8xf32> to vector<8x1xf32>
    %205 = vector.broadcast %204 : vector<8x1xf32> to vector<8x8xf32>
    %206 = arith.divf %202, %205 : vector<8x8xf32>
    %cst_94 = arith.constant dense<0.000000e+00> : vector<8x8xf32>
    %207 = tpu.matmul %206, %196, %cst_94 {dimension_numbers = #tpu.dot_dimension_numbers<[1], [0], [0], [1], [0, 0, 1, 1], [], []>} : vector<8x8xf32>, vector<8x8xf32>, vector<8x8xf32> -> vector<8x8xf32>
    %208 = vector.extract_strided_slice %177 {offsets = [0, 16], sizes = [8, 8], strides = [1, 1]} : vector<8x32xf32> to vector<8x8xf32>
    %209 = vector.extract_strided_slice %178 {offsets = [0, 16], sizes = [8, 8], strides = [1, 1]} : vector<8x32xf32> to vector<8x8xf32>
    %210 = vector.extract_strided_slice %179 {offsets = [0, 16], sizes = [8, 8], strides = [1, 1]} : vector<8x32xf32> to vector<8x8xf32>
    %cst_95 = arith.constant dense<0.000000e+00> : vector<8x8xf32>
    %211 = tpu.matmul %208, %209, %cst_95 {dimension_numbers = #tpu.dot_dimension_numbers<[1], [1], [0], [0], [0, 0, 1, 0], [], []>} : vector<8x8xf32>, vector<8x8xf32>, vector<8x8xf32> -> vector<8x8xf32>
    %cst_96 = arith.constant dense<0xFF800000> : vector<8xf32>
    %212 = vector.multi_reduction <maximumf>, %211, %cst_96 [1] : vector<8x8xf32> to vector<8xf32>
    %213 = vector.shape_cast %212 : vector<8xf32> to vector<8x1xf32>
    %214 = vector.broadcast %213 : vector<8x1xf32> to vector<8x8xf32>
    %215 = arith.subf %211, %214 : vector<8x8xf32>
    %216 = math.exp %215 : vector<8x8xf32>
    %cst_97 = arith.constant dense<0.000000e+00> : vector<8xf32>
    %217 = vector.multi_reduction <add>, %216, %cst_97 [1] : vector<8x8xf32> to vector<8xf32>
    %218 = vector.shape_cast %217 : vector<8xf32> to vector<8x1xf32>
    %219 = vector.broadcast %218 : vector<8x1xf32> to vector<8x8xf32>
    %220 = arith.divf %216, %219 : vector<8x8xf32>
    %cst_98 = arith.constant dense<0.000000e+00> : vector<8x8xf32>
    %221 = tpu.matmul %220, %210, %cst_98 {dimension_numbers = #tpu.dot_dimension_numbers<[1], [0], [0], [1], [0, 0, 1, 1], [], []>} : vector<8x8xf32>, vector<8x8xf32>, vector<8x8xf32> -> vector<8x8xf32>
    %222 = vector.extract_strided_slice %177 {offsets = [0, 24], sizes = [8, 8], strides = [1, 1]} : vector<8x32xf32> to vector<8x8xf32>
    %223 = vector.extract_strided_slice %178 {offsets = [0, 24], sizes = [8, 8], strides = [1, 1]} : vector<8x32xf32> to vector<8x8xf32>
    %224 = vector.extract_strided_slice %179 {offsets = [0, 24], sizes = [8, 8], strides = [1, 1]} : vector<8x32xf32> to vector<8x8xf32>
    %cst_99 = arith.constant dense<0.000000e+00> : vector<8x8xf32>
    %225 = tpu.matmul %222, %223, %cst_99 {dimension_numbers = #tpu.dot_dimension_numbers<[1], [1], [0], [0], [0, 0, 1, 0], [], []>} : vector<8x8xf32>, vector<8x8xf32>, vector<8x8xf32> -> vector<8x8xf32>
    %cst_100 = arith.constant dense<0xFF800000> : vector<8xf32>
    %226 = vector.multi_reduction <maximumf>, %225, %cst_100 [1] : vector<8x8xf32> to vector<8xf32>
    %227 = vector.shape_cast %226 : vector<8xf32> to vector<8x1xf32>
    %228 = vector.broadcast %227 : vector<8x1xf32> to vector<8x8xf32>
    %229 = arith.subf %225, %228 : vector<8x8xf32>
    %230 = math.exp %229 : vector<8x8xf32>
    %cst_101 = arith.constant dense<0.000000e+00> : vector<8xf32>
    %231 = vector.multi_reduction <add>, %230, %cst_101 [1] : vector<8x8xf32> to vector<8xf32>
    %232 = vector.shape_cast %231 : vector<8xf32> to vector<8x1xf32>
    %233 = vector.broadcast %232 : vector<8x1xf32> to vector<8x8xf32>
    %234 = arith.divf %230, %233 : vector<8x8xf32>
    %cst_102 = arith.constant dense<0.000000e+00> : vector<8x8xf32>
    %235 = tpu.matmul %234, %224, %cst_102 {dimension_numbers = #tpu.dot_dimension_numbers<[1], [0], [0], [1], [0, 0, 1, 1], [], []>} : vector<8x8xf32>, vector<8x8xf32>, vector<8x8xf32> -> vector<8x8xf32>
    %236 = tpu.concatenate %193, %207, %221, %235 in 1 : vector<8x8xf32>, vector<8x8xf32>, vector<8x8xf32>, vector<8x8xf32> -> vector<8x32xf32>
    %c1_103 = arith.constant 1 : index
    %c0_104 = arith.constant 0 : index
    %c0_105 = arith.constant 0 : index
    %237 = vector.load %arg6[%c1_103, %c0_104, %c0_105] : memref<2x32x32xf32, #tpu.memory_space<vmem>>, vector<1x32x32xf32>
    %238 = vector.shape_cast %237 : vector<1x32x32xf32> to vector<32x32xf32>
    %cst_106 = arith.constant dense<0.000000e+00> : vector<8x32xf32>
    %239 = tpu.matmul %236, %238, %cst_106 {dimension_numbers = #tpu.dot_dimension_numbers<[1], [0], [0], [1], [0, 0, 1, 1], [], []>} : vector<8x32xf32>, vector<32x32xf32>, vector<8x32xf32> -> vector<8x32xf32>
    %c1_107 = arith.constant 1 : index
    %c0_108 = arith.constant 0 : index
    %c0_109 = arith.constant 0 : index
    %240 = vector.load %arg7[%c1_107, %c0_108, %c0_109] : memref<2x1x32xf32, #tpu.memory_space<vmem>>, vector<1x1x32xf32>
    %241 = vector.shape_cast %240 : vector<1x1x32xf32> to vector<1x32xf32>
    %242 = vector.broadcast %241 : vector<1x32xf32> to vector<8x32xf32>
    %243 = arith.addf %239, %242 : vector<8x32xf32>
    %244 = arith.addf %143, %243 : vector<8x32xf32>
    %c1_110 = arith.constant 1 : index
    %c0_111 = arith.constant 0 : index
    %c0_112 = arith.constant 0 : index
    %245 = vector.load %arg8[%c1_110, %c0_111, %c0_112] : memref<2x1x32xf32, #tpu.memory_space<vmem>>, vector<1x1x32xf32>
    %246 = vector.shape_cast %245 : vector<1x1x32xf32> to vector<1x32xf32>
    %c1_113 = arith.constant 1 : index
    %c0_114 = arith.constant 0 : index
    %c0_115 = arith.constant 0 : index
    %247 = vector.load %arg9[%c1_113, %c0_114, %c0_115] : memref<2x1x32xf32, #tpu.memory_space<vmem>>, vector<1x1x32xf32>
    %248 = vector.shape_cast %247 : vector<1x1x32xf32> to vector<1x32xf32>
    %cst_116 = arith.constant dense<0.000000e+00> : vector<8xf32>
    %249 = vector.multi_reduction <add>, %244, %cst_116 [1] : vector<8x32xf32> to vector<8xf32>
    %250 = vector.shape_cast %249 : vector<8xf32> to vector<8x1xf32>
    %cst_117 = arith.constant 3.200000e+01 : f32
    %251 = vector.broadcast %cst_117 : f32 to vector<8x1xf32>
    %252 = arith.divf %250, %251 : vector<8x1xf32>
    %253 = vector.broadcast %252 : vector<8x1xf32> to vector<8x32xf32>
    %254 = arith.subf %244, %253 : vector<8x32xf32>
    %255 = arith.mulf %254, %254 : vector<8x32xf32>
    %cst_118 = arith.constant dense<0.000000e+00> : vector<8xf32>
    %256 = vector.multi_reduction <add>, %255, %cst_118 [1] : vector<8x32xf32> to vector<8xf32>
    %257 = vector.shape_cast %256 : vector<8xf32> to vector<8x1xf32>
    %cst_119 = arith.constant 3.200000e+01 : f32
    %258 = vector.broadcast %cst_119 : f32 to vector<8x1xf32>
    %259 = arith.divf %257, %258 : vector<8x1xf32>
    %cst_120 = arith.constant 9.99999974E-6 : f32
    %260 = vector.broadcast %cst_120 : f32 to vector<8x1xf32>
    %261 = arith.addf %259, %260 : vector<8x1xf32>
    %262 = math.rsqrt %261 : vector<8x1xf32>
    %263 = vector.broadcast %262 : vector<8x1xf32> to vector<8x32xf32>
    %264 = arith.mulf %254, %263 : vector<8x32xf32>
    %265 = vector.broadcast %246 : vector<1x32xf32> to vector<8x32xf32>
    %266 = arith.mulf %264, %265 : vector<8x32xf32>
    %267 = vector.broadcast %248 : vector<1x32xf32> to vector<8x32xf32>
    %268 = arith.addf %266, %267 : vector<8x32xf32>
    %c1_121 = arith.constant 1 : index
    %c0_122 = arith.constant 0 : index
    %c0_123 = arith.constant 0 : index
    %269 = vector.load %arg10[%c1_121, %c0_122, %c0_123] : memref<2x32x128xf32, #tpu.memory_space<vmem>>, vector<1x32x128xf32>
    %270 = vector.shape_cast %269 : vector<1x32x128xf32> to vector<32x128xf32>
    %cst_124 = arith.constant dense<0.000000e+00> : vector<8x128xf32>
    %271 = tpu.matmul %268, %270, %cst_124 {dimension_numbers = #tpu.dot_dimension_numbers<[1], [0], [0], [1], [0, 0, 1, 1], [], []>} : vector<8x32xf32>, vector<32x128xf32>, vector<8x128xf32> -> vector<8x128xf32>
    %c1_125 = arith.constant 1 : index
    %c0_126 = arith.constant 0 : index
    %c0_127 = arith.constant 0 : index
    %272 = vector.load %arg11[%c1_125, %c0_126, %c0_127] : memref<2x1x128xf32, #tpu.memory_space<vmem>>, vector<1x1x128xf32>
    %273 = vector.shape_cast %272 : vector<1x1x128xf32> to vector<1x128xf32>
    %274 = vector.broadcast %273 : vector<1x128xf32> to vector<8x128xf32>
    %275 = arith.addf %271, %274 : vector<8x128xf32>
    %cst_128 = arith.constant 0.000000e+00 : f32
    %276 = vector.broadcast %cst_128 : f32 to vector<8x128xf32>
    %277 = arith.maximumf %275, %276 : vector<8x128xf32>
    %c1_129 = arith.constant 1 : index
    %c0_130 = arith.constant 0 : index
    %c0_131 = arith.constant 0 : index
    %278 = vector.load %arg12[%c1_129, %c0_130, %c0_131] : memref<2x128x32xf32, #tpu.memory_space<vmem>>, vector<1x128x32xf32>
    %279 = vector.shape_cast %278 : vector<1x128x32xf32> to vector<128x32xf32>
    %cst_132 = arith.constant dense<0.000000e+00> : vector<8x32xf32>
    %280 = tpu.matmul %277, %279, %cst_132 {dimension_numbers = #tpu.dot_dimension_numbers<[1], [0], [0], [1], [0, 0, 1, 1], [], []>} : vector<8x128xf32>, vector<128x32xf32>, vector<8x32xf32> -> vector<8x32xf32>
    %c1_133 = arith.constant 1 : index
    %c0_134 = arith.constant 0 : index
    %c0_135 = arith.constant 0 : index
    %281 = vector.load %arg13[%c1_133, %c0_134, %c0_135] : memref<2x1x32xf32, #tpu.memory_space<vmem>>, vector<1x1x32xf32>
    %282 = vector.shape_cast %281 : vector<1x1x32xf32> to vector<1x32xf32>
    %283 = vector.broadcast %282 : vector<1x32xf32> to vector<8x32xf32>
    %284 = arith.addf %280, %283 : vector<8x32xf32>
    %285 = arith.addf %244, %284 : vector<8x32xf32>
    %c0_136 = arith.constant 0 : index
    %c0_137 = arith.constant 0 : index
    %c0_138 = arith.constant 0 : index
    %286 = vector.load %arg14[%c0_136, %c0_137, %c0_138] : memref<1x8x32xf32, #tpu.memory_space<vmem>>, vector<1x8x32xf32>
    %287 = vector.shape_cast %286 : vector<1x8x32xf32> to vector<8x32xf32>
    %288 = vector.shape_cast %285 : vector<8x32xf32> to vector<1x8x32xf32>
    tpu.vector_store %arg14[%c0_136, %c0_137, %c0_138], %288 {strides = array<i32>} : memref<1x8x32xf32, #tpu.memory_space<vmem>>, vector<1x8x32xf32>,
    return
  }
  func.func @transform_0(%arg0: i32) -> (i32, i32, i32) {
    %c0_i32 = arith.constant 0 : i32
    %c0_i32_0 = arith.constant 0 : i32
    %c0_i32_1 = arith.constant 0 : i32
    return %arg0, %c0_i32, %c0_i32_0 : i32, i32, i32
  }
  func.func @transform_1(%arg0: i32) -> (i32, i32, i32) {
    %c0_i32 = arith.constant 0 : i32
    %c0_i32_0 = arith.constant 0 : i32
    %c0_i32_1 = arith.constant 0 : i32
    %c0_i32_2 = arith.constant 0 : i32
    return %c0_i32, %c0_i32_0, %c0_i32_1 : i32, i32, i32
  }
  func.func @transform_2(%arg0: i32) -> (i32, i32, i32) {
    %c0_i32 = arith.constant 0 : i32
    %c0_i32_0 = arith.constant 0 : i32
    %c0_i32_1 = arith.constant 0 : i32
    %c0_i32_2 = arith.constant 0 : i32
    return %c0_i32, %c0_i32_0, %c0_i32_1 : i32, i32, i32
  }
  func.func @transform_3(%arg0: i32) -> (i32, i32, i32) {
    %c0_i32 = arith.constant 0 : i32
    %c0_i32_0 = arith.constant 0 : i32
    %c0_i32_1 = arith.constant 0 : i32
    %c0_i32_2 = arith.constant 0 : i32
    return %c0_i32, %c0_i32_0, %c0_i32_1 : i32, i32, i32
  }
  func.func @transform_4(%arg0: i32) -> (i32, i32, i32) {
    %c0_i32 = arith.constant 0 : i32
    %c0_i32_0 = arith.constant 0 : i32
    %c0_i32_1 = arith.constant 0 : i32
    %c0_i32_2 = arith.constant 0 : i32
    return %c0_i32, %c0_i32_0, %c0_i32_1 : i32, i32, i32
  }
  func.func @transform_5(%arg0: i32) -> (i32, i32, i32) {
    %c0_i32 = arith.constant 0 : i32
    %c0_i32_0 = arith.constant 0 : i32
    %c0_i32_1 = arith.constant 0 : i32
    %c0_i32_2 = arith.constant 0 : i32
    return %c0_i32, %c0_i32_0, %c0_i32_1 : i32, i32, i32
  }
  func.func @transform_6(%arg0: i32) -> (i32, i32, i32) {
    %c0_i32 = arith.constant 0 : i32
    %c0_i32_0 = arith.constant 0 : i32
    %c0_i32_1 = arith.constant 0 : i32
    %c0_i32_2 = arith.constant 0 : i32
    return %c0_i32, %c0_i32_0, %c0_i32_1 : i32, i32, i32
  }
  func.func @transform_7(%arg0: i32) -> (i32, i32, i32) {
    %c0_i32 = arith.constant 0 : i32
    %c0_i32_0 = arith.constant 0 : i32
    %c0_i32_1 = arith.constant 0 : i32
    %c0_i32_2 = arith.constant 0 : i32
    return %c0_i32, %c0_i32_0, %c0_i32_1 : i32, i32, i32
  }
  func.func @transform_8(%arg0: i32) -> (i32, i32, i32) {
    %c0_i32 = arith.constant 0 : i32
    %c0_i32_0 = arith.constant 0 : i32
    %c0_i32_1 = arith.constant 0 : i32
    %c0_i32_2 = arith.constant 0 : i32
    return %c0_i32, %c0_i32_0, %c0_i32_1 : i32, i32, i32
  }
  func.func @transform_9(%arg0: i32) -> (i32, i32, i32) {
    %c0_i32 = arith.constant 0 : i32
    %c0_i32_0 = arith.constant 0 : i32
    %c0_i32_1 = arith.constant 0 : i32
    %c0_i32_2 = arith.constant 0 : i32
    return %c0_i32, %c0_i32_0, %c0_i32_1 : i32, i32, i32
  }
  func.func @transform_10(%arg0: i32) -> (i32, i32, i32) {
    %c0_i32 = arith.constant 0 : i32
    %c0_i32_0 = arith.constant 0 : i32
    %c0_i32_1 = arith.constant 0 : i32
    %c0_i32_2 = arith.constant 0 : i32
    return %c0_i32, %c0_i32_0, %c0_i32_1 : i32, i32, i32
  }
  func.func @transform_11(%arg0: i32) -> (i32, i32, i32) {
    %c0_i32 = arith.constant 0 : i32
    %c0_i32_0 = arith.constant 0 : i32
    %c0_i32_1 = arith.constant 0 : i32
    %c0_i32_2 = arith.constant 0 : i32
    return %c0_i32, %c0_i32_0, %c0_i32_1 : i32, i32, i32
  }
  func.func @transform_12(%arg0: i32) -> (i32, i32, i32) {
    %c0_i32 = arith.constant 0 : i32
    %c0_i32_0 = arith.constant 0 : i32
    %c0_i32_1 = arith.constant 0 : i32
    %c0_i32_2 = arith.constant 0 : i32
    return %c0_i32, %c0_i32_0, %c0_i32_1 : i32, i32, i32
  }
  func.func @transform_13(%arg0: i32) -> (i32, i32, i32) {
    %c0_i32 = arith.constant 0 : i32
    %c0_i32_0 = arith.constant 0 : i32
    %c0_i32_1 = arith.constant 0 : i32
    return %arg0, %c0_i32, %c0_i32_0 : i32, i32, i32
  }
}

</mosaic_0001>

<llo_original>
// kernel: tpu_custom_call.1
$region0: #{tpu_custom_call.1}
  #allocation0 [shape = 'u32[]', space=smem, size = 0x4, offset = 0x4, fixed_abs, tag = 'smem constant byte address 0x4 - core index']
  #allocation1 [shape = 'u32[144,128]{1,0:T(1,128)}', space=vmem, size = 0x12000, scoped, tag = 'internal scratch']
  %s0 = inlined_call_operand.vmem [shape: f32[2,8,32], index: 0, kind: input, shape index: {}]
  %s1 = inlined_call_operand.vmem [shape: f32[2,1,32], index: 1, kind: input, shape index: {}]
  %s2 = inlined_call_operand.vmem [shape: f32[2,1,32], index: 2, kind: input, shape index: {}]
  %s3 = inlined_call_operand.vmem [shape: f32[2,32,96], index: 3, kind: input, shape index: {}]
  %s4 = inlined_call_operand.vmem [shape: f32[2,1,96], index: 4, kind: input, shape index: {}]
  %s5 = inlined_call_operand.vmem [shape: f32[2,32,32], index: 5, kind: input, shape index: {}]
  %s6 = inlined_call_operand.vmem [shape: f32[2,1,32], index: 6, kind: input, shape index: {}]
  %s7 = inlined_call_operand.vmem [shape: f32[2,1,32], index: 7, kind: input, shape index: {}]
  %s8 = inlined_call_operand.vmem [shape: f32[2,1,32], index: 8, kind: input, shape index: {}]
  %s9 = inlined_call_operand.vmem [shape: f32[2,32,128], index: 9, kind: input, shape index: {}]
  %s10 = inlined_call_operand.vmem [shape: f32[2,1,128], index: 10, kind: input, shape index: {}]
  %s11 = inlined_call_operand.vmem [shape: f32[2,128,32], index: 11, kind: input, shape index: {}]
  %s12 = inlined_call_operand.vmem [shape: f32[2,1,32], index: 12, kind: input, shape index: {}]
  %s13 = inlined_call_operand.hbm [shape: f32[2,8,32], index: 13, kind: output, shape index: {}]
  %s14 = sld [smem:[#allocation0]]
  $region85: #{tpu_custom_call.1} parent=0
    _
  %s16 = ssub.s32 1, %s14
  %s17 = scalar_select 0, %s16, %s14
  $region1: #{tpu_custom_call.1} parent=0
    #allocation2 [shape = 'u8[8192]{0}', space=vmem, size = 0x2000, scoped, tag = 'output window, operand 0']
    #allocation3 [shape = 's32[2]{0}', space=sflag, size = 0x8, scoped, tag = 'scoped memory for tpu_custom_call.1']
    %18 = vsyncpa [#allocation3], 0
    %s19 = scalar_lea.sflag [#allocation3], 1
    %20 = vsyncpa %s19, 0
    loop: start=0, step=1, limit=4
    $region2: #{tpu_custom_call.1} parent=1 // loop_pre_header
      _
    $region3: #{tpu_custom_call.1} parent=1 // loop_header
      %s22 = sphi 0, %s26
      %p23 = scmp.ge.s32.totalorder %s22, 4
      %s32 = sphi 0, %s34
      %s35 = sphi 0, %s32
      %s36 = sphi 0, %s35
      %s52 = sphi 0, %s36
      %s56 = sphi 0, %s56
      %s58 = sphi 0, %s56
      %s59 = sphi 0, %s58
      %s73 = sphi 0, %s59
      %s77 = sphi 0, %s77
      %s79 = sphi 0, %s77
      %s80 = sphi 0, %s79
      %s94 = sphi 0, %s80
      %s98 = sphi 0, %s98
      %s100 = sphi 0, %s98
      %s101 = sphi 0, %s100
      %s115 = sphi 0, %s101
      %s119 = sphi 0, %s119
      %s121 = sphi 0, %s119
      %s122 = sphi 0, %s121
      %s136 = sphi 0, %s122
      %s140 = sphi 0, %s140
      %s142 = sphi 0, %s140
      %s143 = sphi 0, %s142
      %s157 = sphi 0, %s143
      %s161 = sphi 0, %s161
      %s163 = sphi 0, %s161
      %s164 = sphi 0, %s163
      %s178 = sphi 0, %s164
      %s182 = sphi 0, %s182
      %s184 = sphi 0, %s182
      %s185 = sphi 0, %s184
      %s199 = sphi 0, %s185
      %s203 = sphi 0, %s203
      %s205 = sphi 0, %s203
      %s206 = sphi 0, %s205
      %s220 = sphi 0, %s206
      %s224 = sphi 0, %s224
      %s226 = sphi 0, %s224
      %s227 = sphi 0, %s226
      %s241 = sphi 0, %s227
      %s245 = sphi 0, %s245
      %s247 = sphi 0, %s245
      %s248 = sphi 0, %s247
      %s262 = sphi 0, %s248
      %s266 = sphi 0, %s266
      %s268 = sphi 0, %s266
      %s269 = sphi 0, %s268
      %s283 = sphi 0, %s269
      %s287 = sphi 0, %s287
      %s289 = sphi 0, %s287
      %s290 = sphi 0, %s289
      %s304 = sphi 0, %s290
      %s310 = sphi 0, %s312
      %s313 = sphi 0, %s310
      %s314 = sphi 0, %s313
      %s330 = sphi 0, %s314
    $region4: #{tpu_custom_call.1} parent=1 // loop_header_branch
      %25 = sbr.rel (%p23) target = $region8
    $region5: #{tpu_custom_call.1} parent=1 // loop_body
      %s27 = ssub.s32 %s22, 1
      %s28 = ssub.s32 %s22, 2
      %s29 = sadd.s32 %s22, 1
      %s30 = ssub.s32 %s22, %s29
      %p31 = scmp.eq.s32.totalorder %s30, 0
      %s33 = sadd.s32 %s32, 1
      %s34 = scalar_select %p31, %s32, %s33
      %p37 = pneg %p31
      %p38 = scmp.eq.s32.totalorder %s22, 1
      %p39 = por %p37, %p38
      %p40 = scmp.ne.s32.totalorder %s32, %s35
      %p41 = scmp.eq.s32.totalorder %s22, 0
      %p42 = por %p40, %p41
      %p43 = scmp.ne.s32.totalorder %s32, %s35
      %p44 = scmp.eq.s32.totalorder %s27, 1
      %p45 = por %p43, %p44
      %p46 = scmp.ne.s32.totalorder %s35, %s36
      %p47 = scmp.eq.s32.totalorder %s27, 0
      %p48 = por %p46, %p47
      %p49 = scmp.ne.s32.totalorder %s35, %s36
      %p50 = scmp.eq.s32.totalorder %s28, 1
      %p51 = por %p49, %p50
      %p53 = scmp.ne.s32.totalorder %s36, %s52
      %p54 = scmp.eq.s32.totalorder %s28, 0
      %p55 = por %p53, %p54
      %s57 = sadd.s32 %s56, 1
      %p60 = scmp.eq.s32.totalorder %s22, 1
      %p61 = scmp.ne.s32.totalorder %s56, %s58
      %p62 = scmp.eq.s32.totalorder %s22, 0
      %p63 = por %p61, %p62
      %p64 = scmp.ne.s32.totalorder %s56, %s58
      %p65 = scmp.eq.s32.totalorder %s27, 1
      %p66 = por %p64, %p65
      %p67 = scmp.ne.s32.totalorder %s58, %s59
      %p68 = scmp.eq.s32.totalorder %s27, 0
      %p69 = por %p67, %p68
      %p70 = scmp.ne.s32.totalorder %s58, %s59
      %p71 = scmp.eq.s32.totalorder %s28, 1
      %p72 = por %p70, %p71
      %p74 = scmp.ne.s32.totalorder %s59, %s73
      %p75 = scmp.eq.s32.totalorder %s28, 0
      %p76 = por %p74, %p75
      %s78 = sadd.s32 %s77, 1
      %p81 = scmp.eq.s32.totalorder %s22, 1
      %p82 = scmp.ne.s32.totalorder %s77, %s79
      %p83 = scmp.eq.s32.totalorder %s22, 0
      %p84 = por %p82, %p83
      %p85 = scmp.ne.s32.totalorder %s77, %s79
      %p86 = scmp.eq.s32.totalorder %s27, 1
      %p87 = por %p85, %p86
      %p88 = scmp.ne.s32.totalorder %s79, %s80
      %p89 = scmp.eq.s32.totalorder %s27, 0
      %p90 = por %p88, %p89
      %p91 = scmp.ne.s32.totalorder %s79, %s80
      %p92 = scmp.eq.s32.totalorder %s28, 1
      %p93 = por %p91, %p92
      %p95 = scmp.ne.s32.totalorder %s80, %s94
      %p96 = scmp.eq.s32.totalorder %s28, 0
      %p97 = por %p95, %p96
      %s99 = sadd.s32 %s98, 1
      %p102 = scmp.eq.s32.totalorder %s22, 1
      %p103 = scmp.ne.s32.totalorder %s98, %s100
      %p104 = scmp.eq.s32.totalorder %s22, 0
      %p105 = por %p103, %p104
      %p106 = scmp.ne.s32.totalorder %s98, %s100
      %p107 = scmp.eq.s32.totalorder %s27, 1
      %p108 = por %p106, %p107
      %p109 = scmp.ne.s32.totalorder %s100, %s101
      %p110 = scmp.eq.s32.totalorder %s27, 0
      %p111 = por %p109, %p110
      %p112 = scmp.ne.s32.totalorder %s100, %s101
      %p113 = scmp.eq.s32.totalorder %s28, 1
      %p114 = por %p112, %p113
      %p116 = scmp.ne.s32.totalorder %s101, %s115
      %p117 = scmp.eq.s32.totalorder %s28, 0
      %p118 = por %p116, %p117
      %s120 = sadd.s32 %s119, 1
      %p123 = scmp.eq.s32.totalorder %s22, 1
      %p124 = scmp.ne.s32.totalorder %s119, %s121
      %p125 = scmp.eq.s32.totalorder %s22, 0
      %p126 = por %p124, %p125
      %p127 = scmp.ne.s32.totalorder %s119, %s121
      %p128 = scmp.eq.s32.totalorder %s27, 1
      %p129 = por %p127, %p128
      %p130 = scmp.ne.s32.totalorder %s121, %s122
      %p131 = scmp.eq.s32.totalorder %s27, 0
      %p132 = por %p130, %p131
      %p133 = scmp.ne.s32.totalorder %s121, %s122
      %p134 = scmp.eq.s32.totalorder %s28, 1
      %p135 = por %p133, %p134
      %p137 = scmp.ne.s32.totalorder %s122, %s136
      %p138 = scmp.eq.s32.totalorder %s28, 0
      %p139 = por %p137, %p138
      %s141 = sadd.s32 %s140, 1
      %p144 = scmp.eq.s32.totalorder %s22, 1
      %p145 = scmp.ne.s32.totalorder %s140, %s142
      %p146 = scmp.eq.s32.totalorder %s22, 0
      %p147 = por %p145, %p146
      %p148 = scmp.ne.s32.totalorder %s140, %s142
      %p149 = scmp.eq.s32.totalorder %s27, 1
      %p150 = por %p148, %p149
      %p151 = scmp.ne.s32.totalorder %s142, %s143
      %p152 = scmp.eq.s32.totalorder %s27, 0
      %p153 = por %p151, %p152
      %p154 = scmp.ne.s32.totalorder %s142, %s143
      %p155 = scmp.eq.s32.totalorder %s28, 1
      %p156 = por %p154, %p155
      %p158 = scmp.ne.s32.totalorder %s143, %s157
      %p159 = scmp.eq.s32.totalorder %s28, 0
      %p160 = por %p158, %p159
      %s162 = sadd.s32 %s161, 1
      %p165 = scmp.eq.s32.totalorder %s22, 1
      %p166 = scmp.ne.s32.totalorder %s161, %s163
      %p167 = scmp.eq.s32.totalorder %s22, 0
      %p168 = por %p166, %p167
      %p169 = scmp.ne.s32.totalorder %s161, %s163
      %p170 = scmp.eq.s32.totalorder %s27, 1
      %p171 = por %p169, %p170
      %p172 = scmp.ne.s32.totalorder %s163, %s164
      %p173 = scmp.eq.s32.totalorder %s27, 0
      %p174 = por %p172, %p173
      %p175 = scmp.ne.s32.totalorder %s163, %s164
      %p176 = scmp.eq.s32.totalorder %s28, 1
      %p177 = por %p175, %p176
      %p179 = scmp.ne.s32.totalorder %s164, %s178
      %p180 = scmp.eq.s32.totalorder %s28, 0
      %p181 = por %p179, %p180
      %s183 = sadd.s32 %s182, 1
      %p186 = scmp.eq.s32.totalorder %s22, 1
      %p187 = scmp.ne.s32.totalorder %s182, %s184
      %p188 = scmp.eq.s32.totalorder %s22, 0
      %p189 = por %p187, %p188
      %p190 = scmp.ne.s32.totalorder %s182, %s184
      %p191 = scmp.eq.s32.totalorder %s27, 1
      %p192 = por %p190, %p191
      %p193 = scmp.ne.s32.totalorder %s184, %s185
      %p194 = scmp.eq.s32.totalorder %s27, 0
      %p195 = por %p193, %p194
      %p196 = scmp.ne.s32.totalorder %s184, %s185
      %p197 = scmp.eq.s32.totalorder %s28, 1
      %p198 = por %p196, %p197
      %p200 = scmp.ne.s32.totalorder %s185, %s199
      %p201 = scmp.eq.s32.totalorder %s28, 0
      %p202 = por %p200, %p201
      %s204 = sadd.s32 %s203, 1
      %p207 = scmp.eq.s32.totalorder %s22, 1
      %p208 = scmp.ne.s32.totalorder %s203, %s205
      %p209 = scmp.eq.s32.totalorder %s22, 0
      %p210 = por %p208, %p209
      %p211 = scmp.ne.s32.totalorder %s203, %s205
      %p212 = scmp.eq.s32.totalorder %s27, 1
      %p213 = por %p211, %p212
      %p214 = scmp.ne.s32.totalorder %s205, %s206
      %p215 = scmp.eq.s32.totalorder %s27, 0
      %p216 = por %p214, %p215
      %p217 = scmp.ne.s32.totalorder %s205, %s206
      %p218 = scmp.eq.s32.totalorder %s28, 1
      %p219 = por %p217, %p218
      %p221 = scmp.ne.s32.totalorder %s206, %s220
      %p222 = scmp.eq.s32.totalorder %s28, 0
      %p223 = por %p221, %p222
      %s225 = sadd.s32 %s224, 1
      %p228 = scmp.eq.s32.totalorder %s22, 1
      %p229 = scmp.ne.s32.totalorder %s224, %s226
      %p230 = scmp.eq.s32.totalorder %s22, 0
      %p231 = por %p229, %p230
      %p232 = scmp.ne.s32.totalorder %s224, %s226
      %p233 = scmp.eq.s32.totalorder %s27, 1
      %p234 = por %p232, %p233
      %p235 = scmp.ne.s32.totalorder %s226, %s227
      %p236 = scmp.eq.s32.totalorder %s27, 0
      %p237 = por %p235, %p236
      %p238 = scmp.ne.s32.totalorder %s226, %s227
      %p239 = scmp.eq.s32.totalorder %s28, 1
      %p240 = por %p238, %p239
      %p242 = scmp.ne.s32.totalorder %s227, %s241
      %p243 = scmp.eq.s32.totalorder %s28, 0
      %p244 = por %p242, %p243
      %s246 = sadd.s32 %s245, 1
      %p249 = scmp.eq.s32.totalorder %s22, 1
      %p250 = scmp.ne.s32.totalorder %s245, %s247
      %p251 = scmp.eq.s32.totalorder %s22, 0
      %p252 = por %p250, %p251
      %p253 = scmp.ne.s32.totalorder %s245, %s247
      %p254 = scmp.eq.s32.totalorder %s27, 1
      %p255 = por %p253, %p254
      %p256 = scmp.ne.s32.totalorder %s247, %s248
      %p257 = scmp.eq.s32.totalorder %s27, 0
      %p258 = por %p256, %p257
      %p259 = scmp.ne.s32.totalorder %s247, %s248
      %p260 = scmp.eq.s32.totalorder %s28, 1
      %p261 = por %p259, %p260
      %p263 = scmp.ne.s32.totalorder %s248, %s262
      %p264 = scmp.eq.s32.totalorder %s28, 0
      %p265 = por %p263, %p264
      %s267 = sadd.s32 %s266, 1
      %p270 = scmp.eq.s32.totalorder %s22, 1
      %p271 = scmp.ne.s32.totalorder %s266, %s268
      %p272 = scmp.eq.s32.totalorder %s22, 0
      %p273 = por %p271, %p272
      %p274 = scmp.ne.s32.totalorder %s266, %s268
      %p275 = scmp.eq.s32.totalorder %s27, 1
      %p276 = por %p274, %p275
      %p277 = scmp.ne.s32.totalorder %s268, %s269
      %p278 = scmp.eq.s32.totalorder %s27, 0
      %p279 = por %p277, %p278
      %p280 = scmp.ne.s32.totalorder %s268, %s269
      %p281 = scmp.eq.s32.totalorder %s28, 1
      %p282 = por %p280, %p281
      %p284 = scmp.ne.s32.totalorder %s269, %s283
      %p285 = scmp.eq.s32.totalorder %s28, 0
      %p286 = por %p284, %p285
      %s288 = sadd.s32 %s287, 1
      %p291 = scmp.eq.s32.totalorder %s22, 1
      %p292 = scmp.ne.s32.totalorder %s287, %s289
      %p293 = scmp.eq.s32.totalorder %s22, 0
      %p294 = por %p292, %p293
      %p295 = scmp.ne.s32.totalorder %s287, %s289
      %p296 = scmp.eq.s32.totalorder %s27, 1
      %p297 = por %p295, %p296
      %p298 = scmp.ne.s32.totalorder %s289, %s290
      %p299 = scmp.eq.s32.totalorder %s27, 0
      %p300 = por %p298, %p299
      %p301 = scmp.ne.s32.totalorder %s289, %s290
      %p302 = scmp.eq.s32.totalorder %s28, 1
      %p303 = por %p301, %p302
      %p305 = scmp.ne.s32.totalorder %s290, %s304
      %p306 = scmp.eq.s32.totalorder %s28, 0
      %p307 = por %p305, %p306
      %s308 = ssub.s32 %s22, %s29
      %p309 = scmp.eq.s32.totalorder %s308, 0
      %s311 = sadd.s32 %s310, 1
      %s312 = scalar_select %p309, %s310, %s311
      %p315 = pneg %p309
      %p316 = scmp.eq.s32.totalorder %s22, 1
      %p317 = por %p315, %p316
      %p318 = scmp.ne.s32.totalorder %s310, %s313
      %p319 = scmp.eq.s32.totalorder %s22, 0
      %p320 = por %p318, %p319
      %p321 = scmp.ne.s32.totalorder %s310, %s313
      %p322 = scmp.eq.s32.totalorder %s27, 1
      %p323 = por %p321, %p322
      %p324 = scmp.ne.s32.totalorder %s313, %s314
      %p325 = scmp.eq.s32.totalorder %s27, 0
      %p326 = por %p324, %p325
      %p327 = scmp.ne.s32.totalorder %s313, %s314
      %p328 = scmp.eq.s32.totalorder %s28, 1
      %p329 = por %p327, %p328
      %p331 = scmp.ne.s32.totalorder %s314, %s330
      %p332 = scmp.eq.s32.totalorder %s28, 0
      %p333 = por %p331, %p332
      %p334 = scmp.le.s32.totalorder 1, %s22
      %p335 = scmp.lt.s32.totalorder %s22, 3
      %p336 = pnand %p334, %p335
      %p337 = pneg %p336
      // Predicated region
      $region9: #{tpu_custom_call.1} parent=5 // pred_check
        _
      $region10: #{tpu_custom_call.1} parent=5 // pred_check_branch
        %339 = sbr.rel (%p336) target = $region12
      $region11: #{tpu_custom_call.1} parent=5 // pred_region
        %s340 = ssub.s32 %s22, 1
        // Predicated region
        $region13: #{tpu_custom_call.1} parent=11 // pred_check
          %p341 = pneg %p69
        $region14: #{tpu_custom_call.1} parent=11 // pred_check_branch
          %343 = sbr.rel (%p341) target = $region16
        $region15: #{tpu_custom_call.1} parent=11 // pred_region
          _
        $region16: #{tpu_custom_call.1} parent=11 // pred_fallthru
          _
        // Predicated region
        $region17: #{tpu_custom_call.1} parent=11 // pred_check
          %p344 = pneg %p90
        $region18: #{tpu_custom_call.1} parent=11 // pred_check_branch
          %346 = sbr.rel (%p344) target = $region20
        $region19: #{tpu_custom_call.1} parent=11 // pred_region
          _
        $region20: #{tpu_custom_call.1} parent=11 // pred_fallthru
          _
        // Predicated region
        $region21: #{tpu_custom_call.1} parent=11 // pred_check
          %p347 = pneg %p111
        $region22: #{tpu_custom_call.1} parent=11 // pred_check_branch
          %349 = sbr.rel (%p347) target = $region24
        $region23: #{tpu_custom_call.1} parent=11 // pred_region
          _
        $region24: #{tpu_custom_call.1} parent=11 // pred_fallthru
          _
        // Predicated region
        $region25: #{tpu_custom_call.1} parent=11 // pred_check
          %p350 = pneg %p132
        $region26: #{tpu_custom_call.1} parent=11 // pred_check_branch
          %352 = sbr.rel (%p350) target = $region28
        $region27: #{tpu_custom_call.1} parent=11 // pred_region
          _
        $region28: #{tpu_custom_call.1} parent=11 // pred_fallthru
          _
        // Predicated region
        $region29: #{tpu_custom_call.1} parent=11 // pred_check
          %p353 = pneg %p153
        $region30: #{tpu_custom_call.1} parent=11 // pred_check_branch
          %355 = sbr.rel (%p353) target = $region32
        $region31: #{tpu_custom_call.1} parent=11 // pred_region
          _
        $region32: #{tpu_custom_call.1} parent=11 // pred_fallthru
          _
        // Predicated region
        $region33: #{tpu_custom_call.1} parent=11 // pred_check
          %p356 = pneg %p174
        $region34: #{tpu_custom_call.1} parent=11 // pred_check_branch
          %358 = sbr.rel (%p356) target = $region36
        $region35: #{tpu_custom_call.1} parent=11 // pred_region
          _
        $region36: #{tpu_custom_call.1} parent=11 // pred_fallthru
          _
        // Predicated region
        $region37: #{tpu_custom_call.1} parent=11 // pred_check
          %p359 = pneg %p195
        $region38: #{tpu_custom_call.1} parent=11 // pred_check_branch
          %361 = sbr.rel (%p359) target = $region40
        $region39: #{tpu_custom_call.1} parent=11 // pred_region
          _
        $region40: #{tpu_custom_call.1} parent=11 // pred_fallthru
          _
        // Predicated region
        $region41: #{tpu_custom_call.1} parent=11 // pred_check
          %p362 = pneg %p216
        $region42: #{tpu_custom_call.1} parent=11 // pred_check_branch
          %364 = sbr.rel (%p362) target = $region44
        $region43: #{tpu_custom_call.1} parent=11 // pred_region
          _
        $region44: #{tpu_custom_call.1} parent=11 // pred_fallthru
          _
        // Predicated region
        $region45: #{tpu_custom_call.1} parent=11 // pred_check
          %p365 = pneg %p237
        $region46: #{tpu_custom_call.1} parent=11 // pred_check_branch
          %367 = sbr.rel (%p365) target = $region48
        $region47: #{tpu_custom_call.1} parent=11 // pred_region
          _
        $region48: #{tpu_custom_call.1} parent=11 // pred_fallthru
          _
        // Predicated region
        $region49: #{tpu_custom_call.1} parent=11 // pred_check
          %p368 = pneg %p258
        $region50: #{tpu_custom_call.1} parent=11 // pred_check_branch
          %370 = sbr.rel (%p368) target = $region52
        $region51: #{tpu_custom_call.1} parent=11 // pred_region
          _
        $region52: #{tpu_custom_call.1} parent=11 // pred_fallthru
          _
        // Predicated region
        $region53: #{tpu_custom_call.1} parent=11 // pred_check
          %p371 = pneg %p279
        $region54: #{tpu_custom_call.1} parent=11 // pred_check_branch
          %373 = sbr.rel (%p371) target = $region56
        $region55: #{tpu_custom_call.1} parent=11 // pred_region
          _
        $region56: #{tpu_custom_call.1} parent=11 // pred_fallthru
          _
        // Predicated region
        $region57: #{tpu_custom_call.1} parent=11 // pred_check
          %p374 = pneg %p300
        $region58: #{tpu_custom_call.1} parent=11 // pred_check_branch
          %376 = sbr.rel (%p374) target = $region60
        $region59: #{tpu_custom_call.1} parent=11 // pred_region
          _
        $region60: #{tpu_custom_call.1} parent=11 // pred_fallthru
          _
      $region12: #{tpu_custom_call.1} parent=5 // pred_fallthru
        _
      %p377 = scmp.lt.s32.totalorder %s22, 2
      // Predicated region
      $region61: #{tpu_custom_call.1} parent=5 // pred_check
        %p378 = pneg %p377
      $region62: #{tpu_custom_call.1} parent=5 // pred_check_branch
        %380 = sbr.rel (%p378) target = $region64
      $region63: #{tpu_custom_call.1} parent=5 // pred_region
        // Predicated region
        $region65: #{tpu_custom_call.1} parent=63 // pred_check
          %p381 = pneg %p42
        $region66: #{tpu_custom_call.1} parent=63 // pred_check_branch
          %383 = sbr.rel (%p381) target = $region68
        $region67: #{tpu_custom_call.1} parent=63 // pred_region
          %p384 = scmp.lt.s32.totalorder %s22, 1
          %s385 = scalar_select %p384, %s22, 1
          %s386 = smul.addr %s385, 8
          %s387 = scalar_lea.vmem %s0, %s386
        $region68: #{tpu_custom_call.1} parent=63 // pred_fallthru
          _
      $region64: #{tpu_custom_call.1} parent=5 // pred_fallthru
        _
      %p388 = scmp.le.s32.totalorder 1, %s22
      %p389 = scmp.lt.s32.totalorder %s22, 3
      %p390 = pnand %p388, %p389
      %p391 = pneg %p390
      // Predicated region
      $region69: #{tpu_custom_call.1} parent=5 // pred_check
        _
      $region70: #{tpu_custom_call.1} parent=5 // pred_check_branch
        %393 = sbr.rel (%p390) target = $region72
      $region71: #{tpu_custom_call.1} parent=5 // pred_region
        %s394 = ssub.s32 %s22, 1
        %p395 = scmp.lt.s32.totalorder %s27, 1
        %s396 = scalar_select %p395, %s27, 1
        %s397 = smul.addr %s396, 8
        %s398 = scalar_lea.vmem %s0, %s397
        %p399 = pneg %p48
        %p400 = pneg %p45
        %p401 = pneg %p69
        %p402 = pneg %p66
        %p403 = pneg %p90
        %p404 = pneg %p87
        %p405 = pneg %p111
        %p406 = pneg %p108
        %p407 = pneg %p132
        %p408 = pneg %p129
        %p409 = pneg %p153
        %p410 = pneg %p150
        %p411 = pneg %p174
        %p412 = pneg %p171
        %p413 = pneg %p195
        %p414 = pneg %p192
        %p415 = pneg %p216
        %p416 = pneg %p213
        %p417 = pneg %p237
        %p418 = pneg %p234
        %p419 = pneg %p258
        %p420 = pneg %p255
        %p421 = pneg %p279
        %p422 = pneg %p276
        %p423 = pneg %p300
        %p424 = pneg %p297
        %p425 = pneg %p326
        %p426 = pneg %p323
        %s427 = sand.u32 %s313, 1
        %s428 = scalar_lea.sflag [#allocation3], %s427
        %s429 = sand.u32 %s313, 1
        %s430 = smul.addr %s429, 8
        %s431 = scalar_lea.vmem [#allocation2], %s430
        %p432 = scmp.lt.s32.totalorder %s27, 1
        %s433 = scalar_select %p432, %s27, 1
        %s434 = smul.addr %s433, 8
        %s435 = scalar_lea.vmem %s0, %s434
        %v436 = vld [vmem:[%s435] sm:$0xff]
        %v437 = vld [vmem:[%s1] sm:$0x1]
        %v438 = vld [vmem:[%s2] sm:$0x1]
        %vm439 = vcmask 261120
        %v440 = vsel %vm439, %v436, 0.0
        %441 = vadd.xlane.f32.xlu0 %v440
        %v442 = vpop.xlane.xlu0 %441
        %v443 = vrcp.pop 32.0
        %v444 = vmul.f32 %v442, %v443
        %v445 = vsub.f32 %v436, %v444
        %v446 = vmul.f32 %v445, %v445
        %v447 = vsel %vm439, %v446, 0.0
        %448 = vadd.xlane.f32.xlu0 %v447
        %v449 = vpop.xlane.xlu0 %448
        %v450 = vmul.f32 %v449, %v443
        %v451 = vadd.f32 %v450, 1e-05
        %v452 = vrsqrt.pop %v451
        %v453 = vmul.f32 %v445, %v452
        %v455 = vlaneseq
        %v456 = vshrl.u32 %v455, 7
        %v457 = vsub.s32 0, %v456
        %v458 = vrot.slane %v437, %v457
        %v460 = vmul.f32 %v453, %v458
        %v462 = vlaneseq
        %v463 = vshrl.u32 %v462, 7
        %v464 = vsub.s32 0, %v463
        %v465 = vrot.slane %v438, %v464
        %v467 = vadd.f32 %v460, %v465
        %v468 = vld [vmem:[%s3] sm:$0xff]
        %v469 = vld [vmem:[%s3 + $0x8] sm:$0xff]
        %v470 = vld [vmem:[%s3 + $0x10] sm:$0xff]
        %v471 = vld [vmem:[%s3 + $0x18] sm:$0xff]
        %v472 = vld [vmem:[%s4] sm:$0x1]
        %v474 = vlaneseq
        %v475 = vshrl.u32 %v474, 7
        %v476 = vsub.s32 0, %v475
        %v477 = vrot.slane %v472, %v476
        %v480 = vsel %vm439, %v467, 0
        %482 = vmatprep.subr.mxu0 0.0
        %483 = vmatpush1.msra.mxu0 %v468
        %484 = vmatprep.subr.mxu0 0.0
        %485 = vmatpush1.msra.mxu0 %v469
        %486 = vmatprep.subr.mxu0 0.0
        %487 = vmatpush1.msra.mxu0 %v470
        %488 = vmatprep.subr.mxu0 0.0
        %489 = vmatpush1.msra.mxu0 %v471
        %490 = vmatprep.subr.mxu0 0.0
        %491 = vmatpush1.msra.mxu0 0.0
        %492 = vmatprep.subr.mxu0 0.0
        %493 = vmatpush1.msra.mxu0 0.0
        %494 = vmatprep.subr.mxu0 0.0
        %495 = vmatpush1.msra.mxu0 0.0
        %496 = vmatprep.subr.mxu0 0.0
        %497 = vmatpush1.msra.mxu0 0.0
        %498 = vmatprep.subr.mxu0 0.0
        %499 = vmatpush1.msra.mxu0 0.0
        %500 = vmatprep.subr.mxu0 0.0
        %501 = vmatpush1.msra.mxu0 0.0
        %502 = vmatprep.subr.mxu0 0.0
        %503 = vmatpush1.msra.mxu0 0.0
        %504 = vmatprep.subr.mxu0 0.0
        %505 = vmatpush1.msra.mxu0 0.0
        %506 = vmatprep.subr.mxu0 0.0
        %507 = vmatpush1.msra.mxu0 0.0
        %508 = vmatprep.subr.mxu0 0.0
        %509 = vmatpush1.msra.mxu0 0.0
        %510 = vmatprep.subr.mxu0 0.0
        %511 = vmatpush1.msra.mxu0 0.0
        %512 = vmatprep.subr.mxu0 0.0
        %513 = vmatpush1.msra.mxu0 0.0
        %514 = vmatprep.subr.mxu0 0.0
        %515 = vmatpush1.msra.mxu0 0.0
        %516 = vmatprep.subr.mxu0 0.0
        %517 = vmatpush1.msra.mxu0 0.0
        %518 = vmatprep.subr.mxu0 0.0
        %519 = vmatpush1.msra.mxu0 0.0
        %520 = vmatprep.subr.mxu0 0.0
        %521 = vmatpush1.msra.mxu0 0.0
        %522 = vmatprep.subr.mxu0 0.0
        %523 = vmatpush1.msra.mxu0 0.0
        %524 = vmatprep.subr.mxu0 0.0
        %525 = vmatpush1.msra.mxu0 0.0
        %526 = vmatprep.subr.mxu0 0.0
        %527 = vmatpush1.msra.mxu0 0.0
        %528 = vmatprep.subr.mxu0 0.0
        %529 = vmatpush1.msra.mxu0 0.0
        %530 = vmatprep.subr.mxu0 0.0
        %531 = vmatpush1.msra.mxu0 0.0
        %532 = vmatprep.subr.mxu0 0.0
        %533 = vmatpush1.msra.mxu0 0.0
        %534 = vmatprep.subr.mxu0 0.0
        %535 = vmatpush1.msra.mxu0 0.0
        %536 = vmatprep.subr.mxu0 0.0
        %537 = vmatpush1.msra.mxu0 0.0
        %538 = vmatprep.subr.mxu0 0.0
        %539 = vmatpush1.msra.mxu0 0.0
        %540 = vmatprep.subr.mxu0 0.0
        %541 = vmatpush1.msra.mxu0 0.0
        %542 = vmatprep.subr.mxu0 0.0
        %543 = vmatpush1.msra.mxu0 0.0
        %544 = vmatprep.subr.mxu0 0.0
        %545 = vmatpush1.msra.mxu0 0.0
        %546 = vmatprep.mubr.f32.mxu0 0.0
        %547 = vmatmul.mubr.f32.gmra.mrb[0].mxu0 %v480
        %v548 = vpop.f32.mrb[0].mxu0
        %v549 = vadd.f32 %v477, %v548
        %v550 = vpop.f32.mrb[0].mxu0
        %551 = vdwg.mxu0
        %v552 = vmul.f32 %v549, 0.35355338
        %554 = vrot.lane.b32.xlu0 %v549, 96
        %v555 = vpop.permute.xlu0 %554
        %vm556 = vcmask 64512
        %v558 = vsel %vm556, %v552, 0
        %v560 = vsel %vm556, %v555, 0
        %562 = vmatprep.subr.mxu0 0.0
        %563 = vmatpush1.xpose.msra.mxu0 %v560
        %564 = vmatprep.subr.mxu0 0.0
        %565 = vmatpush1.xpose.msra.mxu0 0.0
        %566 = vmatprep.subr.mxu0 0.0
        %567 = vmatpush1.xpose.msra.mxu0 0.0
        %568 = vmatprep.subr.mxu0 0.0
        %569 = vmatpush1.xpose.msra.mxu0 0.0
        %570 = vmatprep.subr.mxu0 0.0
        %571 = vmatpush1.xpose.msra.mxu0 0.0
        %572 = vmatprep.subr.mxu0 0.0
        %573 = vmatpush1.xpose.msra.mxu0 0.0
        %574 = vmatprep.subr.mxu0 0.0
        %575 = vmatpush1.xpose.msra.mxu0 0.0
        %576 = vmatprep.subr.mxu0 0.0
        %577 = vmatpush1.xpose.msra.mxu0 0.0
        %578 = vmatprep.subr.mxu0 0.0
        %579 = vmatpush1.xpose.msra.mxu0 0.0
        %580 = vmatprep.subr.mxu0 0.0
        %581 = vmatpush1.xpose.msra.mxu0 0.0
        %582 = vmatprep.subr.mxu0 0.0
        %583 = vmatpush1.xpose.msra.mxu0 0.0
        %584 = vmatprep.subr.mxu0 0.0
        %585 = vmatpush1.xpose.msra.mxu0 0.0
        %586 = vmatprep.subr.mxu0 0.0
        %587 = vmatpush1.xpose.msra.mxu0 0.0
        %588 = vmatprep.subr.mxu0 0.0
        %589 = vmatpush1.xpose.msra.mxu0 0.0
        %590 = vmatprep.subr.mxu0 0.0
        %591 = vmatpush1.xpose.msra.mxu0 0.0
        %592 = vmatprep.subr.mxu0 0.0
        %593 = vmatpush1.xpose.msra.mxu0 0.0
        %594 = vmatprep.subr.mxu0 0.0
        %595 = vmatpush1.xpose.msra.mxu0 0.0
        %596 = vmatprep.subr.mxu0 0.0
        %597 = vmatpush1.xpose.msra.mxu0 0.0
        %598 = vmatprep.subr.mxu0 0.0
        %599 = vmatpush1.xpose.msra.mxu0 0.0
        %600 = vmatprep.subr.mxu0 0.0
        %601 = vmatpush1.xpose.msra.mxu0 0.0
        %602 = vmatprep.subr.mxu0 0.0
        %603 = vmatpush1.xpose.msra.mxu0 0.0
        %604 = vmatprep.subr.mxu0 0.0
        %605 = vmatpush1.xpose.msra.mxu0 0.0
        %606 = vmatprep.subr.mxu0 0.0
        %607 = vmatpush1.xpose.msra.mxu0 0.0
        %608 = vmatprep.subr.mxu0 0.0
        %609 = vmatpush1.xpose.msra.mxu0 0.0
        %610 = vmatprep.subr.mxu0 0.0
        %611 = vmatpush1.xpose.msra.mxu0 0.0
        %612 = vmatprep.subr.mxu0 0.0
        %613 = vmatpush1.xpose.msra.mxu0 0.0
        %614 = vmatprep.subr.mxu0 0.0
        %615 = vmatpush1.xpose.msra.mxu0 0.0
        %616 = vmatprep.subr.mxu0 0.0
        %617 = vmatpush1.xpose.msra.mxu0 0.0
        %618 = vmatprep.subr.mxu0 0.0
        %619 = vmatpush1.xpose.msra.mxu0 0.0
        %620 = vmatprep.subr.mxu0 0.0
        %621 = vmatpush1.xpose.msra.mxu0 0.0
        %622 = vmatprep.subr.mxu0 0.0
        %623 = vmatpush1.xpose.msra.mxu0 0.0
        %624 = vmatprep.subr.mxu0 0.0
        %625 = vmatpush1.xpose.msra.mxu0 0.0
        %626 = vmatprep.mubr.f32.mxu0 0.0
        %627 = vmatmul.mubr.f32.gmra.mrb[0].mxu0 %v558
        %v628 = vpop.f32.mrb[0].mxu0
        %v629 = vadd.f32 0.0, %v628
        %v630 = vpop.f32.mrb[0].mxu0
        %631 = vdwg.mxu0
        %v632 = vsel %vm556, %v629, -inf
        %633 = vmax.xlane.f32.xlu0 %v632
        %v634 = vpop.xlane.xlu0 %633
        %v635 = vsub.f32 %v629, %v634
        %v636 = vmul.f32 %v635, 1.442695
        %v637 = vpow.pop %v636
        %v638 = vsel %vm556, %v637, 0.0
        %639 = vadd.xlane.f32.xlu0 %v638
        %v640 = vpop.xlane.xlu0 %639
        %v641 = vrcp.pop %v640
        %v642 = vmul.f32 %v637, %v641
        %643 = vrot.lane.b32.xlu0 %v549, 64
        %v644 = vpop.permute.xlu0 %643
        %v647 = vsel %vm556, %v642, 0
        %649 = vmatprep.subr.mxu0 0.0
        %650 = vmatpush1.msra.mxu0 %v644
        %651 = vmatprep.subr.mxu0 0.0
        %652 = vmatpush1.msra.mxu0 0.0
        %653 = vmatprep.subr.mxu0 0.0
        %654 = vmatpush1.msra.mxu0 0.0
        %655 = vmatprep.subr.mxu0 0.0
        %656 = vmatpush1.msra.mxu0 0.0
        %657 = vmatprep.subr.mxu0 0.0
        %658 = vmatpush1.msra.mxu0 0.0
        %659 = vmatprep.subr.mxu0 0.0
        %660 = vmatpush1.msra.mxu0 0.0
        %661 = vmatprep.subr.mxu0 0.0
        %662 = vmatpush1.msra.mxu0 0.0
        %663 = vmatprep.subr.mxu0 0.0
        %664 = vmatpush1.msra.mxu0 0.0
        %665 = vmatprep.subr.mxu0 0.0
        %666 = vmatpush1.msra.mxu0 0.0
        %667 = vmatprep.subr.mxu0 0.0
        %668 = vmatpush1.msra.mxu0 0.0
        %669 = vmatprep.subr.mxu0 0.0
        %670 = vmatpush1.msra.mxu0 0.0
        %671 = vmatprep.subr.mxu0 0.0
        %672 = vmatpush1.msra.mxu0 0.0
        %673 = vmatprep.subr.mxu0 0.0
        %674 = vmatpush1.msra.mxu0 0.0
        %675 = vmatprep.subr.mxu0 0.0
        %676 = vmatpush1.msra.mxu0 0.0
        %677 = vmatprep.subr.mxu0 0.0
        %678 = vmatpush1.msra.mxu0 0.0
        %679 = vmatprep.subr.mxu0 0.0
        %680 = vmatpush1.msra.mxu0 0.0
        %681 = vmatprep.subr.mxu0 0.0
        %682 = vmatpush1.msra.mxu0 0.0
        %683 = vmatprep.subr.mxu0 0.0
        %684 = vmatpush1.msra.mxu0 0.0
        %685 = vmatprep.subr.mxu0 0.0
        %686 = vmatpush1.msra.mxu0 0.0
        %687 = vmatprep.subr.mxu0 0.0
        %688 = vmatpush1.msra.mxu0 0.0
        %689 = vmatprep.subr.mxu0 0.0
        %690 = vmatpush1.msra.mxu0 0.0
        %691 = vmatprep.subr.mxu0 0.0
        %692 = vmatpush1.msra.mxu0 0.0
        %693 = vmatprep.subr.mxu0 0.0
        %694 = vmatpush1.msra.mxu0 0.0
        %695 = vmatprep.subr.mxu0 0.0
        %696 = vmatpush1.msra.mxu0 0.0
        %697 = vmatprep.subr.mxu0 0.0
        %698 = vmatpush1.msra.mxu0 0.0
        %699 = vmatprep.subr.mxu0 0.0
        %700 = vmatpush1.msra.mxu0 0.0
        %701 = vmatprep.subr.mxu0 0.0
        %702 = vmatpush1.msra.mxu0 0.0
        %703 = vmatprep.subr.mxu0 0.0
        %704 = vmatpush1.msra.mxu0 0.0
        %705 = vmatprep.subr.mxu0 0.0
        %706 = vmatpush1.msra.mxu0 0.0
        %707 = vmatprep.subr.mxu0 0.0
        %708 = vmatpush1.msra.mxu0 0.0
        %709 = vmatprep.subr.mxu0 0.0
        %710 = vmatpush1.msra.mxu0 0.0
        %711 = vmatprep.subr.mxu0 0.0
        %712 = vmatpush1.msra.mxu0 0.0
        %713 = vmatprep.mubr.f32.mxu0 0.0
        %714 = vmatmul.mubr.f32.gmra.mrb[0].mxu0 %v647
        %v715 = vpop.f32.mrb[0].mxu0
        %v716 = vadd.f32 0.0, %v715
        %v717 = vpop.f32.mrb[0].mxu0
        %718 = vdwg.mxu0
        %719 = vrot.lane.b32.xlu0 %v552, 120
        %v720 = vpop.permute.xlu0 %719
        %721 = vrot.lane.b32.xlu0 %v549, 88
        %v722 = vpop.permute.xlu0 %721
        %v723 = vsel %vm556, %v720, 0
        %v725 = vsel %vm556, %v722, 0
        %727 = vmatprep.subr.mxu0 0.0
        %728 = vmatpush1.xpose.msra.mxu0 %v725
        %729 = vmatprep.subr.mxu0 0.0
        %730 = vmatpush1.xpose.msra.mxu0 0.0
        %731 = vmatprep.subr.mxu0 0.0
        %732 = vmatpush1.xpose.msra.mxu0 0.0
        %733 = vmatprep.subr.mxu0 0.0
        %734 = vmatpush1.xpose.msra.mxu0 0.0
        %735 = vmatprep.subr.mxu0 0.0
        %736 = vmatpush1.xpose.msra.mxu0 0.0
        %737 = vmatprep.subr.mxu0 0.0
        %738 = vmatpush1.xpose.msra.mxu0 0.0
        %739 = vmatprep.subr.mxu0 0.0
        %740 = vmatpush1.xpose.msra.mxu0 0.0
        %741 = vmatprep.subr.mxu0 0.0
        %742 = vmatpush1.xpose.msra.mxu0 0.0
        %743 = vmatprep.subr.mxu0 0.0
        %744 = vmatpush1.xpose.msra.mxu0 0.0
        %745 = vmatprep.subr.mxu0 0.0
        %746 = vmatpush1.xpose.msra.mxu0 0.0
        %747 = vmatprep.subr.mxu0 0.0
        %748 = vmatpush1.xpose.msra.mxu0 0.0
        %749 = vmatprep.subr.mxu0 0.0
        %750 = vmatpush1.xpose.msra.mxu0 0.0
        %751 = vmatprep.subr.mxu0 0.0
        %752 = vmatpush1.xpose.msra.mxu0 0.0
        %753 = vmatprep.subr.mxu0 0.0
        %754 = vmatpush1.xpose.msra.mxu0 0.0
        %755 = vmatprep.subr.mxu0 0.0
        %756 = vmatpush1.xpose.msra.mxu0 0.0
        %757 = vmatprep.subr.mxu0 0.0
        %758 = vmatpush1.xpose.msra.mxu0 0.0
        %759 = vmatprep.subr.mxu0 0.0
        %760 = vmatpush1.xpose.msra.mxu0 0.0
        %761 = vmatprep.subr.mxu0 0.0
        %762 = vmatpush1.xpose.msra.mxu0 0.0
        %763 = vmatprep.subr.mxu0 0.0
        %764 = vmatpush1.xpose.msra.mxu0 0.0
        %765 = vmatprep.subr.mxu0 0.0
        %766 = vmatpush1.xpose.msra.mxu0 0.0
        %767 = vmatprep.subr.mxu0 0.0
        %768 = vmatpush1.xpose.msra.mxu0 0.0
        %769 = vmatprep.subr.mxu0 0.0
        %770 = vmatpush1.xpose.msra.mxu0 0.0
        %771 = vmatprep.subr.mxu0 0.0
        %772 = vmatpush1.xpose.msra.mxu0 0.0
        %773 = vmatprep.subr.mxu0 0.0
        %774 = vmatpush1.xpose.msra.mxu0 0.0
        %775 = vmatprep.subr.mxu0 0.0
        %776 = vmatpush1.xpose.msra.mxu0 0.0
        %777 = vmatprep.subr.mxu0 0.0
        %778 = vmatpush1.xpose.msra.mxu0 0.0
        %779 = vmatprep.subr.mxu0 0.0
        %780 = vmatpush1.xpose.msra.mxu0 0.0
        %781 = vmatprep.subr.mxu0 0.0
        %782 = vmatpush1.xpose.msra.mxu0 0.0
        %783 = vmatprep.subr.mxu0 0.0
        %784 = vmatpush1.xpose.msra.mxu0 0.0
        %785 = vmatprep.subr.mxu0 0.0
        %786 = vmatpush1.xpose.msra.mxu0 0.0
        %787 = vmatprep.subr.mxu0 0.0
        %788 = vmatpush1.xpose.msra.mxu0 0.0
        %789 = vmatprep.subr.mxu0 0.0
        %790 = vmatpush1.xpose.msra.mxu0 0.0
        %791 = vmatprep.mubr.f32.mxu0 0.0
        %792 = vmatmul.mubr.f32.gmra.mrb[0].mxu0 %v723
        %v793 = vpop.f32.mrb[0].mxu0
        %v794 = vadd.f32 0.0, %v793
        %v795 = vpop.f32.mrb[0].mxu0
        %796 = vdwg.mxu0
        %v797 = vsel %vm556, %v794, -inf
        %798 = vmax.xlane.f32.xlu0 %v797
        %v799 = vpop.xlane.xlu0 %798
        %v800 = vsub.f32 %v794, %v799
        %v801 = vmul.f32 %v800, 1.442695
        %v802 = vpow.pop %v801
        %v803 = vsel %vm556, %v802, 0.0
        %804 = vadd.xlane.f32.xlu0 %v803
        %v805 = vpop.xlane.xlu0 %804
        %v806 = vrcp.pop %v805
        %v807 = vmul.f32 %v802, %v806
        %808 = vrot.lane.b32.xlu0 %v549, 56
        %v809 = vpop.permute.xlu0 %808
        %v812 = vsel %vm556, %v807, 0
        %814 = vmatprep.subr.mxu0 0.0
        %815 = vmatpush1.msra.mxu0 %v809
        %816 = vmatprep.subr.mxu0 0.0
        %817 = vmatpush1.msra.mxu0 0.0
        %818 = vmatprep.subr.mxu0 0.0
        %819 = vmatpush1.msra.mxu0 0.0
        %820 = vmatprep.subr.mxu0 0.0
        %821 = vmatpush1.msra.mxu0 0.0
        %822 = vmatprep.subr.mxu0 0.0
        %823 = vmatpush1.msra.mxu0 0.0
        %824 = vmatprep.subr.mxu0 0.0
        %825 = vmatpush1.msra.mxu0 0.0
        %826 = vmatprep.subr.mxu0 0.0
        %827 = vmatpush1.msra.mxu0 0.0
        %828 = vmatprep.subr.mxu0 0.0
        %829 = vmatpush1.msra.mxu0 0.0
        %830 = vmatprep.subr.mxu0 0.0
        %831 = vmatpush1.msra.mxu0 0.0
        %832 = vmatprep.subr.mxu0 0.0
        %833 = vmatpush1.msra.mxu0 0.0
        %834 = vmatprep.subr.mxu0 0.0
        %835 = vmatpush1.msra.mxu0 0.0
        %836 = vmatprep.subr.mxu0 0.0
        %837 = vmatpush1.msra.mxu0 0.0
        %838 = vmatprep.subr.mxu0 0.0
        %839 = vmatpush1.msra.mxu0 0.0
        %840 = vmatprep.subr.mxu0 0.0
        %841 = vmatpush1.msra.mxu0 0.0
        %842 = vmatprep.subr.mxu0 0.0
        %843 = vmatpush1.msra.mxu0 0.0
        %844 = vmatprep.subr.mxu0 0.0
        %845 = vmatpush1.msra.mxu0 0.0
        %846 = vmatprep.subr.mxu0 0.0
        %847 = vmatpush1.msra.mxu0 0.0
        %848 = vmatprep.subr.mxu0 0.0
        %849 = vmatpush1.msra.mxu0 0.0
        %850 = vmatprep.subr.mxu0 0.0
        %851 = vmatpush1.msra.mxu0 0.0
        %852 = vmatprep.subr.mxu0 0.0
        %853 = vmatpush1.msra.mxu0 0.0
        %854 = vmatprep.subr.mxu0 0.0
        %855 = vmatpush1.msra.mxu0 0.0
        %856 = vmatprep.subr.mxu0 0.0
        %857 = vmatpush1.msra.mxu0 0.0
        %858 = vmatprep.subr.mxu0 0.0
        %859 = vmatpush1.msra.mxu0 0.0
        %860 = vmatprep.subr.mxu0 0.0
        %861 = vmatpush1.msra.mxu0 0.0
        %862 = vmatprep.subr.mxu0 0.0
        %863 = vmatpush1.msra.mxu0 0.0
        %864 = vmatprep.subr.mxu0 0.0
        %865 = vmatpush1.msra.mxu0 0.0
        %866 = vmatprep.subr.mxu0 0.0
        %867 = vmatpush1.msra.mxu0 0.0
        %868 = vmatprep.subr.mxu0 0.0
        %869 = vmatpush1.msra.mxu0 0.0
        %870 = vmatprep.subr.mxu0 0.0
        %871 = vmatpush1.msra.mxu0 0.0
        %872 = vmatprep.subr.mxu0 0.0
        %873 = vmatpush1.msra.mxu0 0.0
        %874 = vmatprep.subr.mxu0 0.0
        %875 = vmatpush1.msra.mxu0 0.0
        %876 = vmatprep.subr.mxu0 0.0
        %877 = vmatpush1.msra.mxu0 0.0
        %878 = vmatprep.mubr.f32.mxu0 0.0
        %879 = vmatmul.mubr.f32.gmra.mrb[0].mxu0 %v812
        %v880 = vpop.f32.mrb[0].mxu0
        %v881 = vadd.f32 0.0, %v880
        %v882 = vpop.f32.mrb[0].mxu0
        %883 = vdwg.mxu0
        %884 = vrot.lane.b32.xlu0 %v552, 112
        %v885 = vpop.permute.xlu0 %884
        %886 = vrot.lane.b32.xlu0 %v549, 80
        %v887 = vpop.permute.xlu0 %886
        %v888 = vsel %vm556, %v885, 0
        %v890 = vsel %vm556, %v887, 0
        %892 = vmatprep.subr.mxu0 0.0
        %893 = vmatpush1.xpose.msra.mxu0 %v890
        %894 = vmatprep.subr.mxu0 0.0
        %895 = vmatpush1.xpose.msra.mxu0 0.0
        %896 = vmatprep.subr.mxu0 0.0
        %897 = vmatpush1.xpose.msra.mxu0 0.0
        %898 = vmatprep.subr.mxu0 0.0
        %899 = vmatpush1.xpose.msra.mxu0 0.0
        %900 = vmatprep.subr.mxu0 0.0
        %901 = vmatpush1.xpose.msra.mxu0 0.0
        %902 = vmatprep.subr.mxu0 0.0
        %903 = vmatpush1.xpose.msra.mxu0 0.0
        %904 = vmatprep.subr.mxu0 0.0
        %905 = vmatpush1.xpose.msra.mxu0 0.0
        %906 = vmatprep.subr.mxu0 0.0
        %907 = vmatpush1.xpose.msra.mxu0 0.0
        %908 = vmatprep.subr.mxu0 0.0
        %909 = vmatpush1.xpose.msra.mxu0 0.0
        %910 = vmatprep.subr.mxu0 0.0
        %911 = vmatpush1.xpose.msra.mxu0 0.0
        %912 = vmatprep.subr.mxu0 0.0
        %913 = vmatpush1.xpose.msra.mxu0 0.0
        %914 = vmatprep.subr.mxu0 0.0
        %915 = vmatpush1.xpose.msra.mxu0 0.0
        %916 = vmatprep.subr.mxu0 0.0
        %917 = vmatpush1.xpose.msra.mxu0 0.0
        %918 = vmatprep.subr.mxu0 0.0
        %919 = vmatpush1.xpose.msra.mxu0 0.0
        %920 = vmatprep.subr.mxu0 0.0
        %921 = vmatpush1.xpose.msra.mxu0 0.0
        %922 = vmatprep.subr.mxu0 0.0
        %923 = vmatpush1.xpose.msra.mxu0 0.0
        %924 = vmatprep.subr.mxu0 0.0
        %925 = vmatpush1.xpose.msra.mxu0 0.0
        %926 = vmatprep.subr.mxu0 0.0
        %927 = vmatpush1.xpose.msra.mxu0 0.0
        %928 = vmatprep.subr.mxu0 0.0
        %929 = vmatpush1.xpose.msra.mxu0 0.0
        %930 = vmatprep.subr.mxu0 0.0
        %931 = vmatpush1.xpose.msra.mxu0 0.0
        %932 = vmatprep.subr.mxu0 0.0
        %933 = vmatpush1.xpose.msra.mxu0 0.0
        %934 = vmatprep.subr.mxu0 0.0
        %935 = vmatpush1.xpose.msra.mxu0 0.0
        %936 = vmatprep.subr.mxu0 0.0
        %937 = vmatpush1.xpose.msra.mxu0 0.0
        %938 = vmatprep.subr.mxu0 0.0
        %939 = vmatpush1.xpose.msra.mxu0 0.0
        %940 = vmatprep.subr.mxu0 0.0
        %941 = vmatpush1.xpose.msra.mxu0 0.0
        %942 = vmatprep.subr.mxu0 0.0
        %943 = vmatpush1.xpose.msra.mxu0 0.0
        %944 = vmatprep.subr.mxu0 0.0
        %945 = vmatpush1.xpose.msra.mxu0 0.0
        %946 = vmatprep.subr.mxu0 0.0
        %947 = vmatpush1.xpose.msra.mxu0 0.0
        %948 = vmatprep.subr.mxu0 0.0
        %949 = vmatpush1.xpose.msra.mxu0 0.0
        %950 = vmatprep.subr.mxu0 0.0
        %951 = vmatpush1.xpose.msra.mxu0 0.0
        %952 = vmatprep.subr.mxu0 0.0
        %953 = vmatpush1.xpose.msra.mxu0 0.0
        %954 = vmatprep.subr.mxu0 0.0
        %955 = vmatpush1.xpose.msra.mxu0 0.0
        %956 = vmatprep.mubr.f32.mxu0 0.0
        %957 = vmatmul.mubr.f32.gmra.mrb[0].mxu0 %v888
        %v958 = vpop.f32.mrb[0].mxu0
        %v959 = vadd.f32 0.0, %v958
        %v960 = vpop.f32.mrb[0].mxu0
        %961 = vdwg.mxu0
        %v962 = vsel %vm556, %v959, -inf
        %963 = vmax.xlane.f32.xlu0 %v962
        %v964 = vpop.xlane.xlu0 %963
        %v965 = vsub.f32 %v959, %v964
        %v966 = vmul.f32 %v965, 1.442695
        %v967 = vpow.pop %v966
        %v968 = vsel %vm556, %v967, 0.0
        %969 = vadd.xlane.f32.xlu0 %v968
        %v970 = vpop.xlane.xlu0 %969
        %v971 = vrcp.pop %v970
        %v972 = vmul.f32 %v967, %v971
        %973 = vrot.lane.b32.xlu0 %v549, 48
        %v974 = vpop.permute.xlu0 %973
        %v977 = vsel %vm556, %v972, 0
        %979 = vmatprep.subr.mxu0 0.0
        %980 = vmatpush1.msra.mxu0 %v974
        %981 = vmatprep.subr.mxu0 0.0
        %982 = vmatpush1.msra.mxu0 0.0
        %983 = vmatprep.subr.mxu0 0.0
        %984 = vmatpush1.msra.mxu0 0.0
        %985 = vmatprep.subr.mxu0 0.0
        %986 = vmatpush1.msra.mxu0 0.0
        %987 = vmatprep.subr.mxu0 0.0
        %988 = vmatpush1.msra.mxu0 0.0
        %989 = vmatprep.subr.mxu0 0.0
        %990 = vmatpush1.msra.mxu0 0.0
        %991 = vmatprep.subr.mxu0 0.0
        %992 = vmatpush1.msra.mxu0 0.0
        %993 = vmatprep.subr.mxu0 0.0
        %994 = vmatpush1.msra.mxu0 0.0
        %995 = vmatprep.subr.mxu0 0.0
        %996 = vmatpush1.msra.mxu0 0.0
        %997 = vmatprep.subr.mxu0 0.0
        %998 = vmatpush1.msra.mxu0 0.0
        %999 = vmatprep.subr.mxu0 0.0
        %1000 = vmatpush1.msra.mxu0 0.0
        %1001 = vmatprep.subr.mxu0 0.0
        %1002 = vmatpush1.msra.mxu0 0.0
        %1003 = vmatprep.subr.mxu0 0.0
        %1004 = vmatpush1.msra.mxu0 0.0
        %1005 = vmatprep.subr.mxu0 0.0
        %1006 = vmatpush1.msra.mxu0 0.0
        %1007 = vmatprep.subr.mxu0 0.0
        %1008 = vmatpush1.msra.mxu0 0.0
        %1009 = vmatprep.subr.mxu0 0.0
        %1010 = vmatpush1.msra.mxu0 0.0
        %1011 = vmatprep.subr.mxu0 0.0
        %1012 = vmatpush1.msra.mxu0 0.0
        %1013 = vmatprep.subr.mxu0 0.0
        %1014 = vmatpush1.msra.mxu0 0.0
        %1015 = vmatprep.subr.mxu0 0.0
        %1016 = vmatpush1.msra.mxu0 0.0
        %1017 = vmatprep.subr.mxu0 0.0
        %1018 = vmatpush1.msra.mxu0 0.0
        %1019 = vmatprep.subr.mxu0 0.0
        %1020 = vmatpush1.msra.mxu0 0.0
        %1021 = vmatprep.subr.mxu0 0.0
        %1022 = vmatpush1.msra.mxu0 0.0
        %1023 = vmatprep.subr.mxu0 0.0
        %1024 = vmatpush1.msra.mxu0 0.0
        %1025 = vmatprep.subr.mxu0 0.0
        %1026 = vmatpush1.msra.mxu0 0.0
        %1027 = vmatprep.subr.mxu0 0.0
        %1028 = vmatpush1.msra.mxu0 0.0
        %1029 = vmatprep.subr.mxu0 0.0
        %1030 = vmatpush1.msra.mxu0 0.0
        %1031 = vmatprep.subr.mxu0 0.0
        %1032 = vmatpush1.msra.mxu0 0.0
        %1033 = vmatprep.subr.mxu0 0.0
        %1034 = vmatpush1.msra.mxu0 0.0
        %1035 = vmatprep.subr.mxu0 0.0
        %1036 = vmatpush1.msra.mxu0 0.0
        %1037 = vmatprep.subr.mxu0 0.0
        %1038 = vmatpush1.msra.mxu0 0.0
        %1039 = vmatprep.subr.mxu0 0.0
        %1040 = vmatpush1.msra.mxu0 0.0
        %1041 = vmatprep.subr.mxu0 0.0
        %1042 = vmatpush1.msra.mxu0 0.0
        %1043 = vmatprep.mubr.f32.mxu0 0.0
        %1044 = vmatmul.mubr.f32.gmra.mrb[0].mxu0 %v977
        %v1045 = vpop.f32.mrb[0].mxu0
        %v1046 = vadd.f32 0.0, %v1045
        %v1047 = vpop.f32.mrb[0].mxu0
        %1048 = vdwg.mxu0
        %1049 = vrot.lane.b32.xlu0 %v552, 104
        %v1050 = vpop.permute.xlu0 %1049
        %1051 = vrot.lane.b32.xlu0 %v549, 72
        %v1052 = vpop.permute.xlu0 %1051
        %v1053 = vsel %vm556, %v1050, 0
        %v1055 = vsel %vm556, %v1052, 0
        %1057 = vmatprep.subr.mxu0 0.0
        %1058 = vmatpush1.xpose.msra.mxu0 %v1055
        %1059 = vmatprep.subr.mxu0 0.0
        %1060 = vmatpush1.xpose.msra.mxu0 0.0
        %1061 = vmatprep.subr.mxu0 0.0
        %1062 = vmatpush1.xpose.msra.mxu0 0.0
        %1063 = vmatprep.subr.mxu0 0.0
        %1064 = vmatpush1.xpose.msra.mxu0 0.0
        %1065 = vmatprep.subr.mxu0 0.0
        %1066 = vmatpush1.xpose.msra.mxu0 0.0
        %1067 = vmatprep.subr.mxu0 0.0
        %1068 = vmatpush1.xpose.msra.mxu0 0.0
        %1069 = vmatprep.subr.mxu0 0.0
        %1070 = vmatpush1.xpose.msra.mxu0 0.0
        %1071 = vmatprep.subr.mxu0 0.0
        %1072 = vmatpush1.xpose.msra.mxu0 0.0
        %1073 = vmatprep.subr.mxu0 0.0
        %1074 = vmatpush1.xpose.msra.mxu0 0.0
        %1075 = vmatprep.subr.mxu0 0.0
        %1076 = vmatpush1.xpose.msra.mxu0 0.0
        %1077 = vmatprep.subr.mxu0 0.0
        %1078 = vmatpush1.xpose.msra.mxu0 0.0
        %1079 = vmatprep.subr.mxu0 0.0
        %1080 = vmatpush1.xpose.msra.mxu0 0.0
        %1081 = vmatprep.subr.mxu0 0.0
        %1082 = vmatpush1.xpose.msra.mxu0 0.0
        %1083 = vmatprep.subr.mxu0 0.0
        %1084 = vmatpush1.xpose.msra.mxu0 0.0
        %1085 = vmatprep.subr.mxu0 0.0
        %1086 = vmatpush1.xpose.msra.mxu0 0.0
        %1087 = vmatprep.subr.mxu0 0.0
        %1088 = vmatpush1.xpose.msra.mxu0 0.0
        %1089 = vmatprep.subr.mxu0 0.0
        %1090 = vmatpush1.xpose.msra.mxu0 0.0
        %1091 = vmatprep.subr.mxu0 0.0
        %1092 = vmatpush1.xpose.msra.mxu0 0.0
        %1093 = vmatprep.subr.mxu0 0.0
        %1094 = vmatpush1.xpose.msra.mxu0 0.0
        %1095 = vmatprep.subr.mxu0 0.0
        %1096 = vmatpush1.xpose.msra.mxu0 0.0
        %1097 = vmatprep.subr.mxu0 0.0
        %1098 = vmatpush1.xpose.msra.mxu0 0.0
        %1099 = vmatprep.subr.mxu0 0.0
        %1100 = vmatpush1.xpose.msra.mxu0 0.0
        %1101 = vmatprep.subr.mxu0 0.0
        %1102 = vmatpush1.xpose.msra.mxu0 0.0
        %1103 = vmatprep.subr.mxu0 0.0
        %1104 = vmatpush1.xpose.msra.mxu0 0.0
        %1105 = vmatprep.subr.mxu0 0.0
        %1106 = vmatpush1.xpose.msra.mxu0 0.0
        %1107 = vmatprep.subr.mxu0 0.0
        %1108 = vmatpush1.xpose.msra.mxu0 0.0
        %1109 = vmatprep.subr.mxu0 0.0
        %1110 = vmatpush1.xpose.msra.mxu0 0.0
        %1111 = vmatprep.subr.mxu0 0.0
        %1112 = vmatpush1.xpose.msra.mxu0 0.0
        %1113 = vmatprep.subr.mxu0 0.0
        %1114 = vmatpush1.xpose.msra.mxu0 0.0
        %1115 = vmatprep.subr.mxu0 0.0
        %1116 = vmatpush1.xpose.msra.mxu0 0.0
        %1117 = vmatprep.subr.mxu0 0.0
        %1118 = vmatpush1.xpose.msra.mxu0 0.0
        %1119 = vmatprep.subr.mxu0 0.0
        %1120 = vmatpush1.xpose.msra.mxu0 0.0
        %1121 = vmatprep.mubr.f32.mxu0 0.0
        %1122 = vmatmul.mubr.f32.gmra.mrb[0].mxu0 %v1053
        %v1123 = vpop.f32.mrb[0].mxu0
        %v1124 = vadd.f32 0.0, %v1123
        %v1125 = vpop.f32.mrb[0].mxu0
        %1126 = vdwg.mxu0
        %v1127 = vsel %vm556, %v1124, -inf
        %1128 = vmax.xlane.f32.xlu0 %v1127
        %v1129 = vpop.xlane.xlu0 %1128
        %v1130 = vsub.f32 %v1124, %v1129
        %v1131 = vmul.f32 %v1130, 1.442695
        %v1132 = vpow.pop %v1131
        %v1133 = vsel %vm556, %v1132, 0.0
        %1134 = vadd.xlane.f32.xlu0 %v1133
        %v1135 = vpop.xlane.xlu0 %1134
        %v1136 = vrcp.pop %v1135
        %v1137 = vmul.f32 %v1132, %v1136
        %1138 = vrot.lane.b32.xlu0 %v549, 40
        %v1139 = vpop.permute.xlu0 %1138
        %v1142 = vsel %vm556, %v1137, 0
        %1144 = vmatprep.subr.mxu0 0.0
        %1145 = vmatpush1.msra.mxu0 %v1139
        %1146 = vmatprep.subr.mxu0 0.0
        %1147 = vmatpush1.msra.mxu0 0.0
        %1148 = vmatprep.subr.mxu0 0.0
        %1149 = vmatpush1.msra.mxu0 0.0
        %1150 = vmatprep.subr.mxu0 0.0
        %1151 = vmatpush1.msra.mxu0 0.0
        %1152 = vmatprep.subr.mxu0 0.0
        %1153 = vmatpush1.msra.mxu0 0.0
        %1154 = vmatprep.subr.mxu0 0.0
        %1155 = vmatpush1.msra.mxu0 0.0
        %1156 = vmatprep.subr.mxu0 0.0
        %1157 = vmatpush1.msra.mxu0 0.0
        %1158 = vmatprep.subr.mxu0 0.0
        %1159 = vmatpush1.msra.mxu0 0.0
        %1160 = vmatprep.subr.mxu0 0.0
        %1161 = vmatpush1.msra.mxu0 0.0
        %1162 = vmatprep.subr.mxu0 0.0
        %1163 = vmatpush1.msra.mxu0 0.0
        %1164 = vmatprep.subr.mxu0 0.0
        %1165 = vmatpush1.msra.mxu0 0.0
        %1166 = vmatprep.subr.mxu0 0.0
        %1167 = vmatpush1.msra.mxu0 0.0
        %1168 = vmatprep.subr.mxu0 0.0
        %1169 = vmatpush1.msra.mxu0 0.0
        %1170 = vmatprep.subr.mxu0 0.0
        %1171 = vmatpush1.msra.mxu0 0.0
        %1172 = vmatprep.subr.mxu0 0.0
        %1173 = vmatpush1.msra.mxu0 0.0
        %1174 = vmatprep.subr.mxu0 0.0
        %1175 = vmatpush1.msra.mxu0 0.0
        %1176 = vmatprep.subr.mxu0 0.0
        %1177 = vmatpush1.msra.mxu0 0.0
        %1178 = vmatprep.subr.mxu0 0.0
        %1179 = vmatpush1.msra.mxu0 0.0
        %1180 = vmatprep.subr.mxu0 0.0
        %1181 = vmatpush1.msra.mxu0 0.0
        %1182 = vmatprep.subr.mxu0 0.0
        %1183 = vmatpush1.msra.mxu0 0.0
        %1184 = vmatprep.subr.mxu0 0.0
        %1185 = vmatpush1.msra.mxu0 0.0
        %1186 = vmatprep.subr.mxu0 0.0
        %1187 = vmatpush1.msra.mxu0 0.0
        %1188 = vmatprep.subr.mxu0 0.0
        %1189 = vmatpush1.msra.mxu0 0.0
        %1190 = vmatprep.subr.mxu0 0.0
        %1191 = vmatpush1.msra.mxu0 0.0
        %1192 = vmatprep.subr.mxu0 0.0
        %1193 = vmatpush1.msra.mxu0 0.0
        %1194 = vmatprep.subr.mxu0 0.0
        %1195 = vmatpush1.msra.mxu0 0.0
        %1196 = vmatprep.subr.mxu0 0.0
        %1197 = vmatpush1.msra.mxu0 0.0
        %1198 = vmatprep.subr.mxu0 0.0
        %1199 = vmatpush1.msra.mxu0 0.0
        %1200 = vmatprep.subr.mxu0 0.0
        %1201 = vmatpush1.msra.mxu0 0.0
        %1202 = vmatprep.subr.mxu0 0.0
        %1203 = vmatpush1.msra.mxu0 0.0
        %1204 = vmatprep.subr.mxu0 0.0
        %1205 = vmatpush1.msra.mxu0 0.0
        %1206 = vmatprep.subr.mxu0 0.0
        %1207 = vmatpush1.msra.mxu0 0.0
        %1208 = vmatprep.mubr.f32.mxu0 0.0
        %1209 = vmatmul.mubr.f32.gmra.mrb[0].mxu0 %v1142
        %v1210 = vpop.f32.mrb[0].mxu0
        %v1211 = vadd.f32 0.0, %v1210
        %v1212 = vpop.f32.mrb[0].mxu0
        %1213 = vdwg.mxu0
        %1215 = vrot.lane.b32.xlu0 %v881, 8
        %v1216 = vpop.permute.xlu0 %1215
        %1219 = vrot.lane.b32.xlu0 %v1046, 16
        %v1220 = vpop.permute.xlu0 %1219
        %1223 = vrot.lane.b32.xlu0 %v1211, 24
        %v1224 = vpop.permute.xlu0 %1223
        %v1226 = vsel %vm556, %v716, %v1216
        %vm1227 = vcmask 130048
        %v1228 = vsel %vm1227, %v1226, %v1220
        %vm1229 = vcmask 195584
        %v1230 = vsel %vm1229, %v1228, %v1224
        %v1231 = vld [vmem:[%s5] sm:$0xff]
        %v1232 = vld [vmem:[%s5 + $0x8] sm:$0xff]
        %v1233 = vld [vmem:[%s5 + $0x10] sm:$0xff]
        %v1234 = vld [vmem:[%s5 + $0x18] sm:$0xff]
        %v1235 = vld [vmem:[%s6] sm:$0x1]
        %v1237 = vlaneseq
        %v1238 = vshrl.u32 %v1237, 7
        %v1239 = vsub.s32 0, %v1238
        %v1240 = vrot.slane %v1235, %v1239
        %v1243 = vsel %vm439, %v1230, 0
        %1245 = vmatprep.subr.mxu0 0.0
        %1246 = vmatpush1.msra.mxu0 %v1231
        %1247 = vmatprep.subr.mxu0 0.0
        %1248 = vmatpush1.msra.mxu0 %v1232
        %1249 = vmatprep.subr.mxu0 0.0
        %1250 = vmatpush1.msra.mxu0 %v1233
        %1251 = vmatprep.subr.mxu0 0.0
        %1252 = vmatpush1.msra.mxu0 %v1234
        %1253 = vmatprep.subr.mxu0 0.0
        %1254 = vmatpush1.msra.mxu0 0.0
        %1255 = vmatprep.subr.mxu0 0.0
        %1256 = vmatpush1.msra.mxu0 0.0
        %1257 = vmatprep.subr.mxu0 0.0
        %1258 = vmatpush1.msra.mxu0 0.0
        %1259 = vmatprep.subr.mxu0 0.0
        %1260 = vmatpush1.msra.mxu0 0.0
        %1261 = vmatprep.subr.mxu0 0.0
        %1262 = vmatpush1.msra.mxu0 0.0
        %1263 = vmatprep.subr.mxu0 0.0
        %1264 = vmatpush1.msra.mxu0 0.0
        %1265 = vmatprep.subr.mxu0 0.0
        %1266 = vmatpush1.msra.mxu0 0.0
        %1267 = vmatprep.subr.mxu0 0.0
        %1268 = vmatpush1.msra.mxu0 0.0
        %1269 = vmatprep.subr.mxu0 0.0
        %1270 = vmatpush1.msra.mxu0 0.0
        %1271 = vmatprep.subr.mxu0 0.0
        %1272 = vmatpush1.msra.mxu0 0.0
        %1273 = vmatprep.subr.mxu0 0.0
        %1274 = vmatpush1.msra.mxu0 0.0
        %1275 = vmatprep.subr.mxu0 0.0
        %1276 = vmatpush1.msra.mxu0 0.0
        %1277 = vmatprep.subr.mxu0 0.0
        %1278 = vmatpush1.msra.mxu0 0.0
        %1279 = vmatprep.subr.mxu0 0.0
        %1280 = vmatpush1.msra.mxu0 0.0
        %1281 = vmatprep.subr.mxu0 0.0
        %1282 = vmatpush1.msra.mxu0 0.0
        %1283 = vmatprep.subr.mxu0 0.0
        %1284 = vmatpush1.msra.mxu0 0.0
        %1285 = vmatprep.subr.mxu0 0.0
        %1286 = vmatpush1.msra.mxu0 0.0
        %1287 = vmatprep.subr.mxu0 0.0
        %1288 = vmatpush1.msra.mxu0 0.0
        %1289 = vmatprep.subr.mxu0 0.0
        %1290 = vmatpush1.msra.mxu0 0.0
        %1291 = vmatprep.subr.mxu0 0.0
        %1292 = vmatpush1.msra.mxu0 0.0
        %1293 = vmatprep.subr.mxu0 0.0
        %1294 = vmatpush1.msra.mxu0 0.0
        %1295 = vmatprep.subr.mxu0 0.0
        %1296 = vmatpush1.msra.mxu0 0.0
        %1297 = vmatprep.subr.mxu0 0.0
        %1298 = vmatpush1.msra.mxu0 0.0
        %1299 = vmatprep.subr.mxu0 0.0
        %1300 = vmatpush1.msra.mxu0 0.0
        %1301 = vmatprep.subr.mxu0 0.0
        %1302 = vmatpush1.msra.mxu0 0.0
        %1303 = vmatprep.subr.mxu0 0.0
        %1304 = vmatpush1.msra.mxu0 0.0
        %1305 = vmatprep.subr.mxu0 0.0
        %1306 = vmatpush1.msra.mxu0 0.0
        %1307 = vmatprep.subr.mxu0 0.0
        %1308 = vmatpush1.msra.mxu0 0.0
        %1309 = vmatprep.mubr.f32.mxu0 0.0
        %1310 = vmatmul.mubr.f32.gmra.mrb[0].mxu0 %v1243
        %v1311 = vpop.f32.mrb[0].mxu0
        %v1312 = vadd.f32 %v1240, %v1311
        %v1313 = vpop.f32.mrb[0].mxu0
        %1314 = vdwg.mxu0
        %v1315 = vadd.f32 %v436, %v1312
        %v1316 = vld [vmem:[%s7] sm:$0x1]
        %v1317 = vld [vmem:[%s8] sm:$0x1]
        %v1318 = vsel %vm439, %v1315, 0.0
        %1319 = vadd.xlane.f32.xlu0 %v1318
        %v1320 = vpop.xlane.xlu0 %1319
        %v1321 = vmul.f32 %v1320, %v443
        %v1322 = vsub.f32 %v1315, %v1321
        %v1323 = vmul.f32 %v1322, %v1322
        %v1324 = vsel %vm439, %v1323, 0.0
        %1325 = vadd.xlane.f32.xlu0 %v1324
        %v1326 = vpop.xlane.xlu0 %1325
        %v1327 = vmul.f32 %v1326, %v443
        %v1328 = vadd.f32 %v1327, 1e-05
        %v1329 = vrsqrt.pop %v1328
        %v1330 = vmul.f32 %v1322, %v1329
        %v1332 = vlaneseq
        %v1333 = vshrl.u32 %v1332, 7
        %v1334 = vsub.s32 0, %v1333
        %v1335 = vrot.slane %v1316, %v1334
        %v1337 = vmul.f32 %v1330, %v1335
        %v1339 = vlaneseq
        %v1340 = vshrl.u32 %v1339, 7
        %v1341 = vsub.s32 0, %v1340
        %v1342 = vrot.slane %v1317, %v1341
        %v1344 = vadd.f32 %v1337, %v1342
        %v1345 = vld [vmem:[%s9] sm:$0xff]
        %v1346 = vld [vmem:[%s9 + $0x8] sm:$0xff]
        %v1347 = vld [vmem:[%s9 + $0x10] sm:$0xff]
        %v1348 = vld [vmem:[%s9 + $0x18] sm:$0xff]
        %v1349 = vld [vmem:[%s10] sm:$0x1]
        %v1351 = vlaneseq
        %v1352 = vshrl.u32 %v1351, 7
        %v1353 = vsub.s32 0, %v1352
        %v1354 = vrot.slane %v1349, %v1353
        %v1357 = vsel %vm439, %v1344, 0
        %1359 = vmatprep.subr.mxu0 0.0
        %1360 = vmatpush1.msra.mxu0 %v1345
        %1361 = vmatprep.subr.mxu0 0.0
        %1362 = vmatpush1.msra.mxu0 %v1346
        %1363 = vmatprep.subr.mxu0 0.0
        %1364 = vmatpush1.msra.mxu0 %v1347
        %1365 = vmatprep.subr.mxu0 0.0
        %1366 = vmatpush1.msra.mxu0 %v1348
        %1367 = vmatprep.subr.mxu0 0.0
        %1368 = vmatpush1.msra.mxu0 0.0
        %1369 = vmatprep.subr.mxu0 0.0
        %1370 = vmatpush1.msra.mxu0 0.0
        %1371 = vmatprep.subr.mxu0 0.0
        %1372 = vmatpush1.msra.mxu0 0.0
        %1373 = vmatprep.subr.mxu0 0.0
        %1374 = vmatpush1.msra.mxu0 0.0
        %1375 = vmatprep.subr.mxu0 0.0
        %1376 = vmatpush1.msra.mxu0 0.0
        %1377 = vmatprep.subr.mxu0 0.0
        %1378 = vmatpush1.msra.mxu0 0.0
        %1379 = vmatprep.subr.mxu0 0.0
        %1380 = vmatpush1.msra.mxu0 0.0
        %1381 = vmatprep.subr.mxu0 0.0
        %1382 = vmatpush1.msra.mxu0 0.0
        %1383 = vmatprep.subr.mxu0 0.0
        %1384 = vmatpush1.msra.mxu0 0.0
        %1385 = vmatprep.subr.mxu0 0.0
        %1386 = vmatpush1.msra.mxu0 0.0
        %1387 = vmatprep.subr.mxu0 0.0
        %1388 = vmatpush1.msra.mxu0 0.0
        %1389 = vmatprep.subr.mxu0 0.0
        %1390 = vmatpush1.msra.mxu0 0.0
        %1391 = vmatprep.subr.mxu0 0.0
        %1392 = vmatpush1.msra.mxu0 0.0
        %1393 = vmatprep.subr.mxu0 0.0
        %1394 = vmatpush1.msra.mxu0 0.0
        %1395 = vmatprep.subr.mxu0 0.0
        %1396 = vmatpush1.msra.mxu0 0.0
        %1397 = vmatprep.subr.mxu0 0.0
        %1398 = vmatpush1.msra.mxu0 0.0
        %1399 = vmatprep.subr.mxu0 0.0
        %1400 = vmatpush1.msra.mxu0 0.0
        %1401 = vmatprep.subr.mxu0 0.0
        %1402 = vmatpush1.msra.mxu0 0.0
        %1403 = vmatprep.subr.mxu0 0.0
        %1404 = vmatpush1.msra.mxu0 0.0
        %1405 = vmatprep.subr.mxu0 0.0
        %1406 = vmatpush1.msra.mxu0 0.0
        %1407 = vmatprep.subr.mxu0 0.0
        %1408 = vmatpush1.msra.mxu0 0.0
        %1409 = vmatprep.subr.mxu0 0.0
        %1410 = vmatpush1.msra.mxu0 0.0
        %1411 = vmatprep.subr.mxu0 0.0
        %1412 = vmatpush1.msra.mxu0 0.0
        %1413 = vmatprep.subr.mxu0 0.0
        %1414 = vmatpush1.msra.mxu0 0.0
        %1415 = vmatprep.subr.mxu0 0.0
        %1416 = vmatpush1.msra.mxu0 0.0
        %1417 = vmatprep.subr.mxu0 0.0
        %1418 = vmatpush1.msra.mxu0 0.0
        %1419 = vmatprep.subr.mxu0 0.0
        %1420 = vmatpush1.msra.mxu0 0.0
        %1421 = vmatprep.subr.mxu0 0.0
        %1422 = vmatpush1.msra.mxu0 0.0
        %1423 = vmatprep.mubr.f32.mxu0 0.0
        %1424 = vmatmul.mubr.f32.gmra.mrb[0].mxu0 %v1357
        %v1425 = vpop.f32.mrb[0].mxu0
        %v1426 = vadd.f32 %v1354, %v1425
        %v1427 = vpop.f32.mrb[0].mxu0
        %1428 = vdwg.mxu0
        %v1429 = vmax.f32 %v1426, 0.0
        %v1430 = vld [vmem:[%s11] sm:$0xff]
        %v1431 = vld [vmem:[%s11 + $0x8] sm:$0xff]
        %v1432 = vld [vmem:[%s11 + $0x10] sm:$0xff]
        %v1433 = vld [vmem:[%s11 + $0x18] sm:$0xff]
        %v1434 = vld [vmem:[%s11 + $0x20] sm:$0xff]
        %v1435 = vld [vmem:[%s11 + $0x28] sm:$0xff]
        %v1436 = vld [vmem:[%s11 + $0x30] sm:$0xff]
        %v1437 = vld [vmem:[%s11 + $0x38] sm:$0xff]
        %v1438 = vld [vmem:[%s11 + $0x40] sm:$0xff]
        %v1439 = vld [vmem:[%s11 + $0x48] sm:$0xff]
        %v1440 = vld [vmem:[%s11 + $0x50] sm:$0xff]
        %v1441 = vld [vmem:[%s11 + $0x58] sm:$0xff]
        %v1442 = vld [vmem:[%s11 + $0x60] sm:$0xff]
        %v1443 = vld [vmem:[%s11 + $0x68] sm:$0xff]
        %v1444 = vld [vmem:[%s11 + $0x70] sm:$0xff]
        %v1445 = vld [vmem:[%s11 + $0x78] sm:$0xff]
        %v1446 = vld [vmem:[%s12] sm:$0x1]
        %v1448 = vlaneseq
        %v1449 = vshrl.u32 %v1448, 7
        %v1450 = vsub.s32 0, %v1449
        %v1451 = vrot.slane %v1446, %v1450
        %1453 = vmatprep.subr.mxu0 0.0
        %1454 = vmatpush1.msra.mxu0 %v1430
        %1455 = vmatprep.subr.mxu0 0.0
        %1456 = vmatpush1.msra.mxu0 %v1431
        %1457 = vmatprep.subr.mxu0 0.0
        %1458 = vmatpush1.msra.mxu0 %v1432
        %1459 = vmatprep.subr.mxu0 0.0
        %1460 = vmatpush1.msra.mxu0 %v1433
        %1461 = vmatprep.subr.mxu0 0.0
        %1462 = vmatpush1.msra.mxu0 %v1434
        %1463 = vmatprep.subr.mxu0 0.0
        %1464 = vmatpush1.msra.mxu0 %v1435
        %1465 = vmatprep.subr.mxu0 0.0
        %1466 = vmatpush1.msra.mxu0 %v1436
        %1467 = vmatprep.subr.mxu0 0.0
        %1468 = vmatpush1.msra.mxu0 %v1437
        %1469 = vmatprep.subr.mxu0 0.0
        %1470 = vmatpush1.msra.mxu0 %v1438
        %1471 = vmatprep.subr.mxu0 0.0
        %1472 = vmatpush1.msra.mxu0 %v1439
        %1473 = vmatprep.subr.mxu0 0.0
        %1474 = vmatpush1.msra.mxu0 %v1440
        %1475 = vmatprep.subr.mxu0 0.0
        %1476 = vmatpush1.msra.mxu0 %v1441
        %1477 = vmatprep.subr.mxu0 0.0
        %1478 = vmatpush1.msra.mxu0 %v1442
        %1479 = vmatprep.subr.mxu0 0.0
        %1480 = vmatpush1.msra.mxu0 %v1443
        %1481 = vmatprep.subr.mxu0 0.0
        %1482 = vmatpush1.msra.mxu0 %v1444
        %1483 = vmatprep.subr.mxu0 0.0
        %1484 = vmatpush1.msra.mxu0 %v1445
        %1485 = vmatprep.subr.mxu0 0.0
        %1486 = vmatpush1.msra.mxu0 0.0
        %1487 = vmatprep.subr.mxu0 0.0
        %1488 = vmatpush1.msra.mxu0 0.0
        %1489 = vmatprep.subr.mxu0 0.0
        %1490 = vmatpush1.msra.mxu0 0.0
        %1491 = vmatprep.subr.mxu0 0.0
        %1492 = vmatpush1.msra.mxu0 0.0
        %1493 = vmatprep.subr.mxu0 0.0
        %1494 = vmatpush1.msra.mxu0 0.0
        %1495 = vmatprep.subr.mxu0 0.0
        %1496 = vmatpush1.msra.mxu0 0.0
        %1497 = vmatprep.subr.mxu0 0.0
        %1498 = vmatpush1.msra.mxu0 0.0
        %1499 = vmatprep.subr.mxu0 0.0
        %1500 = vmatpush1.msra.mxu0 0.0
        %1501 = vmatprep.subr.mxu0 0.0
        %1502 = vmatpush1.msra.mxu0 0.0
        %1503 = vmatprep.subr.mxu0 0.0
        %1504 = vmatpush1.msra.mxu0 0.0
        %1505 = vmatprep.subr.mxu0 0.0
        %1506 = vmatpush1.msra.mxu0 0.0
        %1507 = vmatprep.subr.mxu0 0.0
        %1508 = vmatpush1.msra.mxu0 0.0
        %1509 = vmatprep.subr.mxu0 0.0
        %1510 = vmatpush1.msra.mxu0 0.0
        %1511 = vmatprep.subr.mxu0 0.0
        %1512 = vmatpush1.msra.mxu0 0.0
        %1513 = vmatprep.subr.mxu0 0.0
        %1514 = vmatpush1.msra.mxu0 0.0
        %1515 = vmatprep.subr.mxu0 0.0
        %1516 = vmatpush1.msra.mxu0 0.0
        %1517 = vmatprep.mubr.f32.mxu0 0.0
        %1518 = vmatmul.mubr.f32.gmra.mrb[0].mxu0 %v1429
        %v1519 = vpop.f32.mrb[0].mxu0
        %v1520 = vadd.f32 %v1451, %v1519
        %v1521 = vpop.f32.mrb[0].mxu0
        %1522 = vdwg.mxu0
        %v1523 = vadd.f32 %v1315, %v1520
        %s1524 = scalar_lea.vmem %s1, 1
        %v1525 = vld [vmem:[%s1524] sm:$0x1]
        %s1526 = scalar_lea.vmem %s2, 1
        %v1527 = vld [vmem:[%s1526] sm:$0x1]
        %v1528 = vsel %vm439, %v1523, 0.0
        %1529 = vadd.xlane.f32.xlu0 %v1528
        %v1530 = vpop.xlane.xlu0 %1529
        %v1531 = vmul.f32 %v1530, %v443
        %v1532 = vsub.f32 %v1523, %v1531
        %v1533 = vmul.f32 %v1532, %v1532
        %v1534 = vsel %vm439, %v1533, 0.0
        %1535 = vadd.xlane.f32.xlu0 %v1534
        %v1536 = vpop.xlane.xlu0 %1535
        %v1537 = vmul.f32 %v1536, %v443
        %v1538 = vadd.f32 %v1537, 1e-05
        %v1539 = vrsqrt.pop %v1538
        %v1540 = vmul.f32 %v1532, %v1539
        %v1542 = vlaneseq
        %v1543 = vshrl.u32 %v1542, 7
        %v1544 = vsub.s32 0, %v1543
        %v1545 = vrot.slane %v1525, %v1544
        %v1547 = vmul.f32 %v1540, %v1545
        %v1549 = vlaneseq
        %v1550 = vshrl.u32 %v1549, 7
        %v1551 = vsub.s32 0, %v1550
        %v1552 = vrot.slane %v1527, %v1551
        %v1554 = vadd.f32 %v1547, %v1552
        %s1555 = scalar_lea.vmem %s3, 32
        %v1556 = vld [vmem:[%s1555] sm:$0xff]
        %v1557 = vld [vmem:[%s1555 + $0x8] sm:$0xff]
        %v1558 = vld [vmem:[%s1555 + $0x10] sm:$0xff]
        %v1559 = vld [vmem:[%s1555 + $0x18] sm:$0xff]
        %s1560 = scalar_lea.vmem %s4, 1
        %v1561 = vld [vmem:[%s1560] sm:$0x1]
        %v1563 = vlaneseq
        %v1564 = vshrl.u32 %v1563, 7
        %v1565 = vsub.s32 0, %v1564
        %v1566 = vrot.slane %v1561, %v1565
        %v1569 = vsel %vm439, %v1554, 0
        %1571 = vmatprep.subr.mxu0 0.0
        %1572 = vmatpush1.msra.mxu0 %v1556
        %1573 = vmatprep.subr.mxu0 0.0
        %1574 = vmatpush1.msra.mxu0 %v1557
        %1575 = vmatprep.subr.mxu0 0.0
        %1576 = vmatpush1.msra.mxu0 %v1558
        %1577 = vmatprep.subr.mxu0 0.0
        %1578 = vmatpush1.msra.mxu0 %v1559
        %1579 = vmatprep.subr.mxu0 0.0
        %1580 = vmatpush1.msra.mxu0 0.0
        %1581 = vmatprep.subr.mxu0 0.0
        %1582 = vmatpush1.msra.mxu0 0.0
        %1583 = vmatprep.subr.mxu0 0.0
        %1584 = vmatpush1.msra.mxu0 0.0
        %1585 = vmatprep.subr.mxu0 0.0
        %1586 = vmatpush1.msra.mxu0 0.0
        %1587 = vmatprep.subr.mxu0 0.0
        %1588 = vmatpush1.msra.mxu0 0.0
        %1589 = vmatprep.subr.mxu0 0.0
        %1590 = vmatpush1.msra.mxu0 0.0
        %1591 = vmatprep.subr.mxu0 0.0
        %1592 = vmatpush1.msra.mxu0 0.0
        %1593 = vmatprep.subr.mxu0 0.0
        %1594 = vmatpush1.msra.mxu0 0.0
        %1595 = vmatprep.subr.mxu0 0.0
        %1596 = vmatpush1.msra.mxu0 0.0
        %1597 = vmatprep.subr.mxu0 0.0
        %1598 = vmatpush1.msra.mxu0 0.0
        %1599 = vmatprep.subr.mxu0 0.0
        %1600 = vmatpush1.msra.mxu0 0.0
        %1601 = vmatprep.subr.mxu0 0.0
        %1602 = vmatpush1.msra.mxu0 0.0
        %1603 = vmatprep.subr.mxu0 0.0
        %1604 = vmatpush1.msra.mxu0 0.0
        %1605 = vmatprep.subr.mxu0 0.0
        %1606 = vmatpush1.msra.mxu0 0.0
        %1607 = vmatprep.subr.mxu0 0.0
        %1608 = vmatpush1.msra.mxu0 0.0
        %1609 = vmatprep.subr.mxu0 0.0
        %1610 = vmatpush1.msra.mxu0 0.0
        %1611 = vmatprep.subr.mxu0 0.0
        %1612 = vmatpush1.msra.mxu0 0.0
        %1613 = vmatprep.subr.mxu0 0.0
        %1614 = vmatpush1.msra.mxu0 0.0
        %1615 = vmatprep.subr.mxu0 0.0
        %1616 = vmatpush1.msra.mxu0 0.0
        %1617 = vmatprep.subr.mxu0 0.0
        %1618 = vmatpush1.msra.mxu0 0.0
        %1619 = vmatprep.subr.mxu0 0.0
        %1620 = vmatpush1.msra.mxu0 0.0
        %1621 = vmatprep.subr.mxu0 0.0
        %1622 = vmatpush1.msra.mxu0 0.0
        %1623 = vmatprep.subr.mxu0 0.0
        %1624 = vmatpush1.msra.mxu0 0.0
        %1625 = vmatprep.subr.mxu0 0.0
        %1626 = vmatpush1.msra.mxu0 0.0
        %1627 = vmatprep.subr.mxu0 0.0
        %1628 = vmatpush1.msra.mxu0 0.0
        %1629 = vmatprep.subr.mxu0 0.0
        %1630 = vmatpush1.msra.mxu0 0.0
        %1631 = vmatprep.subr.mxu0 0.0
        %1632 = vmatpush1.msra.mxu0 0.0
        %1633 = vmatprep.subr.mxu0 0.0
        %1634 = vmatpush1.msra.mxu0 0.0
        %1635 = vmatprep.mubr.f32.mxu0 0.0
        %1636 = vmatmul.mubr.f32.gmra.mrb[0].mxu0 %v1569
        %v1637 = vpop.f32.mrb[0].mxu0
        %v1638 = vadd.f32 %v1566, %v1637
        %v1639 = vpop.f32.mrb[0].mxu0
        %1640 = vdwg.mxu0
        %v1641 = vmul.f32 %v1638, 0.35355338
        %1643 = vrot.lane.b32.xlu0 %v1638, 96
        %v1644 = vpop.permute.xlu0 %1643
        %v1646 = vsel %vm556, %v1641, 0
        %v1648 = vsel %vm556, %v1644, 0
        %1650 = vmatprep.subr.mxu0 0.0
        %1651 = vmatpush1.xpose.msra.mxu0 %v1648
        %1652 = vmatprep.subr.mxu0 0.0
        %1653 = vmatpush1.xpose.msra.mxu0 0.0
        %1654 = vmatprep.subr.mxu0 0.0
        %1655 = vmatpush1.xpose.msra.mxu0 0.0
        %1656 = vmatprep.subr.mxu0 0.0
        %1657 = vmatpush1.xpose.msra.mxu0 0.0
        %1658 = vmatprep.subr.mxu0 0.0
        %1659 = vmatpush1.xpose.msra.mxu0 0.0
        %1660 = vmatprep.subr.mxu0 0.0
        %1661 = vmatpush1.xpose.msra.mxu0 0.0
        %1662 = vmatprep.subr.mxu0 0.0
        %1663 = vmatpush1.xpose.msra.mxu0 0.0
        %1664 = vmatprep.subr.mxu0 0.0
        %1665 = vmatpush1.xpose.msra.mxu0 0.0
        %1666 = vmatprep.subr.mxu0 0.0
        %1667 = vmatpush1.xpose.msra.mxu0 0.0
        %1668 = vmatprep.subr.mxu0 0.0
        %1669 = vmatpush1.xpose.msra.mxu0 0.0
        %1670 = vmatprep.subr.mxu0 0.0
        %1671 = vmatpush1.xpose.msra.mxu0 0.0
        %1672 = vmatprep.subr.mxu0 0.0
        %1673 = vmatpush1.xpose.msra.mxu0 0.0
        %1674 = vmatprep.subr.mxu0 0.0
        %1675 = vmatpush1.xpose.msra.mxu0 0.0
        %1676 = vmatprep.subr.mxu0 0.0
        %1677 = vmatpush1.xpose.msra.mxu0 0.0
        %1678 = vmatprep.subr.mxu0 0.0
        %1679 = vmatpush1.xpose.msra.mxu0 0.0
        %1680 = vmatprep.subr.mxu0 0.0
        %1681 = vmatpush1.xpose.msra.mxu0 0.0
        %1682 = vmatprep.subr.mxu0 0.0
        %1683 = vmatpush1.xpose.msra.mxu0 0.0
        %1684 = vmatprep.subr.mxu0 0.0
        %1685 = vmatpush1.xpose.msra.mxu0 0.0
        %1686 = vmatprep.subr.mxu0 0.0
        %1687 = vmatpush1.xpose.msra.mxu0 0.0
        %1688 = vmatprep.subr.mxu0 0.0
        %1689 = vmatpush1.xpose.msra.mxu0 0.0
        %1690 = vmatprep.subr.mxu0 0.0
        %1691 = vmatpush1.xpose.msra.mxu0 0.0
        %1692 = vmatprep.subr.mxu0 0.0
        %1693 = vmatpush1.xpose.msra.mxu0 0.0
        %1694 = vmatprep.subr.mxu0 0.0
        %1695 = vmatpush1.xpose.msra.mxu0 0.0
        %1696 = vmatprep.subr.mxu0 0.0
        %1697 = vmatpush1.xpose.msra.mxu0 0.0
        %1698 = vmatprep.subr.mxu0 0.0
        %1699 = vmatpush1.xpose.msra.mxu0 0.0
        %1700 = vmatprep.subr.mxu0 0.0
        %1701 = vmatpush1.xpose.msra.mxu0 0.0
        %1702 = vmatprep.subr.mxu0 0.0
        %1703 = vmatpush1.xpose.msra.mxu0 0.0
        %1704 = vmatprep.subr.mxu0 0.0
        %1705 = vmatpush1.xpose.msra.mxu0 0.0
        %1706 = vmatprep.subr.mxu0 0.0
        %1707 = vmatpush1.xpose.msra.mxu0 0.0
        %1708 = vmatprep.subr.mxu0 0.0
        %1709 = vmatpush1.xpose.msra.mxu0 0.0
        %1710 = vmatprep.subr.mxu0 0.0
        %1711 = vmatpush1.xpose.msra.mxu0 0.0
        %1712 = vmatprep.subr.mxu0 0.0
        %1713 = vmatpush1.xpose.msra.mxu0 0.0
        %1714 = vmatprep.mubr.f32.mxu0 0.0
        %1715 = vmatmul.mubr.f32.gmra.mrb[0].mxu0 %v1646
        %v1716 = vpop.f32.mrb[0].mxu0
        %v1717 = vadd.f32 0.0, %v1716
        %v1718 = vpop.f32.mrb[0].mxu0
        %1719 = vdwg.mxu0
        %v1720 = vsel %vm556, %v1717, -inf
        %1721 = vmax.xlane.f32.xlu0 %v1720
        %v1722 = vpop.xlane.xlu0 %1721
        %v1723 = vsub.f32 %v1717, %v1722
        %v1724 = vmul.f32 %v1723, 1.442695
        %v1725 = vpow.pop %v1724
        %v1726 = vsel %vm556, %v1725, 0.0
        %1727 = vadd.xlane.f32.xlu0 %v1726
        %v1728 = vpop.xlane.xlu0 %1727
        %v1729 = vrcp.pop %v1728
        %v1730 = vmul.f32 %v1725, %v1729
        %1731 = vrot.lane.b32.xlu0 %v1638, 64
        %v1732 = vpop.permute.xlu0 %1731
        %v1735 = vsel %vm556, %v1730, 0
        %1737 = vmatprep.subr.mxu0 0.0
        %1738 = vmatpush1.msra.mxu0 %v1732
        %1739 = vmatprep.subr.mxu0 0.0
        %1740 = vmatpush1.msra.mxu0 0.0
        %1741 = vmatprep.subr.mxu0 0.0
        %1742 = vmatpush1.msra.mxu0 0.0
        %1743 = vmatprep.subr.mxu0 0.0
        %1744 = vmatpush1.msra.mxu0 0.0
        %1745 = vmatprep.subr.mxu0 0.0
        %1746 = vmatpush1.msra.mxu0 0.0
        %1747 = vmatprep.subr.mxu0 0.0
        %1748 = vmatpush1.msra.mxu0 0.0
        %1749 = vmatprep.subr.mxu0 0.0
        %1750 = vmatpush1.msra.mxu0 0.0
        %1751 = vmatprep.subr.mxu0 0.0
        %1752 = vmatpush1.msra.mxu0 0.0
        %1753 = vmatprep.subr.mxu0 0.0
        %1754 = vmatpush1.msra.mxu0 0.0
        %1755 = vmatprep.subr.mxu0 0.0
        %1756 = vmatpush1.msra.mxu0 0.0
        %1757 = vmatprep.subr.mxu0 0.0
        %1758 = vmatpush1.msra.mxu0 0.0
        %1759 = vmatprep.subr.mxu0 0.0
        %1760 = vmatpush1.msra.mxu0 0.0
        %1761 = vmatprep.subr.mxu0 0.0
        %1762 = vmatpush1.msra.mxu0 0.0
        %1763 = vmatprep.subr.mxu0 0.0
        %1764 = vmatpush1.msra.mxu0 0.0
        %1765 = vmatprep.subr.mxu0 0.0
        %1766 = vmatpush1.msra.mxu0 0.0
        %1767 = vmatprep.subr.mxu0 0.0
        %1768 = vmatpush1.msra.mxu0 0.0
        %1769 = vmatprep.subr.mxu0 0.0
        %1770 = vmatpush1.msra.mxu0 0.0
        %1771 = vmatprep.subr.mxu0 0.0
        %1772 = vmatpush1.msra.mxu0 0.0
        %1773 = vmatprep.subr.mxu0 0.0
        %1774 = vmatpush1.msra.mxu0 0.0
        %1775 = vmatprep.subr.mxu0 0.0
        %1776 = vmatpush1.msra.mxu0 0.0
        %1777 = vmatprep.subr.mxu0 0.0
        %1778 = vmatpush1.msra.mxu0 0.0
        %1779 = vmatprep.subr.mxu0 0.0
        %1780 = vmatpush1.msra.mxu0 0.0
        %1781 = vmatprep.subr.mxu0 0.0
        %1782 = vmatpush1.msra.mxu0 0.0
        %1783 = vmatprep.subr.mxu0 0.0
        %1784 = vmatpush1.msra.mxu0 0.0
        %1785 = vmatprep.subr.mxu0 0.0
        %1786 = vmatpush1.msra.mxu0 0.0
        %1787 = vmatprep.subr.mxu0 0.0
        %1788 = vmatpush1.msra.mxu0 0.0
        %1789 = vmatprep.subr.mxu0 0.0
        %1790 = vmatpush1.msra.mxu0 0.0
        %1791 = vmatprep.subr.mxu0 0.0
        %1792 = vmatpush1.msra.mxu0 0.0
        %1793 = vmatprep.subr.mxu0 0.0
        %1794 = vmatpush1.msra.mxu0 0.0
        %1795 = vmatprep.subr.mxu0 0.0
        %1796 = vmatpush1.msra.mxu0 0.0
        %1797 = vmatprep.subr.mxu0 0.0
        %1798 = vmatpush1.msra.mxu0 0.0
        %1799 = vmatprep.subr.mxu0 0.0
        %1800 = vmatpush1.msra.mxu0 0.0
        %1801 = vmatprep.mubr.f32.mxu0 0.0
        %1802 = vmatmul.mubr.f32.gmra.mrb[0].mxu0 %v1735
        %v1803 = vpop.f32.mrb[0].mxu0
        %v1804 = vadd.f32 0.0, %v1803
        %v1805 = vpop.f32.mrb[0].mxu0
        %1806 = vdwg.mxu0
        %1807 = vrot.lane.b32.xlu0 %v1641, 120
        %v1808 = vpop.permute.xlu0 %1807
        %1809 = vrot.lane.b32.xlu0 %v1638, 88
        %v1810 = vpop.permute.xlu0 %1809
        %v1811 = vsel %vm556, %v1808, 0
        %v1813 = vsel %vm556, %v1810, 0
        %1815 = vmatprep.subr.mxu0 0.0
        %1816 = vmatpush1.xpose.msra.mxu0 %v1813
        %1817 = vmatprep.subr.mxu0 0.0
        %1818 = vmatpush1.xpose.msra.mxu0 0.0
        %1819 = vmatprep.subr.mxu0 0.0
        %1820 = vmatpush1.xpose.msra.mxu0 0.0
        %1821 = vmatprep.subr.mxu0 0.0
        %1822 = vmatpush1.xpose.msra.mxu0 0.0
        %1823 = vmatprep.subr.mxu0 0.0
        %1824 = vmatpush1.xpose.msra.mxu0 0.0
        %1825 = vmatprep.subr.mxu0 0.0
        %1826 = vmatpush1.xpose.msra.mxu0 0.0
        %1827 = vmatprep.subr.mxu0 0.0
        %1828 = vmatpush1.xpose.msra.mxu0 0.0
        %1829 = vmatprep.subr.mxu0 0.0
        %1830 = vmatpush1.xpose.msra.mxu0 0.0
        %1831 = vmatprep.subr.mxu0 0.0
        %1832 = vmatpush1.xpose.msra.mxu0 0.0
        %1833 = vmatprep.subr.mxu0 0.0
        %1834 = vmatpush1.xpose.msra.mxu0 0.0
        %1835 = vmatprep.subr.mxu0 0.0
        %1836 = vmatpush1.xpose.msra.mxu0 0.0
        %1837 = vmatprep.subr.mxu0 0.0
        %1838 = vmatpush1.xpose.msra.mxu0 0.0
        %1839 = vmatprep.subr.mxu0 0.0
        %1840 = vmatpush1.xpose.msra.mxu0 0.0
        %1841 = vmatprep.subr.mxu0 0.0
        %1842 = vmatpush1.xpose.msra.mxu0 0.0
        %1843 = vmatprep.subr.mxu0 0.0
        %1844 = vmatpush1.xpose.msra.mxu0 0.0
        %1845 = vmatprep.subr.mxu0 0.0
        %1846 = vmatpush1.xpose.msra.mxu0 0.0
        %1847 = vmatprep.subr.mxu0 0.0
        %1848 = vmatpush1.xpose.msra.mxu0 0.0
        %1849 = vmatprep.subr.mxu0 0.0
        %1850 = vmatpush1.xpose.msra.mxu0 0.0
        %1851 = vmatprep.subr.mxu0 0.0
        %1852 = vmatpush1.xpose.msra.mxu0 0.0
        %1853 = vmatprep.subr.mxu0 0.0
        %1854 = vmatpush1.xpose.msra.mxu0 0.0
        %1855 = vmatprep.subr.mxu0 0.0
        %1856 = vmatpush1.xpose.msra.mxu0 0.0
        %1857 = vmatprep.subr.mxu0 0.0
        %1858 = vmatpush1.xpose.msra.mxu0 0.0
        %1859 = vmatprep.subr.mxu0 0.0
        %1860 = vmatpush1.xpose.msra.mxu0 0.0
        %1861 = vmatprep.subr.mxu0 0.0
        %1862 = vmatpush1.xpose.msra.mxu0 0.0
        %1863 = vmatprep.subr.mxu0 0.0
        %1864 = vmatpush1.xpose.msra.mxu0 0.0
        %1865 = vmatprep.subr.mxu0 0.0
        %1866 = vmatpush1.xpose.msra.mxu0 0.0
        %1867 = vmatprep.subr.mxu0 0.0
        %1868 = vmatpush1.xpose.msra.mxu0 0.0
        %1869 = vmatprep.subr.mxu0 0.0
        %1870 = vmatpush1.xpose.msra.mxu0 0.0
        %1871 = vmatprep.subr.mxu0 0.0
        %1872 = vmatpush1.xpose.msra.mxu0 0.0
        %1873 = vmatprep.subr.mxu0 0.0
        %1874 = vmatpush1.xpose.msra.mxu0 0.0
        %1875 = vmatprep.subr.mxu0 0.0
        %1876 = vmatpush1.xpose.msra.mxu0 0.0
        %1877 = vmatprep.subr.mxu0 0.0
        %1878 = vmatpush1.xpose.msra.mxu0 0.0
        %1879 = vmatprep.mubr.f32.mxu0 0.0
        %1880 = vmatmul.mubr.f32.gmra.mrb[0].mxu0 %v1811
        %v1881 = vpop.f32.mrb[0].mxu0
        %v1882 = vadd.f32 0.0, %v1881
        %v1883 = vpop.f32.mrb[0].mxu0
        %1884 = vdwg.mxu0
        %v1885 = vsel %vm556, %v1882, -inf
        %1886 = vmax.xlane.f32.xlu0 %v1885
        %v1887 = vpop.xlane.xlu0 %1886
        %v1888 = vsub.f32 %v1882, %v1887
        %v1889 = vmul.f32 %v1888, 1.442695
        %v1890 = vpow.pop %v1889
        %v1891 = vsel %vm556, %v1890, 0.0
        %1892 = vadd.xlane.f32.xlu0 %v1891
        %v1893 = vpop.xlane.xlu0 %1892
        %v1894 = vrcp.pop %v1893
        %v1895 = vmul.f32 %v1890, %v1894
        %1896 = vrot.lane.b32.xlu0 %v1638, 56
        %v1897 = vpop.permute.xlu0 %1896
        %v1900 = vsel %vm556, %v1895, 0
        %1902 = vmatprep.subr.mxu0 0.0
        %1903 = vmatpush1.msra.mxu0 %v1897
        %1904 = vmatprep.subr.mxu0 0.0
        %1905 = vmatpush1.msra.mxu0 0.0
        %1906 = vmatprep.subr.mxu0 0.0
        %1907 = vmatpush1.msra.mxu0 0.0
        %1908 = vmatprep.subr.mxu0 0.0
        %1909 = vmatpush1.msra.mxu0 0.0
        %1910 = vmatprep.subr.mxu0 0.0
        %1911 = vmatpush1.msra.mxu0 0.0
        %1912 = vmatprep.subr.mxu0 0.0
        %1913 = vmatpush1.msra.mxu0 0.0
        %1914 = vmatprep.subr.mxu0 0.0
        %1915 = vmatpush1.msra.mxu0 0.0
        %1916 = vmatprep.subr.mxu0 0.0
        %1917 = vmatpush1.msra.mxu0 0.0
        %1918 = vmatprep.subr.mxu0 0.0
        %1919 = vmatpush1.msra.mxu0 0.0
        %1920 = vmatprep.subr.mxu0 0.0
        %1921 = vmatpush1.msra.mxu0 0.0
        %1922 = vmatprep.subr.mxu0 0.0
        %1923 = vmatpush1.msra.mxu0 0.0
        %1924 = vmatprep.subr.mxu0 0.0
        %1925 = vmatpush1.msra.mxu0 0.0
        %1926 = vmatprep.subr.mxu0 0.0
        %1927 = vmatpush1.msra.mxu0 0.0
        %1928 = vmatprep.subr.mxu0 0.0
        %1929 = vmatpush1.msra.mxu0 0.0
        %1930 = vmatprep.subr.mxu0 0.0
        %1931 = vmatpush1.msra.mxu0 0.0
        %1932 = vmatprep.subr.mxu0 0.0
        %1933 = vmatpush1.msra.mxu0 0.0
        %1934 = vmatprep.subr.mxu0 0.0
        %1935 = vmatpush1.msra.mxu0 0.0
        %1936 = vmatprep.subr.mxu0 0.0
        %1937 = vmatpush1.msra.mxu0 0.0
        %1938 = vmatprep.subr.mxu0 0.0
        %1939 = vmatpush1.msra.mxu0 0.0
        %1940 = vmatprep.subr.mxu0 0.0
        %1941 = vmatpush1.msra.mxu0 0.0
        %1942 = vmatprep.subr.mxu0 0.0
        %1943 = vmatpush1.msra.mxu0 0.0
        %1944 = vmatprep.subr.mxu0 0.0
        %1945 = vmatpush1.msra.mxu0 0.0
        %1946 = vmatprep.subr.mxu0 0.0
        %1947 = vmatpush1.msra.mxu0 0.0
        %1948 = vmatprep.subr.mxu0 0.0
        %1949 = vmatpush1.msra.mxu0 0.0
        %1950 = vmatprep.subr.mxu0 0.0
        %1951 = vmatpush1.msra.mxu0 0.0
        %1952 = vmatprep.subr.mxu0 0.0
        %1953 = vmatpush1.msra.mxu0 0.0
        %1954 = vmatprep.subr.mxu0 0.0
        %1955 = vmatpush1.msra.mxu0 0.0
        %1956 = vmatprep.subr.mxu0 0.0
        %1957 = vmatpush1.msra.mxu0 0.0
        %1958 = vmatprep.subr.mxu0 0.0
        %1959 = vmatpush1.msra.mxu0 0.0
        %1960 = vmatprep.subr.mxu0 0.0
        %1961 = vmatpush1.msra.mxu0 0.0
        %1962 = vmatprep.subr.mxu0 0.0
        %1963 = vmatpush1.msra.mxu0 0.0
        %1964 = vmatprep.subr.mxu0 0.0
        %1965 = vmatpush1.msra.mxu0 0.0
        %1966 = vmatprep.mubr.f32.mxu0 0.0
        %1967 = vmatmul.mubr.f32.gmra.mrb[0].mxu0 %v1900
        %v1968 = vpop.f32.mrb[0].mxu0
        %v1969 = vadd.f32 0.0, %v1968
        %v1970 = vpop.f32.mrb[0].mxu0
        %1971 = vdwg.mxu0
        %1972 = vrot.lane.b32.xlu0 %v1641, 112
        %v1973 = vpop.permute.xlu0 %1972
        %1974 = vrot.lane.b32.xlu0 %v1638, 80
        %v1975 = vpop.permute.xlu0 %1974
        %v1976 = vsel %vm556, %v1973, 0
        %v1978 = vsel %vm556, %v1975, 0
        %1980 = vmatprep.subr.mxu0 0.0
        %1981 = vmatpush1.xpose.msra.mxu0 %v1978
        %1982 = vmatprep.subr.mxu0 0.0
        %1983 = vmatpush1.xpose.msra.mxu0 0.0
        %1984 = vmatprep.subr.mxu0 0.0
        %1985 = vmatpush1.xpose.msra.mxu0 0.0
        %1986 = vmatprep.subr.mxu0 0.0
        %1987 = vmatpush1.xpose.msra.mxu0 0.0
        %1988 = vmatprep.subr.mxu0 0.0
        %1989 = vmatpush1.xpose.msra.mxu0 0.0
        %1990 = vmatprep.subr.mxu0 0.0
        %1991 = vmatpush1.xpose.msra.mxu0 0.0
        %1992 = vmatprep.subr.mxu0 0.0
        %1993 = vmatpush1.xpose.msra.mxu0 0.0
        %1994 = vmatprep.subr.mxu0 0.0
        %1995 = vmatpush1.xpose.msra.mxu0 0.0
        %1996 = vmatprep.subr.mxu0 0.0
        %1997 = vmatpush1.xpose.msra.mxu0 0.0
        %1998 = vmatprep.subr.mxu0 0.0
        %1999 = vmatpush1.xpose.msra.mxu0 0.0
        %2000 = vmatprep.subr.mxu0 0.0
        %2001 = vmatpush1.xpose.msra.mxu0 0.0
        %2002 = vmatprep.subr.mxu0 0.0
        %2003 = vmatpush1.xpose.msra.mxu0 0.0
        %2004 = vmatprep.subr.mxu0 0.0
        %2005 = vmatpush1.xpose.msra.mxu0 0.0
        %2006 = vmatprep.subr.mxu0 0.0
        %2007 = vmatpush1.xpose.msra.mxu0 0.0
        %2008 = vmatprep.subr.mxu0 0.0
        %2009 = vmatpush1.xpose.msra.mxu0 0.0
        %2010 = vmatprep.subr.mxu0 0.0
        %2011 = vmatpush1.xpose.msra.mxu0 0.0
        %2012 = vmatprep.subr.mxu0 0.0
        %2013 = vmatpush1.xpose.msra.mxu0 0.0
        %2014 = vmatprep.subr.mxu0 0.0
        %2015 = vmatpush1.xpose.msra.mxu0 0.0
        %2016 = vmatprep.subr.mxu0 0.0
        %2017 = vmatpush1.xpose.msra.mxu0 0.0
        %2018 = vmatprep.subr.mxu0 0.0
        %2019 = vmatpush1.xpose.msra.mxu0 0.0
        %2020 = vmatprep.subr.mxu0 0.0
        %2021 = vmatpush1.xpose.msra.mxu0 0.0
        %2022 = vmatprep.subr.mxu0 0.0
        %2023 = vmatpush1.xpose.msra.mxu0 0.0
        %2024 = vmatprep.subr.mxu0 0.0
        %2025 = vmatpush1.xpose.msra.mxu0 0.0
        %2026 = vmatprep.subr.mxu0 0.0
        %2027 = vmatpush1.xpose.msra.mxu0 0.0
        %2028 = vmatprep.subr.mxu0 0.0
        %2029 = vmatpush1.xpose.msra.mxu0 0.0
        %2030 = vmatprep.subr.mxu0 0.0
        %2031 = vmatpush1.xpose.msra.mxu0 0.0
        %2032 = vmatprep.subr.mxu0 0.0
        %2033 = vmatpush1.xpose.msra.mxu0 0.0
        %2034 = vmatprep.subr.mxu0 0.0
        %2035 = vmatpush1.xpose.msra.mxu0 0.0
        %2036 = vmatprep.subr.mxu0 0.0
        %2037 = vmatpush1.xpose.msra.mxu0 0.0
        %2038 = vmatprep.subr.mxu0 0.0
        %2039 = vmatpush1.xpose.msra.mxu0 0.0
        %2040 = vmatprep.subr.mxu0 0.0
        %2041 = vmatpush1.xpose.msra.mxu0 0.0
        %2042 = vmatprep.subr.mxu0 0.0
        %2043 = vmatpush1.xpose.msra.mxu0 0.0
        %2044 = vmatprep.mubr.f32.mxu0 0.0
        %2045 = vmatmul.mubr.f32.gmra.mrb[0].mxu0 %v1976
        %v2046 = vpop.f32.mrb[0].mxu0
        %v2047 = vadd.f32 0.0, %v2046
        %v2048 = vpop.f32.mrb[0].mxu0
        %2049 = vdwg.mxu0
        %v2050 = vsel %vm556, %v2047, -inf
        %2051 = vmax.xlane.f32.xlu0 %v2050
        %v2052 = vpop.xlane.xlu0 %2051
        %v2053 = vsub.f32 %v2047, %v2052
        %v2054 = vmul.f32 %v2053, 1.442695
        %v2055 = vpow.pop %v2054
        %v2056 = vsel %vm556, %v2055, 0.0
        %2057 = vadd.xlane.f32.xlu0 %v2056
        %v2058 = vpop.xlane.xlu0 %2057
        %v2059 = vrcp.pop %v2058
        %v2060 = vmul.f32 %v2055, %v2059
        %2061 = vrot.lane.b32.xlu0 %v1638, 48
        %v2062 = vpop.permute.xlu0 %2061
        %v2065 = vsel %vm556, %v2060, 0
        %2067 = vmatprep.subr.mxu0 0.0
        %2068 = vmatpush1.msra.mxu0 %v2062
        %2069 = vmatprep.subr.mxu0 0.0
        %2070 = vmatpush1.msra.mxu0 0.0
        %2071 = vmatprep.subr.mxu0 0.0
        %2072 = vmatpush1.msra.mxu0 0.0
        %2073 = vmatprep.subr.mxu0 0.0
        %2074 = vmatpush1.msra.mxu0 0.0
        %2075 = vmatprep.subr.mxu0 0.0
        %2076 = vmatpush1.msra.mxu0 0.0
        %2077 = vmatprep.subr.mxu0 0.0
        %2078 = vmatpush1.msra.mxu0 0.0
        %2079 = vmatprep.subr.mxu0 0.0
        %2080 = vmatpush1.msra.mxu0 0.0
        %2081 = vmatprep.subr.mxu0 0.0
        %2082 = vmatpush1.msra.mxu0 0.0
        %2083 = vmatprep.subr.mxu0 0.0
        %2084 = vmatpush1.msra.mxu0 0.0
        %2085 = vmatprep.subr.mxu0 0.0
        %2086 = vmatpush1.msra.mxu0 0.0
        %2087 = vmatprep.subr.mxu0 0.0
        %2088 = vmatpush1.msra.mxu0 0.0
        %2089 = vmatprep.subr.mxu0 0.0
        %2090 = vmatpush1.msra.mxu0 0.0
        %2091 = vmatprep.subr.mxu0 0.0
        %2092 = vmatpush1.msra.mxu0 0.0
        %2093 = vmatprep.subr.mxu0 0.0
        %2094 = vmatpush1.msra.mxu0 0.0
        %2095 = vmatprep.subr.mxu0 0.0
        %2096 = vmatpush1.msra.mxu0 0.0
        %2097 = vmatprep.subr.mxu0 0.0
        %2098 = vmatpush1.msra.mxu0 0.0
        %2099 = vmatprep.subr.mxu0 0.0
        %2100 = vmatpush1.msra.mxu0 0.0
        %2101 = vmatprep.subr.mxu0 0.0
        %2102 = vmatpush1.msra.mxu0 0.0
        %2103 = vmatprep.subr.mxu0 0.0
        %2104 = vmatpush1.msra.mxu0 0.0
        %2105 = vmatprep.subr.mxu0 0.0
        %2106 = vmatpush1.msra.mxu0 0.0
        %2107 = vmatprep.subr.mxu0 0.0
        %2108 = vmatpush1.msra.mxu0 0.0
        %2109 = vmatprep.subr.mxu0 0.0
        %2110 = vmatpush1.msra.mxu0 0.0
        %2111 = vmatprep.subr.mxu0 0.0
        %2112 = vmatpush1.msra.mxu0 0.0
        %2113 = vmatprep.subr.mxu0 0.0
        %2114 = vmatpush1.msra.mxu0 0.0
        %2115 = vmatprep.subr.mxu0 0.0
        %2116 = vmatpush1.msra.mxu0 0.0
        %2117 = vmatprep.subr.mxu0 0.0
        %2118 = vmatpush1.msra.mxu0 0.0
        %2119 = vmatprep.subr.mxu0 0.0
        %2120 = vmatpush1.msra.mxu0 0.0
        %2121 = vmatprep.subr.mxu0 0.0
        %2122 = vmatpush1.msra.mxu0 0.0
        %2123 = vmatprep.subr.mxu0 0.0
        %2124 = vmatpush1.msra.mxu0 0.0
        %2125 = vmatprep.subr.mxu0 0.0
        %2126 = vmatpush1.msra.mxu0 0.0
        %2127 = vmatprep.subr.mxu0 0.0
        %2128 = vmatpush1.msra.mxu0 0.0
        %2129 = vmatprep.subr.mxu0 0.0
        %2130 = vmatpush1.msra.mxu0 0.0
        %2131 = vmatprep.mubr.f32.mxu0 0.0
        %2132 = vmatmul.mubr.f32.gmra.mrb[0].mxu0 %v2065
        %v2133 = vpop.f32.mrb[0].mxu0
        %v2134 = vadd.f32 0.0, %v2133
        %v2135 = vpop.f32.mrb[0].mxu0
        %2136 = vdwg.mxu0
        %2137 = vrot.lane.b32.xlu0 %v1641, 104
        %v2138 = vpop.permute.xlu0 %2137
        %2139 = vrot.lane.b32.xlu0 %v1638, 72
        %v2140 = vpop.permute.xlu0 %2139
        %v2141 = vsel %vm556, %v2138, 0
        %v2143 = vsel %vm556, %v2140, 0
        %2145 = vmatprep.subr.mxu0 0.0
        %2146 = vmatpush1.xpose.msra.mxu0 %v2143
        %2147 = vmatprep.subr.mxu0 0.0
        %2148 = vmatpush1.xpose.msra.mxu0 0.0
        %2149 = vmatprep.subr.mxu0 0.0
        %2150 = vmatpush1.xpose.msra.mxu0 0.0
        %2151 = vmatprep.subr.mxu0 0.0
        %2152 = vmatpush1.xpose.msra.mxu0 0.0
        %2153 = vmatprep.subr.mxu0 0.0
        %2154 = vmatpush1.xpose.msra.mxu0 0.0
        %2155 = vmatprep.subr.mxu0 0.0
        %2156 = vmatpush1.xpose.msra.mxu0 0.0
        %2157 = vmatprep.subr.mxu0 0.0
        %2158 = vmatpush1.xpose.msra.mxu0 0.0
        %2159 = vmatprep.subr.mxu0 0.0
        %2160 = vmatpush1.xpose.msra.mxu0 0.0
        %2161 = vmatprep.subr.mxu0 0.0
        %2162 = vmatpush1.xpose.msra.mxu0 0.0
        %2163 = vmatprep.subr.mxu0 0.0
        %2164 = vmatpush1.xpose.msra.mxu0 0.0
        %2165 = vmatprep.subr.mxu0 0.0
        %2166 = vmatpush1.xpose.msra.mxu0 0.0
        %2167 = vmatprep.subr.mxu0 0.0
        %2168 = vmatpush1.xpose.msra.mxu0 0.0
        %2169 = vmatprep.subr.mxu0 0.0
        %2170 = vmatpush1.xpose.msra.mxu0 0.0
        %2171 = vmatprep.subr.mxu0 0.0
        %2172 = vmatpush1.xpose.msra.mxu0 0.0
        %2173 = vmatprep.subr.mxu0 0.0
        %2174 = vmatpush1.xpose.msra.mxu0 0.0
        %2175 = vmatprep.subr.mxu0 0.0
        %2176 = vmatpush1.xpose.msra.mxu0 0.0
        %2177 = vmatprep.subr.mxu0 0.0
        %2178 = vmatpush1.xpose.msra.mxu0 0.0
        %2179 = vmatprep.subr.mxu0 0.0
        %2180 = vmatpush1.xpose.msra.mxu0 0.0
        %2181 = vmatprep.subr.mxu0 0.0
        %2182 = vmatpush1.xpose.msra.mxu0 0.0
        %2183 = vmatprep.subr.mxu0 0.0
        %2184 = vmatpush1.xpose.msra.mxu0 0.0
        %2185 = vmatprep.subr.mxu0 0.0
        %2186 = vmatpush1.xpose.msra.mxu0 0.0
        %2187 = vmatprep.subr.mxu0 0.0
        %2188 = vmatpush1.xpose.msra.mxu0 0.0
        %2189 = vmatprep.subr.mxu0 0.0
        %2190 = vmatpush1.xpose.msra.mxu0 0.0
        %2191 = vmatprep.subr.mxu0 0.0
        %2192 = vmatpush1.xpose.msra.mxu0 0.0
        %2193 = vmatprep.subr.mxu0 0.0
        %2194 = vmatpush1.xpose.msra.mxu0 0.0
        %2195 = vmatprep.subr.mxu0 0.0
        %2196 = vmatpush1.xpose.msra.mxu0 0.0
        %2197 = vmatprep.subr.mxu0 0.0
        %2198 = vmatpush1.xpose.msra.mxu0 0.0
        %2199 = vmatprep.subr.mxu0 0.0
        %2200 = vmatpush1.xpose.msra.mxu0 0.0
        %2201 = vmatprep.subr.mxu0 0.0
        %2202 = vmatpush1.xpose.msra.mxu0 0.0
        %2203 = vmatprep.subr.mxu0 0.0
        %2204 = vmatpush1.xpose.msra.mxu0 0.0
        %2205 = vmatprep.subr.mxu0 0.0
        %2206 = vmatpush1.xpose.msra.mxu0 0.0
        %2207 = vmatprep.subr.mxu0 0.0
        %2208 = vmatpush1.xpose.msra.mxu0 0.0
        %2209 = vmatprep.mubr.f32.mxu0 0.0
        %2210 = vmatmul.mubr.f32.gmra.mrb[0].mxu0 %v2141
        %v2211 = vpop.f32.mrb[0].mxu0
        %v2212 = vadd.f32 0.0, %v2211
        %v2213 = vpop.f32.mrb[0].mxu0
        %2214 = vdwg.mxu0
        %v2215 = vsel %vm556, %v2212, -inf
        %2216 = vmax.xlane.f32.xlu0 %v2215
        %v2217 = vpop.xlane.xlu0 %2216
        %v2218 = vsub.f32 %v2212, %v2217
        %v2219 = vmul.f32 %v2218, 1.442695
        %v2220 = vpow.pop %v2219
        %v2221 = vsel %vm556, %v2220, 0.0
        %2222 = vadd.xlane.f32.xlu0 %v2221
        %v2223 = vpop.xlane.xlu0 %2222
        %v2224 = vrcp.pop %v2223
        %v2225 = vmul.f32 %v2220, %v2224
        %2226 = vrot.lane.b32.xlu0 %v1638, 40
        %v2227 = vpop.permute.xlu0 %2226
        %v2230 = vsel %vm556, %v2225, 0
        %2232 = vmatprep.subr.mxu0 0.0
        %2233 = vmatpush1.msra.mxu0 %v2227
        %2234 = vmatprep.subr.mxu0 0.0
        %2235 = vmatpush1.msra.mxu0 0.0
        %2236 = vmatprep.subr.mxu0 0.0
        %2237 = vmatpush1.msra.mxu0 0.0
        %2238 = vmatprep.subr.mxu0 0.0
        %2239 = vmatpush1.msra.mxu0 0.0
        %2240 = vmatprep.subr.mxu0 0.0
        %2241 = vmatpush1.msra.mxu0 0.0
        %2242 = vmatprep.subr.mxu0 0.0
        %2243 = vmatpush1.msra.mxu0 0.0
        %2244 = vmatprep.subr.mxu0 0.0
        %2245 = vmatpush1.msra.mxu0 0.0
        %2246 = vmatprep.subr.mxu0 0.0
        %2247 = vmatpush1.msra.mxu0 0.0
        %2248 = vmatprep.subr.mxu0 0.0
        %2249 = vmatpush1.msra.mxu0 0.0
        %2250 = vmatprep.subr.mxu0 0.0
        %2251 = vmatpush1.msra.mxu0 0.0
        %2252 = vmatprep.subr.mxu0 0.0
        %2253 = vmatpush1.msra.mxu0 0.0
        %2254 = vmatprep.subr.mxu0 0.0
        %2255 = vmatpush1.msra.mxu0 0.0
        %2256 = vmatprep.subr.mxu0 0.0
        %2257 = vmatpush1.msra.mxu0 0.0
        %2258 = vmatprep.subr.mxu0 0.0
        %2259 = vmatpush1.msra.mxu0 0.0
        %2260 = vmatprep.subr.mxu0 0.0
        %2261 = vmatpush1.msra.mxu0 0.0
        %2262 = vmatprep.subr.mxu0 0.0
        %2263 = vmatpush1.msra.mxu0 0.0
        %2264 = vmatprep.subr.mxu0 0.0
        %2265 = vmatpush1.msra.mxu0 0.0
        %2266 = vmatprep.subr.mxu0 0.0
        %2267 = vmatpush1.msra.mxu0 0.0
        %2268 = vmatprep.subr.mxu0 0.0
        %2269 = vmatpush1.msra.mxu0 0.0
        %2270 = vmatprep.subr.mxu0 0.0
        %2271 = vmatpush1.msra.mxu0 0.0
        %2272 = vmatprep.subr.mxu0 0.0
        %2273 = vmatpush1.msra.mxu0 0.0
        %2274 = vmatprep.subr.mxu0 0.0
        %2275 = vmatpush1.msra.mxu0 0.0
        %2276 = vmatprep.subr.mxu0 0.0
        %2277 = vmatpush1.msra.mxu0 0.0
        %2278 = vmatprep.subr.mxu0 0.0
        %2279 = vmatpush1.msra.mxu0 0.0
        %2280 = vmatprep.subr.mxu0 0.0
        %2281 = vmatpush1.msra.mxu0 0.0
        %2282 = vmatprep.subr.mxu0 0.0
        %2283 = vmatpush1.msra.mxu0 0.0
        %2284 = vmatprep.subr.mxu0 0.0
        %2285 = vmatpush1.msra.mxu0 0.0
        %2286 = vmatprep.subr.mxu0 0.0
        %2287 = vmatpush1.msra.mxu0 0.0
        %2288 = vmatprep.subr.mxu0 0.0
        %2289 = vmatpush1.msra.mxu0 0.0
        %2290 = vmatprep.subr.mxu0 0.0
        %2291 = vmatpush1.msra.mxu0 0.0
        %2292 = vmatprep.subr.mxu0 0.0
        %2293 = vmatpush1.msra.mxu0 0.0
        %2294 = vmatprep.subr.mxu0 0.0
        %2295 = vmatpush1.msra.mxu0 0.0
        %2296 = vmatprep.mubr.f32.mxu0 0.0
        %2297 = vmatmul.mubr.f32.gmra.mrb[0].mxu0 %v2230
        %v2298 = vpop.f32.mrb[0].mxu0
        %v2299 = vadd.f32 0.0, %v2298
        %v2300 = vpop.f32.mrb[0].mxu0
        %2301 = vdwg.mxu0
        %2303 = vrot.lane.b32.xlu0 %v1969, 8
        %v2304 = vpop.permute.xlu0 %2303
        %2307 = vrot.lane.b32.xlu0 %v2134, 16
        %v2308 = vpop.permute.xlu0 %2307
        %2311 = vrot.lane.b32.xlu0 %v2299, 24
        %v2312 = vpop.permute.xlu0 %2311
        %v2314 = vsel %vm556, %v1804, %v2304
        %v2315 = vsel %vm1227, %v2314, %v2308
        %v2316 = vsel %vm1229, %v2315, %v2312
        %s2317 = scalar_lea.vmem %s5, 32
        %v2318 = vld [vmem:[%s2317] sm:$0xff]
        %v2319 = vld [vmem:[%s2317 + $0x8] sm:$0xff]
        %v2320 = vld [vmem:[%s2317 + $0x10] sm:$0xff]
        %v2321 = vld [vmem:[%s2317 + $0x18] sm:$0xff]
        %s2322 = scalar_lea.vmem %s6, 1
        %v2323 = vld [vmem:[%s2322] sm:$0x1]
        %v2325 = vlaneseq
        %v2326 = vshrl.u32 %v2325, 7
        %v2327 = vsub.s32 0, %v2326
        %v2328 = vrot.slane %v2323, %v2327
        %v2331 = vsel %vm439, %v2316, 0
        %2333 = vmatprep.subr.mxu0 0.0
        %2334 = vmatpush1.msra.mxu0 %v2318
        %2335 = vmatprep.subr.mxu0 0.0
        %2336 = vmatpush1.msra.mxu0 %v2319
        %2337 = vmatprep.subr.mxu0 0.0
        %2338 = vmatpush1.msra.mxu0 %v2320
        %2339 = vmatprep.subr.mxu0 0.0
        %2340 = vmatpush1.msra.mxu0 %v2321
        %2341 = vmatprep.subr.mxu0 0.0
        %2342 = vmatpush1.msra.mxu0 0.0
        %2343 = vmatprep.subr.mxu0 0.0
        %2344 = vmatpush1.msra.mxu0 0.0
        %2345 = vmatprep.subr.mxu0 0.0
        %2346 = vmatpush1.msra.mxu0 0.0
        %2347 = vmatprep.subr.mxu0 0.0
        %2348 = vmatpush1.msra.mxu0 0.0
        %2349 = vmatprep.subr.mxu0 0.0
        %2350 = vmatpush1.msra.mxu0 0.0
        %2351 = vmatprep.subr.mxu0 0.0
        %2352 = vmatpush1.msra.mxu0 0.0
        %2353 = vmatprep.subr.mxu0 0.0
        %2354 = vmatpush1.msra.mxu0 0.0
        %2355 = vmatprep.subr.mxu0 0.0
        %2356 = vmatpush1.msra.mxu0 0.0
        %2357 = vmatprep.subr.mxu0 0.0
        %2358 = vmatpush1.msra.mxu0 0.0
        %2359 = vmatprep.subr.mxu0 0.0
        %2360 = vmatpush1.msra.mxu0 0.0
        %2361 = vmatprep.subr.mxu0 0.0
        %2362 = vmatpush1.msra.mxu0 0.0
        %2363 = vmatprep.subr.mxu0 0.0
        %2364 = vmatpush1.msra.mxu0 0.0
        %2365 = vmatprep.subr.mxu0 0.0
        %2366 = vmatpush1.msra.mxu0 0.0
        %2367 = vmatprep.subr.mxu0 0.0
        %2368 = vmatpush1.msra.mxu0 0.0
        %2369 = vmatprep.subr.mxu0 0.0
        %2370 = vmatpush1.msra.mxu0 0.0
        %2371 = vmatprep.subr.mxu0 0.0
        %2372 = vmatpush1.msra.mxu0 0.0
        %2373 = vmatprep.subr.mxu0 0.0
        %2374 = vmatpush1.msra.mxu0 0.0
        %2375 = vmatprep.subr.mxu0 0.0
        %2376 = vmatpush1.msra.mxu0 0.0
        %2377 = vmatprep.subr.mxu0 0.0
        %2378 = vmatpush1.msra.mxu0 0.0
        %2379 = vmatprep.subr.mxu0 0.0
        %2380 = vmatpush1.msra.mxu0 0.0
        %2381 = vmatprep.subr.mxu0 0.0
        %2382 = vmatpush1.msra.mxu0 0.0
        %2383 = vmatprep.subr.mxu0 0.0
        %2384 = vmatpush1.msra.mxu0 0.0
        %2385 = vmatprep.subr.mxu0 0.0
        %2386 = vmatpush1.msra.mxu0 0.0
        %2387 = vmatprep.subr.mxu0 0.0
        %2388 = vmatpush1.msra.mxu0 0.0
        %2389 = vmatprep.subr.mxu0 0.0
        %2390 = vmatpush1.msra.mxu0 0.0
        %2391 = vmatprep.subr.mxu0 0.0
        %2392 = vmatpush1.msra.mxu0 0.0
        %2393 = vmatprep.subr.mxu0 0.0
        %2394 = vmatpush1.msra.mxu0 0.0
        %2395 = vmatprep.subr.mxu0 0.0
        %2396 = vmatpush1.msra.mxu0 0.0
        %2397 = vmatprep.mubr.f32.mxu0 0.0
        %2398 = vmatmul.mubr.f32.gmra.mrb[0].mxu0 %v2331
        %v2399 = vpop.f32.mrb[0].mxu0
        %v2400 = vadd.f32 %v2328, %v2399
        %v2401 = vpop.f32.mrb[0].mxu0
        %2402 = vdwg.mxu0
        %v2403 = vadd.f32 %v1523, %v2400
        %s2404 = scalar_lea.vmem %s7, 1
        %v2405 = vld [vmem:[%s2404] sm:$0x1]
        %s2406 = scalar_lea.vmem %s8, 1
        %v2407 = vld [vmem:[%s2406] sm:$0x1]
        %v2408 = vsel %vm439, %v2403, 0.0
        %2409 = vadd.xlane.f32.xlu0 %v2408
        %v2410 = vpop.xlane.xlu0 %2409
        %v2411 = vmul.f32 %v2410, %v443
        %v2412 = vsub.f32 %v2403, %v2411
        %v2413 = vmul.f32 %v2412, %v2412
        %v2414 = vsel %vm439, %v2413, 0.0
        %2415 = vadd.xlane.f32.xlu0 %v2414
        %v2416 = vpop.xlane.xlu0 %2415
        %v2417 = vmul.f32 %v2416, %v443
        %v2418 = vadd.f32 %v2417, 1e-05
        %v2419 = vrsqrt.pop %v2418
        %v2420 = vmul.f32 %v2412, %v2419
        %v2422 = vlaneseq
        %v2423 = vshrl.u32 %v2422, 7
        %v2424 = vsub.s32 0, %v2423
        %v2425 = vrot.slane %v2405, %v2424
        %v2427 = vmul.f32 %v2420, %v2425
        %v2429 = vlaneseq
        %v2430 = vshrl.u32 %v2429, 7
        %v2431 = vsub.s32 0, %v2430
        %v2432 = vrot.slane %v2407, %v2431
        %v2434 = vadd.f32 %v2427, %v2432
        %s2435 = scalar_lea.vmem %s9, 32
        %v2436 = vld [vmem:[%s2435] sm:$0xff]
        %v2437 = vld [vmem:[%s2435 + $0x8] sm:$0xff]
        %v2438 = vld [vmem:[%s2435 + $0x10] sm:$0xff]
        %v2439 = vld [vmem:[%s2435 + $0x18] sm:$0xff]
        %s2440 = scalar_lea.vmem %s10, 1
        %v2441 = vld [vmem:[%s2440] sm:$0x1]
        %v2443 = vlaneseq
        %v2444 = vshrl.u32 %v2443, 7
        %v2445 = vsub.s32 0, %v2444
        %v2446 = vrot.slane %v2441, %v2445
        %v2449 = vsel %vm439, %v2434, 0
        %2451 = vmatprep.subr.mxu0 0.0
        %2452 = vmatpush1.msra.mxu0 %v2436
        %2453 = vmatprep.subr.mxu0 0.0
        %2454 = vmatpush1.msra.mxu0 %v2437
        %2455 = vmatprep.subr.mxu0 0.0
        %2456 = vmatpush1.msra.mxu0 %v2438
        %2457 = vmatprep.subr.mxu0 0.0
        %2458 = vmatpush1.msra.mxu0 %v2439
        %2459 = vmatprep.subr.mxu0 0.0
        %2460 = vmatpush1.msra.mxu0 0.0
        %2461 = vmatprep.subr.mxu0 0.0
        %2462 = vmatpush1.msra.mxu0 0.0
        %2463 = vmatprep.subr.mxu0 0.0
        %2464 = vmatpush1.msra.mxu0 0.0
        %2465 = vmatprep.subr.mxu0 0.0
        %2466 = vmatpush1.msra.mxu0 0.0
        %2467 = vmatprep.subr.mxu0 0.0
        %2468 = vmatpush1.msra.mxu0 0.0
        %2469 = vmatprep.subr.mxu0 0.0
        %2470 = vmatpush1.msra.mxu0 0.0
        %2471 = vmatprep.subr.mxu0 0.0
        %2472 = vmatpush1.msra.mxu0 0.0
        %2473 = vmatprep.subr.mxu0 0.0
        %2474 = vmatpush1.msra.mxu0 0.0
        %2475 = vmatprep.subr.mxu0 0.0
        %2476 = vmatpush1.msra.mxu0 0.0
        %2477 = vmatprep.subr.mxu0 0.0
        %2478 = vmatpush1.msra.mxu0 0.0
        %2479 = vmatprep.subr.mxu0 0.0
        %2480 = vmatpush1.msra.mxu0 0.0
        %2481 = vmatprep.subr.mxu0 0.0
        %2482 = vmatpush1.msra.mxu0 0.0
        %2483 = vmatprep.subr.mxu0 0.0
        %2484 = vmatpush1.msra.mxu0 0.0
        %2485 = vmatprep.subr.mxu0 0.0
        %2486 = vmatpush1.msra.mxu0 0.0
        %2487 = vmatprep.subr.mxu0 0.0
        %2488 = vmatpush1.msra.mxu0 0.0
        %2489 = vmatprep.subr.mxu0 0.0
        %2490 = vmatpush1.msra.mxu0 0.0
        %2491 = vmatprep.subr.mxu0 0.0
        %2492 = vmatpush1.msra.mxu0 0.0
        %2493 = vmatprep.subr.mxu0 0.0
        %2494 = vmatpush1.msra.mxu0 0.0
        %2495 = vmatprep.subr.mxu0 0.0
        %2496 = vmatpush1.msra.mxu0 0.0
        %2497 = vmatprep.subr.mxu0 0.0
        %2498 = vmatpush1.msra.mxu0 0.0
        %2499 = vmatprep.subr.mxu0 0.0
        %2500 = vmatpush1.msra.mxu0 0.0
        %2501 = vmatprep.subr.mxu0 0.0
        %2502 = vmatpush1.msra.mxu0 0.0
        %2503 = vmatprep.subr.mxu0 0.0
        %2504 = vmatpush1.msra.mxu0 0.0
        %2505 = vmatprep.subr.mxu0 0.0
        %2506 = vmatpush1.msra.mxu0 0.0
        %2507 = vmatprep.subr.mxu0 0.0
        %2508 = vmatpush1.msra.mxu0 0.0
        %2509 = vmatprep.subr.mxu0 0.0
        %2510 = vmatpush1.msra.mxu0 0.0
        %2511 = vmatprep.subr.mxu0 0.0
        %2512 = vmatpush1.msra.mxu0 0.0
        %2513 = vmatprep.subr.mxu0 0.0
        %2514 = vmatpush1.msra.mxu0 0.0
        %2515 = vmatprep.mubr.f32.mxu0 0.0
        %2516 = vmatmul.mubr.f32.gmra.mrb[0].mxu0 %v2449
        %v2517 = vpop.f32.mrb[0].mxu0
        %v2518 = vadd.f32 %v2446, %v2517
        %v2519 = vpop.f32.mrb[0].mxu0
        %2520 = vdwg.mxu0
        %v2521 = vmax.f32 %v2518, 0.0
        %s2522 = scalar_lea.vmem %s11, 128
        %v2523 = vld [vmem:[%s2522] sm:$0xff]
        %v2524 = vld [vmem:[%s2522 + $0x8] sm:$0xff]
        %v2525 = vld [vmem:[%s2522 + $0x10] sm:$0xff]
        %v2526 = vld [vmem:[%s2522 + $0x18] sm:$0xff]
        %v2527 = vld [vmem:[%s2522 + $0x20] sm:$0xff]
        %v2528 = vld [vmem:[%s2522 + $0x28] sm:$0xff]
        %v2529 = vld [vmem:[%s2522 + $0x30] sm:$0xff]
        %v2530 = vld [vmem:[%s2522 + $0x38] sm:$0xff]
        %v2531 = vld [vmem:[%s2522 + $0x40] sm:$0xff]
        %v2532 = vld [vmem:[%s2522 + $0x48] sm:$0xff]
        %v2533 = vld [vmem:[%s2522 + $0x50] sm:$0xff]
        %v2534 = vld [vmem:[%s2522 + $0x58] sm:$0xff]
        %v2535 = vld [vmem:[%s2522 + $0x60] sm:$0xff]
        %v2536 = vld [vmem:[%s2522 + $0x68] sm:$0xff]
        %v2537 = vld [vmem:[%s2522 + $0x70] sm:$0xff]
        %v2538 = vld [vmem:[%s2522 + $0x78] sm:$0xff]
        %s2539 = scalar_lea.vmem %s12, 1
        %v2540 = vld [vmem:[%s2539] sm:$0x1]
        %v2542 = vlaneseq
        %v2543 = vshrl.u32 %v2542, 7
        %v2544 = vsub.s32 0, %v2543
        %v2545 = vrot.slane %v2540, %v2544
        %2547 = vmatprep.subr.mxu0 0.0
        %2548 = vmatpush1.msra.mxu0 %v2523
        %2549 = vmatprep.subr.mxu0 0.0
        %2550 = vmatpush1.msra.mxu0 %v2524
        %2551 = vmatprep.subr.mxu0 0.0
        %2552 = vmatpush1.msra.mxu0 %v2525
        %2553 = vmatprep.subr.mxu0 0.0
        %2554 = vmatpush1.msra.mxu0 %v2526
        %2555 = vmatprep.subr.mxu0 0.0
        %2556 = vmatpush1.msra.mxu0 %v2527
        %2557 = vmatprep.subr.mxu0 0.0
        %2558 = vmatpush1.msra.mxu0 %v2528
        %2559 = vmatprep.subr.mxu0 0.0
        %2560 = vmatpush1.msra.mxu0 %v2529
        %2561 = vmatprep.subr.mxu0 0.0
        %2562 = vmatpush1.msra.mxu0 %v2530
        %2563 = vmatprep.subr.mxu0 0.0
        %2564 = vmatpush1.msra.mxu0 %v2531
        %2565 = vmatprep.subr.mxu0 0.0
        %2566 = vmatpush1.msra.mxu0 %v2532
        %2567 = vmatprep.subr.mxu0 0.0
        %2568 = vmatpush1.msra.mxu0 %v2533
        %2569 = vmatprep.subr.mxu0 0.0
        %2570 = vmatpush1.msra.mxu0 %v2534
        %2571 = vmatprep.subr.mxu0 0.0
        %2572 = vmatpush1.msra.mxu0 %v2535
        %2573 = vmatprep.subr.mxu0 0.0
        %2574 = vmatpush1.msra.mxu0 %v2536
        %2575 = vmatprep.subr.mxu0 0.0
        %2576 = vmatpush1.msra.mxu0 %v2537
        %2577 = vmatprep.subr.mxu0 0.0
        %2578 = vmatpush1.msra.mxu0 %v2538
        %2579 = vmatprep.subr.mxu0 0.0
        %2580 = vmatpush1.msra.mxu0 0.0
        %2581 = vmatprep.subr.mxu0 0.0
        %2582 = vmatpush1.msra.mxu0 0.0
        %2583 = vmatprep.subr.mxu0 0.0
        %2584 = vmatpush1.msra.mxu0 0.0
        %2585 = vmatprep.subr.mxu0 0.0
        %2586 = vmatpush1.msra.mxu0 0.0
        %2587 = vmatprep.subr.mxu0 0.0
        %2588 = vmatpush1.msra.mxu0 0.0
        %2589 = vmatprep.subr.mxu0 0.0
        %2590 = vmatpush1.msra.mxu0 0.0
        %2591 = vmatprep.subr.mxu0 0.0
        %2592 = vmatpush1.msra.mxu0 0.0
        %2593 = vmatprep.subr.mxu0 0.0
        %2594 = vmatpush1.msra.mxu0 0.0
        %2595 = vmatprep.subr.mxu0 0.0
        %2596 = vmatpush1.msra.mxu0 0.0
        %2597 = vmatprep.subr.mxu0 0.0
        %2598 = vmatpush1.msra.mxu0 0.0
        %2599 = vmatprep.subr.mxu0 0.0
        %2600 = vmatpush1.msra.mxu0 0.0
        %2601 = vmatprep.subr.mxu0 0.0
        %2602 = vmatpush1.msra.mxu0 0.0
        %2603 = vmatprep.subr.mxu0 0.0
        %2604 = vmatpush1.msra.mxu0 0.0
        %2605 = vmatprep.subr.mxu0 0.0
        %2606 = vmatpush1.msra.mxu0 0.0
        %2607 = vmatprep.subr.mxu0 0.0
        %2608 = vmatpush1.msra.mxu0 0.0
        %2609 = vmatprep.subr.mxu0 0.0
        %2610 = vmatpush1.msra.mxu0 0.0
        %2611 = vmatprep.mubr.f32.mxu0 0.0
        %2612 = vmatmul.mubr.f32.gmra.mrb[0].mxu0 %v2521
        %v2613 = vpop.f32.mrb[0].mxu0
        %v2614 = vadd.f32 %v2545, %v2613
        %v2615 = vpop.f32.mrb[0].mxu0
        %2616 = vdwg.mxu0
        %v2617 = vadd.f32 %v2403, %v2614
        %2618 = vst.msk [vmem:[%s431] sm:$0xff] %vm439, %v2617
        %s2619 = sand.u32 %s313, 1
        %s2620 = scalar_lea.sflag [#allocation3], %s2619
        %s2621 = sand.u32 %s313, 1
        %s2622 = smul.addr %s2621, 8
        %s2623 = scalar_lea.vmem [#allocation2], %s2622
        // Predicated region
        $region73: #{tpu_custom_call.1} parent=71 // pred_check
          %p2624 = pneg %p323
        $region74: #{tpu_custom_call.1} parent=71 // pred_check_branch
          %2626 = sbr.rel (%p2624) target = $region76
        $region75: #{tpu_custom_call.1} parent=71 // pred_region
          %s2628 = ssub.s32 128, 128
          %2629 = vsyncadd %s2620, %s2628
          %s2630 = smul.addr %s27, 128
          %s2631 = scalar_lea.hbm %s13, %s2630
          %s2633 = sshll.u32 %s2623, 4
          %s2634 = int_to_ptr.vmem [resolvable:$true] %s2633
          %2636 = dma.vmem_to_hbm [thread:$0]  %s2634, 128, %s2631, %s2620
        $region76: #{tpu_custom_call.1} parent=71 // pred_fallthru
          _
      $region72: #{tpu_custom_call.1} parent=5 // pred_fallthru
        _
      %p2637 = scmp.le.s32.totalorder 2, %s22
      // Predicated region
      $region77: #{tpu_custom_call.1} parent=5 // pred_check
        %p2638 = pneg %p2637
      $region78: #{tpu_custom_call.1} parent=5 // pred_check_branch
        %2640 = sbr.rel (%p2638) target = $region80
      $region79: #{tpu_custom_call.1} parent=5 // pred_region
        %s2641 = ssub.s32 %s22, 2
        // Predicated region
        $region81: #{tpu_custom_call.1} parent=79 // pred_check
          %p2642 = pneg %p329
        $region82: #{tpu_custom_call.1} parent=79 // pred_check_branch
          %2644 = sbr.rel (%p2642) target = $region84
        $region83: #{tpu_custom_call.1} parent=79 // pred_region
          %s2645 = sand.u32 %s314, 1
          %s2646 = scalar_lea.sflag [#allocation3], %s2645
          %s2647 = sand.u32 %s314, 1
          %s2648 = smul.addr %s2647, 8
          %s2649 = scalar_lea.vmem [#allocation2], %s2648
          %2650 = dma.done %s2646, 128
        $region84: #{tpu_custom_call.1} parent=79 // pred_fallthru
          _
      $region80: #{tpu_custom_call.1} parent=5 // pred_fallthru
        _
    $region6: #{tpu_custom_call.1} parent=1 // loop_footer
      %s26 = sadd.s32 1, %s22
    $region7: #{tpu_custom_call.1} parent=1 // loop_footer_branch
      %21 = sbr.rel target = $region3
    $region8: #{tpu_custom_call.1} parent=1 // loop_exit
      _
    %2651 = vsyncpa [#allocation3], 1
    %s2652 = scalar_lea.sflag [#allocation3], 1
    %2653 = vsyncpa %s2652, 1

</llo_original>
